<compile_context>
chip_gen: v7x
topology: tpu7x:2x2x1
jax: 0.10.0
libtpu: 0.0.40
codegen_flags: <defaults>
</compile_context>

<pallas_src>
import functools

import jax
import jax.numpy as jnp
from jax import lax
from jax.experimental import pallas as pl
from jax.experimental.pallas import tpu as pltpu


def _round_up(x, m):
    return (x + m - 1) // m * m


def _vq_kernel(x_ref, et_ref, e_ref, e2h_ref, q_ref, sse_ref, *, tile_n, n_valid):
    """One grid step handles a (tile_n, Dp) tile of flattened latents.

    x_ref  : (tile_n, Dp) f32  flattened latents tile (D zero-padded to Dp)
    et_ref : (Dp, Kp)     f32  codebook, pre-transposed (resident block)
    e_ref  : (Kp, Dp)     f32  codebook (resident block)
    e2h_ref: (1, Kp)      f32  0.5*||e_k||^2, padded codes set huge (resident)
    q_ref  : (tile_n, Dp) f32  quantized output tile
    sse_ref: (8, Dp)      f32  per-tile partial sum of squared errors
    """
    i = pl.program_id(0)

    x = x_ref[...]                                                     # (TN, Dp)
    kp = et_ref.shape[1]

    # argmin_k ||x - e_k||^2 == argmin_k (0.5*||e_k||^2 - <x, e_k>)
    xe = jnp.dot(x, et_ref[...], preferred_element_type=jnp.float32)   # (TN, Kp)
    score = e2h_ref[...] - xe                                          # (TN, Kp)

    # First-occurrence argmin along K (matches torch.argmin tie-breaking).
    min_s = jnp.min(score, axis=1, keepdims=True)                      # (TN, 1)
    kiota = lax.broadcasted_iota(jnp.int32, score.shape, 1)            # (TN, Kp)
    inds = jnp.min(jnp.where(score == min_s, kiota, kp),
                   axis=1, keepdims=True)                              # (TN, 1)
    onehot = (kiota == inds).astype(jnp.float32)                       # (TN, Kp)

    # quantized = one_hot @ codebook  (MXU gather, exact for 0/1 weights)
    q = jnp.dot(onehot, e_ref[...], preferred_element_type=jnp.float32)  # (TN, Dp)
    q_ref[...] = q

    # Masked (padded rows excluded) lane-dense partial SSE; reduced in wrapper.
    row = i * tile_n + lax.broadcasted_iota(jnp.int32, (tile_n, 1), 0)
    mask = (row < n_valid).astype(jnp.float32)                         # (TN, 1)
    diff = (q - x) * mask
    d2 = diff * diff                                                   # (TN, Dp)
    sse_ref[...] = jnp.sum(d2.reshape(tile_n // 8, 8, d2.shape[1]), axis=0)


def _pick_tile_n(n, dp, kp, budget_bytes=28 * 2**20, max_tile=1024):
    """Largest row-tile (multiple of 8, <=max_tile) fitting the VMEM budget."""
    # Resident codebook blocks (double-buffered by the pipeline) + norms.
    fixed = 2 * 2 * kp * dp * 4 + 2 * kp * 4
    # Per latent row: x/q double-buffered tiles + xe/score/onehot temps + diff/d2.
    per_row = 4 * (6 * dp + 3 * kp)
    tile = (budget_bytes - fixed) // max(per_row, 1)
    tile = max(8, min(int(tile), max_tile))
    tile = min(tile, _round_up(n, 8))
    return max(8, (tile // 8) * 8)


def vector_quantize(latents_nchw, embedding, beta=0.25):
    """Forward pass of VectorQuantizer (forward values of the PyTorch module).

    latents_nchw: (B, D, H, W) float32
    embedding:    (K, D) float32 codebook
    Returns (quantized_nchw, vq_loss).
    """
    B, D, H, W = latents_nchw.shape
    K, De = embedding.shape
    assert De == D

    # Glue: NCHW -> NHWC, flatten to (N, D) row-major.
    x_flat = jnp.transpose(latents_nchw, (0, 2, 3, 1)).reshape(-1, D)
    N = x_flat.shape[0]

    # Lane-dense padding: last dims to multiples of 128; rows to tile_n.
    Dp = _round_up(D, 128)
    Kp = _round_up(K, 128)
    tile_n = _pick_tile_n(N, Dp, Kp)
    Np = _round_up(N, tile_n)
    num_tiles = Np // tile_n

    x_pad = jnp.zeros((Np, Dp), jnp.float32).at[:N, :D].set(
        x_flat.astype(jnp.float32))
    e_pad = jnp.zeros((Kp, Dp), jnp.float32).at[:K, :D].set(
        embedding.astype(jnp.float32))
    et_pad = e_pad.T                                                   # (Dp, Kp)
    e2h = 0.5 * jnp.sum(e_pad * e_pad, axis=1)                         # (Kp,)
    e2h = jnp.where(jnp.arange(Kp) < K, e2h, jnp.float32(1e30))[None, :]  # (1, Kp)

    # VMEM budget: double-buffered x/q tiles + resident codebook(s) +
    # (tile_n, Kp) temporaries; margin, clamped to a cross-generation-safe cap.
    est = (
        2 * 2 * tile_n * Dp * 4        # x, q tiles (double-buffered)
        + 2 * 2 * Kp * Dp * 4          # e, e^T (resident, double-buffered)
        + 2 * Kp * 4                   # 0.5*||e||^2
        + 3 * tile_n * Kp * 4          # xe / score / onehot temporaries
        + 2 * tile_n * Dp * 4          # diff / d2
        + 2 * 8 * Dp * 4               # SSE partial tile
    )
    vmem_limit = int(min(max(2 * est, 16 * 2**20), 48 * 2**20))

    kernel = functools.partial(_vq_kernel, tile_n=tile_n, n_valid=N)

    q_pad, sse = pl.pallas_call(
        kernel,
        out_shape=(
            jax.ShapeDtypeStruct((Np, Dp), jnp.float32),
            jax.ShapeDtypeStruct((num_tiles * 8, Dp), jnp.float32),
        ),
        grid_spec=pltpu.PrefetchScalarGridSpec(
            num_scalar_prefetch=0,
            grid=(num_tiles,),
            in_specs=[
                pl.BlockSpec((tile_n, Dp), lambda i: (i, 0)),   # latents tile
                pl.BlockSpec((Dp, Kp), lambda i: (0, 0)),       # codebook^T (resident)
                pl.BlockSpec((Kp, Dp), lambda i: (0, 0)),       # codebook (resident)
                pl.BlockSpec((1, Kp), lambda i: (0, 0)),        # 0.5*||e||^2 (resident)
            ],
            out_specs=[
                pl.BlockSpec((tile_n, Dp), lambda i: (i, 0)),   # quantized tile
                pl.BlockSpec((8, Dp), lambda i: (i, 0)),        # per-tile SSE partials
            ],
        ),
        compiler_params=pltpu.CompilerParams(
            dimension_semantics=("parallel",),   # no cross-iteration dependence
            vmem_limit_bytes=vmem_limit,
        ),
    )(x_pad, et_pad, e_pad, e2h)

    mse = jnp.sum(sse) / jnp.float32(N * D)
    # commitment_loss == embedding_loss in forward value (detach affects grads only)
    vq_loss = mse * beta + mse

    q_nhwc = q_pad[:N, :D].reshape(B, H, W, D)
    # Straight-through: latents + (quantized - latents).detach() == quantized (fwd value)
    quantized_nchw = jnp.transpose(q_nhwc, (0, 3, 1, 2)).astype(latents_nchw.dtype)
    return quantized_nchw, vq_loss


if __name__ == "__main__":
    key = jax.random.PRNGKey(0)
    k_lat, k_emb = jax.random.split(key)

    # Small shapes consistent with the module: B=2, embedding_dim D=4,
    # spatial 16x16, num_embeddings K=8.
    B, D, H, W = 2, 4, 16, 16
    K = 8
    beta = 0.25

    latents = jax.random.normal(k_lat, (B, D, H, W), dtype=jnp.float32)
    # nn.Embedding weight init: uniform(-1/K, 1/K)
    embedding = jax.random.uniform(
        k_emb, (K, D), dtype=jnp.float32, minval=-1.0 / K, maxval=1.0 / K
    )

    quantized, vq_loss = vector_quantize(latents, embedding, beta=beta)
    jax.block_until_ready((quantized, vq_loss))

    # Pure-JAX reference check
    x = jnp.transpose(latents, (0, 2, 3, 1)).reshape(-1, D)
    dist = (
        jnp.sum(x**2, axis=1, keepdims=True)
        + jnp.sum(embedding**2, axis=1)
        - 2.0 * x @ embedding.T
    )
    inds = jnp.argmin(dist, axis=1)
    q_ref = embedding[inds].reshape(B, H, W, D)
    mse_ref = jnp.mean((q_ref - x.reshape(B, H, W, D)) ** 2)
    loss_ref = mse_ref * beta + mse_ref
    q_ref_nchw = jnp.transpose(q_ref, (0, 3, 1, 2))

    assert jnp.allclose(quantized, q_ref_nchw, atol=1e-5), "quantized mismatch"
    assert jnp.allclose(vq_loss, loss_ref, atol=1e-5), "loss mismatch"

    print("KERNEL_OK")
</pallas_src>

<mosaic_0001>
module attributes {stable_mosaic.version = 11 : i64} {
  func.func @_vq_kernel(%arg0: i32, %arg1: memref<512x128xf32, #tpu.memory_space<vmem>>, %arg2: memref<128x128xf32, #tpu.memory_space<vmem>>, %arg3: memref<128x128xf32, #tpu.memory_space<vmem>>, %arg4: memref<1x128xf32, #tpu.memory_space<vmem>>, %arg5: memref<512x128xf32, #tpu.memory_space<vmem>>, %arg6: memref<8x128xf32, #tpu.memory_space<vmem>>) attributes {dimension_semantics = [#tpu.dimension_semantics<parallel>], iteration_bounds = array<i64: 1>, scalar_prefetch = 0 : i64, scratch_operands = 0 : i64, tpu.core_type = #tpu.core_type<tc>, window_params = [{transform_indices = @transform_0, window_bounds = array<i64: 512, 128>}, {pipeline_mode = #tpu.pipeline_mode<synchronous>, transform_indices = @transform_1, window_bounds = array<i64: 128, 128>}, {pipeline_mode = #tpu.pipeline_mode<synchronous>, transform_indices = @transform_2, window_bounds = array<i64: 128, 128>}, {pipeline_mode = #tpu.pipeline_mode<synchronous>, transform_indices = @transform_3, window_bounds = array<i64: 1, 128>}, {transform_indices = @transform_4, window_bounds = array<i64: 512, 128>}, {transform_indices = @transform_5, window_bounds = array<i64: 8, 128>}]} {
    %c0 = arith.constant 0 : index
    %c0_0 = arith.constant 0 : index
    %0 = vector.load %arg1[%c0, %c0_0] : memref<512x128xf32, #tpu.memory_space<vmem>>, vector<512x128xf32>
    %c0_1 = arith.constant 0 : index
    %c0_2 = arith.constant 0 : index
    %1 = vector.load %arg2[%c0_1, %c0_2] : memref<128x128xf32, #tpu.memory_space<vmem>>, vector<128x128xf32>
    %cst = arith.constant dense<0.000000e+00> : vector<512x128xf32>
    %2 = tpu.matmul %0, %1, %cst {dimension_numbers = #tpu.dot_dimension_numbers<[1], [0], [0], [1], [0, 0, 1, 1], [], []>} : vector<512x128xf32>, vector<128x128xf32>, vector<512x128xf32> -> vector<512x128xf32>
    %c0_3 = arith.constant 0 : index
    %c0_4 = arith.constant 0 : index
    %3 = vector.load %arg4[%c0_3, %c0_4] : memref<1x128xf32, #tpu.memory_space<vmem>>, vector<1x128xf32>
    %4 = vector.broadcast %3 : vector<1x128xf32> to vector<512x128xf32>
    %5 = arith.subf %4, %2 : vector<512x128xf32>
    %cst_5 = arith.constant dense<0x7F800000> : vector<512xf32>
    %6 = vector.multi_reduction <minimumf>, %5, %cst_5 [1] : vector<512x128xf32> to vector<512xf32>
    %7 = vector.shape_cast %6 : vector<512xf32> to vector<512x1xf32>
    %8 = tpu.iota {dimensions = array<i32: 1>} : vector<512x128xi32>
    %9 = vector.broadcast %7 : vector<512x1xf32> to vector<512x128xf32>
    %10 = arith.cmpf oeq, %5, %9 : vector<512x128xf32>
    %c128_i32 = arith.constant 128 : i32
    %11 = vector.broadcast %c128_i32 : i32 to vector<512x128xi32>
    %12 = arith.select %10, %8, %11 : vector<512x128xi1>, vector<512x128xi32>
    %cst_6 = arith.constant dense<2147483647> : vector<512xi32>
    %13 = vector.multi_reduction <minsi>, %12, %cst_6 [1] : vector<512x128xi32> to vector<512xi32>
    %14 = vector.shape_cast %13 : vector<512xi32> to vector<512x1xi32>
    %15 = vector.broadcast %14 : vector<512x1xi32> to vector<512x128xi32>
    %16 = arith.cmpi eq, %8, %15 : vector<512x128xi32>
    %17 = arith.extui %16 : vector<512x128xi1> to vector<512x128xi32>
    %18 = arith.sitofp %17 : vector<512x128xi32> to vector<512x128xf32>
    %c0_7 = arith.constant 0 : index
    %c0_8 = arith.constant 0 : index
    %19 = vector.load %arg3[%c0_7, %c0_8] : memref<128x128xf32, #tpu.memory_space<vmem>>, vector<128x128xf32>
    %cst_9 = arith.constant dense<0.000000e+00> : vector<512x128xf32>
    %20 = tpu.matmul %18, %19, %cst_9 {dimension_numbers = #tpu.dot_dimension_numbers<[1], [0], [0], [1], [0, 0, 1, 1], [], []>} : vector<512x128xf32>, vector<128x128xf32>, vector<512x128xf32> -> vector<512x128xf32>
    %c0_10 = arith.constant 0 : index
    %c0_11 = arith.constant 0 : index
    %21 = vector.load %arg5[%c0_10, %c0_11] : memref<512x128xf32, #tpu.memory_space<vmem>>, vector<512x128xf32>
    tpu.vector_store %arg5[%c0_10, %c0_11], %20 {strides = array<i32>} : memref<512x128xf32, #tpu.memory_space<vmem>>, vector<512x128xf32>,
    %c512_i32 = arith.constant 512 : i32
    %22 = arith.muli %arg0, %c512_i32 : i32
    %23 = tpu.iota {dimensions = array<i32: 0>} : vector<512x1xi32>
    %24 = vector.broadcast %22 : i32 to vector<512x1xi32>
    %25 = arith.addi %24, %23 : vector<512x1xi32>
    %c512_i32_12 = arith.constant 512 : i32
    %26 = vector.broadcast %c512_i32_12 : i32 to vector<512x1xi32>
    %27 = arith.cmpi slt, %25, %26 : vector<512x1xi32>
    %28 = arith.extui %27 : vector<512x1xi1> to vector<512x1xi32>
    %29 = arith.sitofp %28 : vector<512x1xi32> to vector<512x1xf32>
    %30 = arith.subf %20, %0 : vector<512x128xf32>
    %31 = vector.broadcast %29 : vector<512x1xf32> to vector<512x128xf32>
    %32 = arith.mulf %30, %31 : vector<512x128xf32>
    %33 = arith.mulf %32, %32 : vector<512x128xf32>
    %34 = vector.shape_cast %33 : vector<512x128xf32> to vector<64x8x128xf32>
    %cst_13 = arith.constant dense<0.000000e+00> : vector<8x128xf32>
    %35 = vector.multi_reduction <add>, %34, %cst_13 [0] : vector<64x8x128xf32> to vector<8x128xf32>
    %c0_14 = arith.constant 0 : index
    %c0_15 = arith.constant 0 : index
    %36 = vector.load %arg6[%c0_14, %c0_15] : memref<8x128xf32, #tpu.memory_space<vmem>>, vector<8x128xf32>
    tpu.vector_store %arg6[%c0_14, %c0_15], %35 {strides = array<i32>} : memref<8x128xf32, #tpu.memory_space<vmem>>, vector<8x128xf32>,
    return
  }
  func.func @transform_0(%arg0: i32) -> (i32, i32) {
    %c0_i32 = arith.constant 0 : i32
    %c0_i32_0 = arith.constant 0 : i32
    return %arg0, %c0_i32 : i32, i32
  }
  func.func @transform_1(%arg0: i32) -> (i32, i32) {
    %c0_i32 = arith.constant 0 : i32
    %c0_i32_0 = arith.constant 0 : i32
    %c0_i32_1 = arith.constant 0 : i32
    return %c0_i32, %c0_i32_0 : i32, i32
  }
  func.func @transform_2(%arg0: i32) -> (i32, i32) {
    %c0_i32 = arith.constant 0 : i32
    %c0_i32_0 = arith.constant 0 : i32
    %c0_i32_1 = arith.constant 0 : i32
    return %c0_i32, %c0_i32_0 : i32, i32
  }
  func.func @transform_3(%arg0: i32) -> (i32, i32) {
    %c0_i32 = arith.constant 0 : i32
    %c0_i32_0 = arith.constant 0 : i32
    %c0_i32_1 = arith.constant 0 : i32
    return %c0_i32, %c0_i32_0 : i32, i32
  }
  func.func @transform_4(%arg0: i32) -> (i32, i32) {
    %c0_i32 = arith.constant 0 : i32
    %c0_i32_0 = arith.constant 0 : i32
    return %arg0, %c0_i32 : i32, i32
  }
  func.func @transform_5(%arg0: i32) -> (i32, i32) {
    %c0_i32 = arith.constant 0 : i32
    %c0_i32_0 = arith.constant 0 : i32
    return %arg0, %c0_i32 : i32, i32
  }
}

</mosaic_0001>

<llo_original>
// kernel: tpu_custom_call.1
$region0: #{tpu_custom_call.1}
  #allocation0 [shape = 'u32[]', space=smem, size = 0x4, offset = 0x4, fixed_abs, tag = 'smem constant byte address 0x4 - core index']
  #allocation1 [shape = 'u32[144,128]{1,0:T(1,128)}', space=vmem, size = 0x12000, scoped, tag = 'internal scratch']
  %s0 = inlined_call_operand.hbm [shape: f32[512,128], index: 0, kind: input, shape index: {}]
  %s1 = inlined_call_operand.hbm [shape: f32[128,128], index: 1, kind: input, shape index: {}]
  %s2 = inlined_call_operand.hbm [shape: f32[128,128], index: 2, kind: input, shape index: {}]
  %s3 = inlined_call_operand.vmem [shape: f32[1,128], index: 3, kind: input, shape index: {}]
  %s4 = inlined_call_operand.hbm [shape: f32[512,128], index: 4, kind: output, shape index: {0}]
  %s5 = inlined_call_operand.hbm [shape: f32[8,128], index: 5, kind: output, shape index: {1}]
  %6 = xla_tuple %s4, %s5
  %s7 = sld [smem:[#allocation0]]
  $region46: #{tpu_custom_call.1} parent=0
    _
  %s9 = ssub.s32 1, %s7
  %s10 = scalar_select 0, %s9, %s7
  $region1: #{tpu_custom_call.1} parent=0
    #allocation2 [shape = 'u8[262144]{0}', space=vmem, size = 0x40000, scoped, tag = 'input window, operand 0, single buffered']
    #allocation3 [shape = 's32[1]{0}', space=sflag, size = 0x4, scoped, tag = 'scoped memory for tpu_custom_call.1']
    #allocation4 [shape = 's32[1]{0}', space=sflag, size = 0x4, scoped, tag = 'scoped memory for tpu_custom_call.1']
    #allocation5 [shape = 'u8[65536]{0}', space=vmem, size = 0x10000, scoped, tag = 'input window, operand 1, single buffered']
    #allocation6 [shape = 's32[1]{0}', space=sflag, size = 0x4, scoped, tag = 'scoped memory for tpu_custom_call.1']
    #allocation7 [shape = 'u8[65536]{0}', space=vmem, size = 0x10000, scoped, tag = 'input window, operand 2, single buffered']
    #allocation8 [shape = 'u8[262144]{0}', space=vmem, size = 0x40000, scoped, tag = 'output window, operand 0, single buffered']
    #allocation9 [shape = 'u8[4096]{0}', space=vmem, size = 0x1000, scoped, tag = 'output window, operand 1, single buffered']
    #allocation10 [shape = 's32[1]{0}', space=sflag, size = 0x4, scoped, tag = 'scoped memory for tpu_custom_call.1']
    %11 = vsyncpa [#allocation3], 0
    %12 = vsyncpa [#allocation6], 0
    %13 = vsyncpa [#allocation4], 0
    %14 = vsyncpa [#allocation10], 0
    // Predicated region
    $region2: #{tpu_custom_call.1} parent=1 // pred_check
      _
    $region3: #{tpu_custom_call.1} parent=1 // pred_check_branch
      %16 = sbr.rel (0) target = $region5
    $region4: #{tpu_custom_call.1} parent=1 // pred_region
      %s18 = ssub.s32 8192, 8192
      %19 = vsyncadd [#allocation3], %s18
      %s20 = sshll.u32 [#allocation2], 4
      %s21 = int_to_ptr.vmem [resolvable:$true] %s20
      %26 = dma.hbm_to_vmem [thread:$0]  %s0, 8192, %s21, [#allocation3], 128, 128, 8
    $region5: #{tpu_custom_call.1} parent=1 // pred_fallthru
      _
    // Predicated region
    $region6: #{tpu_custom_call.1} parent=1 // pred_check
      _
    $region7: #{tpu_custom_call.1} parent=1 // pred_check_branch
      %28 = sbr.rel (0) target = $region9
    $region8: #{tpu_custom_call.1} parent=1 // pred_region
      %s30 = ssub.s32 2048, 2048
      %31 = vsyncadd [#allocation6], %s30
      %s32 = sshll.u32 [#allocation5], 4
      %s33 = int_to_ptr.vmem [resolvable:$true] %s32
      %38 = dma.hbm_to_vmem [thread:$0]  %s1, 2048, %s33, [#allocation6], 128, 128, 8
    $region9: #{tpu_custom_call.1} parent=1 // pred_fallthru
      _
    // Predicated region
    $region10: #{tpu_custom_call.1} parent=1 // pred_check
      _
    $region11: #{tpu_custom_call.1} parent=1 // pred_check_branch
      %40 = sbr.rel (0) target = $region13
    $region12: #{tpu_custom_call.1} parent=1 // pred_region
      %s42 = ssub.s32 2048, 2048
      %43 = vsyncadd [#allocation6], %s42
      %s44 = sshll.u32 [#allocation7], 4
      %s45 = int_to_ptr.vmem [resolvable:$true] %s44
      %50 = dma.hbm_to_vmem [thread:$0]  %s2, 2048, %s45, [#allocation6], 128, 128, 8
    $region13: #{tpu_custom_call.1} parent=1 // pred_fallthru
      _
    // Predicated region
    $region14: #{tpu_custom_call.1} parent=1 // pred_check
      _
    $region15: #{tpu_custom_call.1} parent=1 // pred_check_branch
      %52 = sbr.rel (0) target = $region17
    $region16: #{tpu_custom_call.1} parent=1 // pred_region
      _
    $region17: #{tpu_custom_call.1} parent=1 // pred_fallthru
      _
    // Predicated region
    $region18: #{tpu_custom_call.1} parent=1 // pred_check
      _
    $region19: #{tpu_custom_call.1} parent=1 // pred_check_branch
      %54 = sbr.rel (0) target = $region21
    $region20: #{tpu_custom_call.1} parent=1 // pred_region
      %55 = dma.done [#allocation3], 8192
    $region21: #{tpu_custom_call.1} parent=1 // pred_fallthru
      _
    // Predicated region
    $region22: #{tpu_custom_call.1} parent=1 // pred_check
      _
    $region23: #{tpu_custom_call.1} parent=1 // pred_check_branch
      %57 = sbr.rel (0) target = $region25
    $region24: #{tpu_custom_call.1} parent=1 // pred_region
      %58 = dma.done [#allocation6], 2048
    $region25: #{tpu_custom_call.1} parent=1 // pred_fallthru
      _
    // Predicated region
    $region26: #{tpu_custom_call.1} parent=1 // pred_check
      _
    $region27: #{tpu_custom_call.1} parent=1 // pred_check_branch
      %60 = sbr.rel (0) target = $region29
    $region28: #{tpu_custom_call.1} parent=1 // pred_region
      %61 = dma.done [#allocation6], 2048
    $region29: #{tpu_custom_call.1} parent=1 // pred_fallthru
      _
    %v62 = vld [vmem:[#allocation2] sm:$0xff]
    %v63 = vld [vmem:[#allocation2 + $0x8] sm:$0xff]
    %v64 = vld [vmem:[#allocation2 + $0x10] sm:$0xff]
    %v65 = vld [vmem:[#allocation2 + $0x18] sm:$0xff]
    %v66 = vld [vmem:[#allocation2 + $0x20] sm:$0xff]
    %v67 = vld [vmem:[#allocation2 + $0x28] sm:$0xff]
    %v68 = vld [vmem:[#allocation2 + $0x30] sm:$0xff]
    %v69 = vld [vmem:[#allocation2 + $0x38] sm:$0xff]
    %v70 = vld [vmem:[#allocation2 + $0x40] sm:$0xff]
    %v71 = vld [vmem:[#allocation2 + $0x48] sm:$0xff]
    %v72 = vld [vmem:[#allocation2 + $0x50] sm:$0xff]
    %v73 = vld [vmem:[#allocation2 + $0x58] sm:$0xff]
    %v74 = vld [vmem:[#allocation2 + $0x60] sm:$0xff]
    %v75 = vld [vmem:[#allocation2 + $0x68] sm:$0xff]
    %v76 = vld [vmem:[#allocation2 + $0x70] sm:$0xff]
    %v77 = vld [vmem:[#allocation2 + $0x78] sm:$0xff]
    %v78 = vld [vmem:[#allocation2 + $0x80] sm:$0xff]
    %v79 = vld [vmem:[#allocation2 + $0x88] sm:$0xff]
    %v80 = vld [vmem:[#allocation2 + $0x90] sm:$0xff]
    %v81 = vld [vmem:[#allocation2 + $0x98] sm:$0xff]
    %v82 = vld [vmem:[#allocation2 + $0xa0] sm:$0xff]
    %v83 = vld [vmem:[#allocation2 + $0xa8] sm:$0xff]
    %v84 = vld [vmem:[#allocation2 + $0xb0] sm:$0xff]
    %v85 = vld [vmem:[#allocation2 + $0xb8] sm:$0xff]
    %v86 = vld [vmem:[#allocation2 + $0xc0] sm:$0xff]
    %v87 = vld [vmem:[#allocation2 + $0xc8] sm:$0xff]
    %v88 = vld [vmem:[#allocation2 + $0xd0] sm:$0xff]
    %v89 = vld [vmem:[#allocation2 + $0xd8] sm:$0xff]
    %v90 = vld [vmem:[#allocation2 + $0xe0] sm:$0xff]
    %v91 = vld [vmem:[#allocation2 + $0xe8] sm:$0xff]
    %v92 = vld [vmem:[#allocation2 + $0xf0] sm:$0xff]
    %v93 = vld [vmem:[#allocation2 + $0xf8] sm:$0xff]
    %v94 = vld [vmem:[#allocation2 + $0x100] sm:$0xff]
    %v95 = vld [vmem:[#allocation2 + $0x108] sm:$0xff]
    %v96 = vld [vmem:[#allocation2 + $0x110] sm:$0xff]
    %v97 = vld [vmem:[#allocation2 + $0x118] sm:$0xff]
    %v98 = vld [vmem:[#allocation2 + $0x120] sm:$0xff]
    %v99 = vld [vmem:[#allocation2 + $0x128] sm:$0xff]
    %v100 = vld [vmem:[#allocation2 + $0x130] sm:$0xff]
    %v101 = vld [vmem:[#allocation2 + $0x138] sm:$0xff]
    %v102 = vld [vmem:[#allocation2 + $0x140] sm:$0xff]
    %v103 = vld [vmem:[#allocation2 + $0x148] sm:$0xff]
    %v104 = vld [vmem:[#allocation2 + $0x150] sm:$0xff]
    %v105 = vld [vmem:[#allocation2 + $0x158] sm:$0xff]
    %v106 = vld [vmem:[#allocation2 + $0x160] sm:$0xff]
    %v107 = vld [vmem:[#allocation2 + $0x168] sm:$0xff]
    %v108 = vld [vmem:[#allocation2 + $0x170] sm:$0xff]
    %v109 = vld [vmem:[#allocation2 + $0x178] sm:$0xff]
    %v110 = vld [vmem:[#allocation2 + $0x180] sm:$0xff]
    %v111 = vld [vmem:[#allocation2 + $0x188] sm:$0xff]
    %v112 = vld [vmem:[#allocation2 + $0x190] sm:$0xff]
    %v113 = vld [vmem:[#allocation2 + $0x198] sm:$0xff]
    %v114 = vld [vmem:[#allocation2 + $0x1a0] sm:$0xff]
    %v115 = vld [vmem:[#allocation2 + $0x1a8] sm:$0xff]
    %v116 = vld [vmem:[#allocation2 + $0x1b0] sm:$0xff]
    %v117 = vld [vmem:[#allocation2 + $0x1b8] sm:$0xff]
    %v118 = vld [vmem:[#allocation2 + $0x1c0] sm:$0xff]
    %v119 = vld [vmem:[#allocation2 + $0x1c8] sm:$0xff]
    %v120 = vld [vmem:[#allocation2 + $0x1d0] sm:$0xff]
    %v121 = vld [vmem:[#allocation2 + $0x1d8] sm:$0xff]
    %v122 = vld [vmem:[#allocation2 + $0x1e0] sm:$0xff]
    %v123 = vld [vmem:[#allocation2 + $0x1e8] sm:$0xff]
    %v124 = vld [vmem:[#allocation2 + $0x1f0] sm:$0xff]
    %v125 = vld [vmem:[#allocation2 + $0x1f8] sm:$0xff]
    %v126 = vld [vmem:[#allocation5] sm:$0xff]
    %v127 = vld [vmem:[#allocation5 + $0x8] sm:$0xff]
    %v128 = vld [vmem:[#allocation5 + $0x10] sm:$0xff]
    %v129 = vld [vmem:[#allocation5 + $0x18] sm:$0xff]
    %v130 = vld [vmem:[#allocation5 + $0x20] sm:$0xff]
    %v131 = vld [vmem:[#allocation5 + $0x28] sm:$0xff]
    %v132 = vld [vmem:[#allocation5 + $0x30] sm:$0xff]
    %v133 = vld [vmem:[#allocation5 + $0x38] sm:$0xff]
    %v134 = vld [vmem:[#allocation5 + $0x40] sm:$0xff]
    %v135 = vld [vmem:[#allocation5 + $0x48] sm:$0xff]
    %v136 = vld [vmem:[#allocation5 + $0x50] sm:$0xff]
    %v137 = vld [vmem:[#allocation5 + $0x58] sm:$0xff]
    %v138 = vld [vmem:[#allocation5 + $0x60] sm:$0xff]
    %v139 = vld [vmem:[#allocation5 + $0x68] sm:$0xff]
    %v140 = vld [vmem:[#allocation5 + $0x70] sm:$0xff]
    %v141 = vld [vmem:[#allocation5 + $0x78] sm:$0xff]
    %142 = vmatprep.subr.mxu0 0.0
    %143 = vmatpush1.msra.mxu0 %v126
    %144 = vmatprep.subr.mxu0 0.0
    %145 = vmatpush1.msra.mxu0 %v127
    %146 = vmatprep.subr.mxu0 0.0
    %147 = vmatpush1.msra.mxu0 %v128
    %148 = vmatprep.subr.mxu0 0.0
    %149 = vmatpush1.msra.mxu0 %v129
    %150 = vmatprep.subr.mxu0 0.0
    %151 = vmatpush1.msra.mxu0 %v130
    %152 = vmatprep.subr.mxu0 0.0
    %153 = vmatpush1.msra.mxu0 %v131
    %154 = vmatprep.subr.mxu0 0.0
    %155 = vmatpush1.msra.mxu0 %v132
    %156 = vmatprep.subr.mxu0 0.0
    %157 = vmatpush1.msra.mxu0 %v133
    %158 = vmatprep.subr.mxu0 0.0
    %159 = vmatpush1.msra.mxu0 %v134
    %160 = vmatprep.subr.mxu0 0.0
    %161 = vmatpush1.msra.mxu0 %v135
    %162 = vmatprep.subr.mxu0 0.0
    %163 = vmatpush1.msra.mxu0 %v136
    %164 = vmatprep.subr.mxu0 0.0
    %165 = vmatpush1.msra.mxu0 %v137
    %166 = vmatprep.subr.mxu0 0.0
    %167 = vmatpush1.msra.mxu0 %v138
    %168 = vmatprep.subr.mxu0 0.0
    %169 = vmatpush1.msra.mxu0 %v139
    %170 = vmatprep.subr.mxu0 0.0
    %171 = vmatpush1.msra.mxu0 %v140
    %172 = vmatprep.subr.mxu0 0.0
    %173 = vmatpush1.msra.mxu0 %v141
    %174 = vmatprep.subr.mxu0 0.0
    %175 = vmatpush1.msra.mxu0 0.0
    %176 = vmatprep.subr.mxu0 0.0
    %177 = vmatpush1.msra.mxu0 0.0
    %178 = vmatprep.subr.mxu0 0.0
    %179 = vmatpush1.msra.mxu0 0.0
    %180 = vmatprep.subr.mxu0 0.0
    %181 = vmatpush1.msra.mxu0 0.0
    %182 = vmatprep.subr.mxu0 0.0
    %183 = vmatpush1.msra.mxu0 0.0
    %184 = vmatprep.subr.mxu0 0.0
    %185 = vmatpush1.msra.mxu0 0.0
    %186 = vmatprep.subr.mxu0 0.0
    %187 = vmatpush1.msra.mxu0 0.0
    %188 = vmatprep.subr.mxu0 0.0
    %189 = vmatpush1.msra.mxu0 0.0
    %190 = vmatprep.subr.mxu0 0.0
    %191 = vmatpush1.msra.mxu0 0.0
    %192 = vmatprep.subr.mxu0 0.0
    %193 = vmatpush1.msra.mxu0 0.0
    %194 = vmatprep.subr.mxu0 0.0
    %195 = vmatpush1.msra.mxu0 0.0
    %196 = vmatprep.subr.mxu0 0.0
    %197 = vmatpush1.msra.mxu0 0.0
    %198 = vmatprep.subr.mxu0 0.0
    %199 = vmatpush1.msra.mxu0 0.0
    %200 = vmatprep.subr.mxu0 0.0
    %201 = vmatpush1.msra.mxu0 0.0
    %202 = vmatprep.subr.mxu0 0.0
    %203 = vmatpush1.msra.mxu0 0.0
    %204 = vmatprep.subr.mxu0 0.0
    %205 = vmatpush1.msra.mxu0 0.0
    %206 = vmatprep.mubr.f32.mxu0 0.0
    %207 = vmatmul.mubr.f32.gmra.mrb[0].mxu0 %v62
    %v208 = vpop.f32.mrb[0].mxu0
    %v209 = vadd.f32 0.0, %v208
    %v210 = vpop.f32.mrb[0].mxu0
    %211 = vmatprep.mubr.f32.mxu0 0.0
    %212 = vmatmul.mubr.f32.gmra.mrb[0].mxu0 %v63
    %v213 = vpop.f32.mrb[0].mxu0
    %v214 = vadd.f32 0.0, %v213
    %v215 = vpop.f32.mrb[0].mxu0
    %216 = vmatprep.mubr.f32.mxu0 0.0
    %217 = vmatmul.mubr.f32.gmra.mrb[0].mxu0 %v64
    %v218 = vpop.f32.mrb[0].mxu0
    %v219 = vadd.f32 0.0, %v218
    %v220 = vpop.f32.mrb[0].mxu0
    %221 = vmatprep.mubr.f32.mxu0 0.0
    %222 = vmatmul.mubr.f32.gmra.mrb[0].mxu0 %v65
    %v223 = vpop.f32.mrb[0].mxu0
    %v224 = vadd.f32 0.0, %v223
    %v225 = vpop.f32.mrb[0].mxu0
    %226 = vmatprep.mubr.f32.mxu0 0.0
    %227 = vmatmul.mubr.f32.gmra.mrb[0].mxu0 %v66
    %v228 = vpop.f32.mrb[0].mxu0
    %v229 = vadd.f32 0.0, %v228
    %v230 = vpop.f32.mrb[0].mxu0
    %231 = vmatprep.mubr.f32.mxu0 0.0
    %232 = vmatmul.mubr.f32.gmra.mrb[0].mxu0 %v67
    %v233 = vpop.f32.mrb[0].mxu0
    %v234 = vadd.f32 0.0, %v233
    %v235 = vpop.f32.mrb[0].mxu0
    %236 = vmatprep.mubr.f32.mxu0 0.0
    %237 = vmatmul.mubr.f32.gmra.mrb[0].mxu0 %v68
    %v238 = vpop.f32.mrb[0].mxu0
    %v239 = vadd.f32 0.0, %v238
    %v240 = vpop.f32.mrb[0].mxu0
    %241 = vmatprep.mubr.f32.mxu0 0.0
    %242 = vmatmul.mubr.f32.gmra.mrb[0].mxu0 %v69
    %v243 = vpop.f32.mrb[0].mxu0
    %v244 = vadd.f32 0.0, %v243
    %v245 = vpop.f32.mrb[0].mxu0
    %246 = vmatprep.mubr.f32.mxu0 0.0
    %247 = vmatmul.mubr.f32.gmra.mrb[0].mxu0 %v70
    %v248 = vpop.f32.mrb[0].mxu0
    %v249 = vadd.f32 0.0, %v248
    %v250 = vpop.f32.mrb[0].mxu0
    %251 = vmatprep.mubr.f32.mxu0 0.0
    %252 = vmatmul.mubr.f32.gmra.mrb[0].mxu0 %v71
    %v253 = vpop.f32.mrb[0].mxu0
    %v254 = vadd.f32 0.0, %v253
    %v255 = vpop.f32.mrb[0].mxu0
    %256 = vmatprep.mubr.f32.mxu0 0.0
    %257 = vmatmul.mubr.f32.gmra.mrb[0].mxu0 %v72
    %v258 = vpop.f32.mrb[0].mxu0
    %v259 = vadd.f32 0.0, %v258
    %v260 = vpop.f32.mrb[0].mxu0
    %261 = vmatprep.mubr.f32.mxu0 0.0
    %262 = vmatmul.mubr.f32.gmra.mrb[0].mxu0 %v73
    %v263 = vpop.f32.mrb[0].mxu0
    %v264 = vadd.f32 0.0, %v263
    %v265 = vpop.f32.mrb[0].mxu0
    %266 = vmatprep.mubr.f32.mxu0 0.0
    %267 = vmatmul.mubr.f32.gmra.mrb[0].mxu0 %v74
    %v268 = vpop.f32.mrb[0].mxu0
    %v269 = vadd.f32 0.0, %v268
    %v270 = vpop.f32.mrb[0].mxu0
    %271 = vmatprep.mubr.f32.mxu0 0.0
    %272 = vmatmul.mubr.f32.gmra.mrb[0].mxu0 %v75
    %v273 = vpop.f32.mrb[0].mxu0
    %v274 = vadd.f32 0.0, %v273
    %v275 = vpop.f32.mrb[0].mxu0
    %276 = vmatprep.mubr.f32.mxu0 0.0
    %277 = vmatmul.mubr.f32.gmra.mrb[0].mxu0 %v76
    %v278 = vpop.f32.mrb[0].mxu0
    %v279 = vadd.f32 0.0, %v278
    %v280 = vpop.f32.mrb[0].mxu0
    %281 = vmatprep.mubr.f32.mxu0 0.0
    %282 = vmatmul.mubr.f32.gmra.mrb[0].mxu0 %v77
    %v283 = vpop.f32.mrb[0].mxu0
    %v284 = vadd.f32 0.0, %v283
    %v285 = vpop.f32.mrb[0].mxu0
    %286 = vmatprep.mubr.f32.mxu0 0.0
    %287 = vmatmul.mubr.f32.gmra.mrb[0].mxu0 %v78
    %v288 = vpop.f32.mrb[0].mxu0
    %v289 = vadd.f32 0.0, %v288
    %v290 = vpop.f32.mrb[0].mxu0
    %291 = vmatprep.mubr.f32.mxu0 0.0
    %292 = vmatmul.mubr.f32.gmra.mrb[0].mxu0 %v79
    %v293 = vpop.f32.mrb[0].mxu0
    %v294 = vadd.f32 0.0, %v293
    %v295 = vpop.f32.mrb[0].mxu0
    %296 = vmatprep.mubr.f32.mxu0 0.0
    %297 = vmatmul.mubr.f32.gmra.mrb[0].mxu0 %v80
    %v298 = vpop.f32.mrb[0].mxu0
    %v299 = vadd.f32 0.0, %v298
    %v300 = vpop.f32.mrb[0].mxu0
    %301 = vmatprep.mubr.f32.mxu0 0.0
    %302 = vmatmul.mubr.f32.gmra.mrb[0].mxu0 %v81
    %v303 = vpop.f32.mrb[0].mxu0
    %v304 = vadd.f32 0.0, %v303
    %v305 = vpop.f32.mrb[0].mxu0
    %306 = vmatprep.mubr.f32.mxu0 0.0
    %307 = vmatmul.mubr.f32.gmra.mrb[0].mxu0 %v82
    %v308 = vpop.f32.mrb[0].mxu0
    %v309 = vadd.f32 0.0, %v308
    %v310 = vpop.f32.mrb[0].mxu0
    %311 = vmatprep.mubr.f32.mxu0 0.0
    %312 = vmatmul.mubr.f32.gmra.mrb[0].mxu0 %v83
    %v313 = vpop.f32.mrb[0].mxu0
    %v314 = vadd.f32 0.0, %v313
    %v315 = vpop.f32.mrb[0].mxu0
    %316 = vmatprep.mubr.f32.mxu0 0.0
    %317 = vmatmul.mubr.f32.gmra.mrb[0].mxu0 %v84
    %v318 = vpop.f32.mrb[0].mxu0
    %v319 = vadd.f32 0.0, %v318
    %v320 = vpop.f32.mrb[0].mxu0
    %321 = vmatprep.mubr.f32.mxu0 0.0
    %322 = vmatmul.mubr.f32.gmra.mrb[0].mxu0 %v85
    %v323 = vpop.f32.mrb[0].mxu0
    %v324 = vadd.f32 0.0, %v323
    %v325 = vpop.f32.mrb[0].mxu0
    %326 = vmatprep.mubr.f32.mxu0 0.0
    %327 = vmatmul.mubr.f32.gmra.mrb[0].mxu0 %v86
    %v328 = vpop.f32.mrb[0].mxu0
    %v329 = vadd.f32 0.0, %v328
    %v330 = vpop.f32.mrb[0].mxu0
    %331 = vmatprep.mubr.f32.mxu0 0.0
    %332 = vmatmul.mubr.f32.gmra.mrb[0].mxu0 %v87
    %v333 = vpop.f32.mrb[0].mxu0
    %v334 = vadd.f32 0.0, %v333
    %v335 = vpop.f32.mrb[0].mxu0
    %336 = vmatprep.mubr.f32.mxu0 0.0
    %337 = vmatmul.mubr.f32.gmra.mrb[0].mxu0 %v88
    %v338 = vpop.f32.mrb[0].mxu0
    %v339 = vadd.f32 0.0, %v338
    %v340 = vpop.f32.mrb[0].mxu0
    %341 = vmatprep.mubr.f32.mxu0 0.0
    %342 = vmatmul.mubr.f32.gmra.mrb[0].mxu0 %v89
    %v343 = vpop.f32.mrb[0].mxu0
    %v344 = vadd.f32 0.0, %v343
    %v345 = vpop.f32.mrb[0].mxu0
    %346 = vmatprep.mubr.f32.mxu0 0.0
    %347 = vmatmul.mubr.f32.gmra.mrb[0].mxu0 %v90
    %v348 = vpop.f32.mrb[0].mxu0
    %v349 = vadd.f32 0.0, %v348
    %v350 = vpop.f32.mrb[0].mxu0
    %351 = vmatprep.mubr.f32.mxu0 0.0
    %352 = vmatmul.mubr.f32.gmra.mrb[0].mxu0 %v91
    %v353 = vpop.f32.mrb[0].mxu0
    %v354 = vadd.f32 0.0, %v353
    %v355 = vpop.f32.mrb[0].mxu0
    %356 = vmatprep.mubr.f32.mxu0 0.0
    %357 = vmatmul.mubr.f32.gmra.mrb[0].mxu0 %v92
    %v358 = vpop.f32.mrb[0].mxu0
    %v359 = vadd.f32 0.0, %v358
    %v360 = vpop.f32.mrb[0].mxu0
    %361 = vmatprep.mubr.f32.mxu0 0.0
    %362 = vmatmul.mubr.f32.gmra.mrb[0].mxu0 %v93
    %v363 = vpop.f32.mrb[0].mxu0
    %v364 = vadd.f32 0.0, %v363
    %v365 = vpop.f32.mrb[0].mxu0
    %366 = vmatprep.mubr.f32.mxu0 0.0
    %367 = vmatmul.mubr.f32.gmra.mrb[0].mxu0 %v94
    %v368 = vpop.f32.mrb[0].mxu0
    %v369 = vadd.f32 0.0, %v368
    %v370 = vpop.f32.mrb[0].mxu0
    %371 = vmatprep.mubr.f32.mxu0 0.0
    %372 = vmatmul.mubr.f32.gmra.mrb[0].mxu0 %v95
    %v373 = vpop.f32.mrb[0].mxu0
    %v374 = vadd.f32 0.0, %v373
    %v375 = vpop.f32.mrb[0].mxu0
    %376 = vmatprep.mubr.f32.mxu0 0.0
    %377 = vmatmul.mubr.f32.gmra.mrb[0].mxu0 %v96
    %v378 = vpop.f32.mrb[0].mxu0
    %v379 = vadd.f32 0.0, %v378
    %v380 = vpop.f32.mrb[0].mxu0
    %381 = vmatprep.mubr.f32.mxu0 0.0
    %382 = vmatmul.mubr.f32.gmra.mrb[0].mxu0 %v97
    %v383 = vpop.f32.mrb[0].mxu0
    %v384 = vadd.f32 0.0, %v383
    %v385 = vpop.f32.mrb[0].mxu0
    %386 = vmatprep.mubr.f32.mxu0 0.0
    %387 = vmatmul.mubr.f32.gmra.mrb[0].mxu0 %v98
    %v388 = vpop.f32.mrb[0].mxu0
    %v389 = vadd.f32 0.0, %v388
    %v390 = vpop.f32.mrb[0].mxu0
    %391 = vmatprep.mubr.f32.mxu0 0.0
    %392 = vmatmul.mubr.f32.gmra.mrb[0].mxu0 %v99
    %v393 = vpop.f32.mrb[0].mxu0
    %v394 = vadd.f32 0.0, %v393
    %v395 = vpop.f32.mrb[0].mxu0
    %396 = vmatprep.mubr.f32.mxu0 0.0
    %397 = vmatmul.mubr.f32.gmra.mrb[0].mxu0 %v100
    %v398 = vpop.f32.mrb[0].mxu0
    %v399 = vadd.f32 0.0, %v398
    %v400 = vpop.f32.mrb[0].mxu0
    %401 = vmatprep.mubr.f32.mxu0 0.0
    %402 = vmatmul.mubr.f32.gmra.mrb[0].mxu0 %v101
    %v403 = vpop.f32.mrb[0].mxu0
    %v404 = vadd.f32 0.0, %v403
    %v405 = vpop.f32.mrb[0].mxu0
    %406 = vmatprep.mubr.f32.mxu0 0.0
    %407 = vmatmul.mubr.f32.gmra.mrb[0].mxu0 %v102
    %v408 = vpop.f32.mrb[0].mxu0
    %v409 = vadd.f32 0.0, %v408
    %v410 = vpop.f32.mrb[0].mxu0
    %411 = vmatprep.mubr.f32.mxu0 0.0
    %412 = vmatmul.mubr.f32.gmra.mrb[0].mxu0 %v103
    %v413 = vpop.f32.mrb[0].mxu0
    %v414 = vadd.f32 0.0, %v413
    %v415 = vpop.f32.mrb[0].mxu0
    %416 = vmatprep.mubr.f32.mxu0 0.0
    %417 = vmatmul.mubr.f32.gmra.mrb[0].mxu0 %v104
    %v418 = vpop.f32.mrb[0].mxu0
    %v419 = vadd.f32 0.0, %v418
    %v420 = vpop.f32.mrb[0].mxu0
    %421 = vmatprep.mubr.f32.mxu0 0.0
    %422 = vmatmul.mubr.f32.gmra.mrb[0].mxu0 %v105
    %v423 = vpop.f32.mrb[0].mxu0
    %v424 = vadd.f32 0.0, %v423
    %v425 = vpop.f32.mrb[0].mxu0
    %426 = vmatprep.mubr.f32.mxu0 0.0
    %427 = vmatmul.mubr.f32.gmra.mrb[0].mxu0 %v106
    %v428 = vpop.f32.mrb[0].mxu0
    %v429 = vadd.f32 0.0, %v428
    %v430 = vpop.f32.mrb[0].mxu0
    %431 = vmatprep.mubr.f32.mxu0 0.0
    %432 = vmatmul.mubr.f32.gmra.mrb[0].mxu0 %v107
    %v433 = vpop.f32.mrb[0].mxu0
    %v434 = vadd.f32 0.0, %v433
    %v435 = vpop.f32.mrb[0].mxu0
    %436 = vmatprep.mubr.f32.mxu0 0.0
    %437 = vmatmul.mubr.f32.gmra.mrb[0].mxu0 %v108
    %v438 = vpop.f32.mrb[0].mxu0
    %v439 = vadd.f32 0.0, %v438
    %v440 = vpop.f32.mrb[0].mxu0
    %441 = vmatprep.mubr.f32.mxu0 0.0
    %442 = vmatmul.mubr.f32.gmra.mrb[0].mxu0 %v109
    %v443 = vpop.f32.mrb[0].mxu0
    %v444 = vadd.f32 0.0, %v443
    %v445 = vpop.f32.mrb[0].mxu0
    %446 = vmatprep.mubr.f32.mxu0 0.0
    %447 = vmatmul.mubr.f32.gmra.mrb[0].mxu0 %v110
    %v448 = vpop.f32.mrb[0].mxu0
    %v449 = vadd.f32 0.0, %v448
    %v450 = vpop.f32.mrb[0].mxu0
    %451 = vmatprep.mubr.f32.mxu0 0.0
    %452 = vmatmul.mubr.f32.gmra.mrb[0].mxu0 %v111
    %v453 = vpop.f32.mrb[0].mxu0
    %v454 = vadd.f32 0.0, %v453
    %v455 = vpop.f32.mrb[0].mxu0
    %456 = vmatprep.mubr.f32.mxu0 0.0
    %457 = vmatmul.mubr.f32.gmra.mrb[0].mxu0 %v112
    %v458 = vpop.f32.mrb[0].mxu0
    %v459 = vadd.f32 0.0, %v458
    %v460 = vpop.f32.mrb[0].mxu0
    %461 = vmatprep.mubr.f32.mxu0 0.0
    %462 = vmatmul.mubr.f32.gmra.mrb[0].mxu0 %v113
    %v463 = vpop.f32.mrb[0].mxu0
    %v464 = vadd.f32 0.0, %v463
    %v465 = vpop.f32.mrb[0].mxu0
    %466 = vmatprep.mubr.f32.mxu0 0.0
    %467 = vmatmul.mubr.f32.gmra.mrb[0].mxu0 %v114
    %v468 = vpop.f32.mrb[0].mxu0
    %v469 = vadd.f32 0.0, %v468
    %v470 = vpop.f32.mrb[0].mxu0
    %471 = vmatprep.mubr.f32.mxu0 0.0
    %472 = vmatmul.mubr.f32.gmra.mrb[0].mxu0 %v115
    %v473 = vpop.f32.mrb[0].mxu0
    %v474 = vadd.f32 0.0, %v473
    %v475 = vpop.f32.mrb[0].mxu0
    %476 = vmatprep.mubr.f32.mxu0 0.0
    %477 = vmatmul.mubr.f32.gmra.mrb[0].mxu0 %v116
    %v478 = vpop.f32.mrb[0].mxu0
    %v479 = vadd.f32 0.0, %v478
    %v480 = vpop.f32.mrb[0].mxu0
    %481 = vmatprep.mubr.f32.mxu0 0.0
    %482 = vmatmul.mubr.f32.gmra.mrb[0].mxu0 %v117
    %v483 = vpop.f32.mrb[0].mxu0
    %v484 = vadd.f32 0.0, %v483
    %v485 = vpop.f32.mrb[0].mxu0
    %486 = vmatprep.mubr.f32.mxu0 0.0
    %487 = vmatmul.mubr.f32.gmra.mrb[0].mxu0 %v118
    %v488 = vpop.f32.mrb[0].mxu0
    %v489 = vadd.f32 0.0, %v488
    %v490 = vpop.f32.mrb[0].mxu0
    %491 = vmatprep.mubr.f32.mxu0 0.0
    %492 = vmatmul.mubr.f32.gmra.mrb[0].mxu0 %v119
    %v493 = vpop.f32.mrb[0].mxu0
    %v494 = vadd.f32 0.0, %v493
    %v495 = vpop.f32.mrb[0].mxu0
    %496 = vmatprep.mubr.f32.mxu0 0.0
    %497 = vmatmul.mubr.f32.gmra.mrb[0].mxu0 %v120
    %v498 = vpop.f32.mrb[0].mxu0
    %v499 = vadd.f32 0.0, %v498
    %v500 = vpop.f32.mrb[0].mxu0
    %501 = vmatprep.mubr.f32.mxu0 0.0
    %502 = vmatmul.mubr.f32.gmra.mrb[0].mxu0 %v121
    %v503 = vpop.f32.mrb[0].mxu0
    %v504 = vadd.f32 0.0, %v503
    %v505 = vpop.f32.mrb[0].mxu0
    %506 = vmatprep.mubr.f32.mxu0 0.0
    %507 = vmatmul.mubr.f32.gmra.mrb[0].mxu0 %v122
    %v508 = vpop.f32.mrb[0].mxu0
    %v509 = vadd.f32 0.0, %v508
    %v510 = vpop.f32.mrb[0].mxu0
    %511 = vmatprep.mubr.f32.mxu0 0.0
    %512 = vmatmul.mubr.f32.gmra.mrb[0].mxu0 %v123
    %v513 = vpop.f32.mrb[0].mxu0
    %v514 = vadd.f32 0.0, %v513
    %v515 = vpop.f32.mrb[0].mxu0
    %516 = vmatprep.mubr.f32.mxu0 0.0
    %517 = vmatmul.mubr.f32.gmra.mrb[0].mxu0 %v124
    %v518 = vpop.f32.mrb[0].mxu0
    %v519 = vadd.f32 0.0, %v518
    %v520 = vpop.f32.mrb[0].mxu0
    %521 = vmatprep.mubr.f32.mxu0 0.0
    %522 = vmatmul.mubr.f32.gmra.mrb[0].mxu0 %v125
    %v523 = vpop.f32.mrb[0].mxu0
    %v524 = vadd.f32 0.0, %v523
    %v525 = vpop.f32.mrb[0].mxu0
    %526 = vdwg.mxu0
    %v527 = vld [vmem:[%s3] sm:$0x1]
    %v529 = vlaneseq
    %v530 = vshrl.u32 %v529, 7
    %v531 = vsub.s32 0, %v530
    %v532 = vrot.slane %v527, %v531
    %v534 = vsub.f32 %v532, %v209
    %v535 = vsub.f32 %v532, %v214
    %v536 = vsub.f32 %v532, %v219
    %v537 = vsub.f32 %v532, %v224
    %v538 = vsub.f32 %v532, %v229
    %v539 = vsub.f32 %v532, %v234
    %v540 = vsub.f32 %v532, %v239
    %v541 = vsub.f32 %v532, %v244
    %v542 = vsub.f32 %v532, %v249
    %v543 = vsub.f32 %v532, %v254
    %v544 = vsub.f32 %v532, %v259
    %v545 = vsub.f32 %v532, %v264
    %v546 = vsub.f32 %v532, %v269
    %v547 = vsub.f32 %v532, %v274
    %v548 = vsub.f32 %v532, %v279
    %v549 = vsub.f32 %v532, %v284
    %v550 = vsub.f32 %v532, %v289
    %v551 = vsub.f32 %v532, %v294
    %v552 = vsub.f32 %v532, %v299
    %v553 = vsub.f32 %v532, %v304
    %v554 = vsub.f32 %v532, %v309
    %v555 = vsub.f32 %v532, %v314
    %v556 = vsub.f32 %v532, %v319
    %v557 = vsub.f32 %v532, %v324
    %v558 = vsub.f32 %v532, %v329
    %v559 = vsub.f32 %v532, %v334
    %v560 = vsub.f32 %v532, %v339
    %v561 = vsub.f32 %v532, %v344
    %v562 = vsub.f32 %v532, %v349
    %v563 = vsub.f32 %v532, %v354
    %v564 = vsub.f32 %v532, %v359
    %v565 = vsub.f32 %v532, %v364
    %v566 = vsub.f32 %v532, %v369
    %v567 = vsub.f32 %v532, %v374
    %v568 = vsub.f32 %v532, %v379
    %v569 = vsub.f32 %v532, %v384
    %v570 = vsub.f32 %v532, %v389
    %v571 = vsub.f32 %v532, %v394
    %v572 = vsub.f32 %v532, %v399
    %v573 = vsub.f32 %v532, %v404
    %v574 = vsub.f32 %v532, %v409
    %v575 = vsub.f32 %v532, %v414
    %v576 = vsub.f32 %v532, %v419
    %v577 = vsub.f32 %v532, %v424
    %v578 = vsub.f32 %v532, %v429
    %v579 = vsub.f32 %v532, %v434
    %v580 = vsub.f32 %v532, %v439
    %v581 = vsub.f32 %v532, %v444
    %v582 = vsub.f32 %v532, %v449
    %v583 = vsub.f32 %v532, %v454
    %v584 = vsub.f32 %v532, %v459
    %v585 = vsub.f32 %v532, %v464
    %v586 = vsub.f32 %v532, %v469
    %v587 = vsub.f32 %v532, %v474
    %v588 = vsub.f32 %v532, %v479
    %v589 = vsub.f32 %v532, %v484
    %v590 = vsub.f32 %v532, %v489
    %v591 = vsub.f32 %v532, %v494
    %v592 = vsub.f32 %v532, %v499
    %v593 = vsub.f32 %v532, %v504
    %v594 = vsub.f32 %v532, %v509
    %v595 = vsub.f32 %v532, %v514
    %v596 = vsub.f32 %v532, %v519
    %v597 = vsub.f32 %v532, %v524
    %598 = vmin.xlane.f32.xlu0 %v534
    %v599 = vpop.xlane.xlu0 %598
    %600 = vmin.xlane.f32.xlu0 %v535
    %v601 = vpop.xlane.xlu0 %600
    %602 = vmin.xlane.f32.xlu0 %v536
    %v603 = vpop.xlane.xlu0 %602
    %604 = vmin.xlane.f32.xlu0 %v537
    %v605 = vpop.xlane.xlu0 %604
    %606 = vmin.xlane.f32.xlu0 %v538
    %v607 = vpop.xlane.xlu0 %606
    %608 = vmin.xlane.f32.xlu0 %v539
    %v609 = vpop.xlane.xlu0 %608
    %610 = vmin.xlane.f32.xlu0 %v540
    %v611 = vpop.xlane.xlu0 %610
    %612 = vmin.xlane.f32.xlu0 %v541
    %v613 = vpop.xlane.xlu0 %612
    %614 = vmin.xlane.f32.xlu0 %v542
    %v615 = vpop.xlane.xlu0 %614
    %616 = vmin.xlane.f32.xlu0 %v543
    %v617 = vpop.xlane.xlu0 %616
    %618 = vmin.xlane.f32.xlu0 %v544
    %v619 = vpop.xlane.xlu0 %618
    %620 = vmin.xlane.f32.xlu0 %v545
    %v621 = vpop.xlane.xlu0 %620
    %622 = vmin.xlane.f32.xlu0 %v546
    %v623 = vpop.xlane.xlu0 %622
    %624 = vmin.xlane.f32.xlu0 %v547
    %v625 = vpop.xlane.xlu0 %624
    %626 = vmin.xlane.f32.xlu0 %v548
    %v627 = vpop.xlane.xlu0 %626
    %628 = vmin.xlane.f32.xlu0 %v549
    %v629 = vpop.xlane.xlu0 %628
    %630 = vmin.xlane.f32.xlu0 %v550
    %v631 = vpop.xlane.xlu0 %630
    %632 = vmin.xlane.f32.xlu0 %v551
    %v633 = vpop.xlane.xlu0 %632
    %634 = vmin.xlane.f32.xlu0 %v552
    %v635 = vpop.xlane.xlu0 %634
    %636 = vmin.xlane.f32.xlu0 %v553
    %v637 = vpop.xlane.xlu0 %636
    %638 = vmin.xlane.f32.xlu0 %v554
    %v639 = vpop.xlane.xlu0 %638
    %640 = vmin.xlane.f32.xlu0 %v555
    %v641 = vpop.xlane.xlu0 %640
    %642 = vmin.xlane.f32.xlu0 %v556
    %v643 = vpop.xlane.xlu0 %642
    %644 = vmin.xlane.f32.xlu0 %v557
    %v645 = vpop.xlane.xlu0 %644
    %646 = vmin.xlane.f32.xlu0 %v558
    %v647 = vpop.xlane.xlu0 %646
    %648 = vmin.xlane.f32.xlu0 %v559
    %v649 = vpop.xlane.xlu0 %648
    %650 = vmin.xlane.f32.xlu0 %v560
    %v651 = vpop.xlane.xlu0 %650
    %652 = vmin.xlane.f32.xlu0 %v561
    %v653 = vpop.xlane.xlu0 %652
    %654 = vmin.xlane.f32.xlu0 %v562
    %v655 = vpop.xlane.xlu0 %654
    %656 = vmin.xlane.f32.xlu0 %v563
    %v657 = vpop.xlane.xlu0 %656
    %658 = vmin.xlane.f32.xlu0 %v564
    %v659 = vpop.xlane.xlu0 %658
    %660 = vmin.xlane.f32.xlu0 %v565
    %v661 = vpop.xlane.xlu0 %660
    %662 = vmin.xlane.f32.xlu0 %v566
    %v663 = vpop.xlane.xlu0 %662
    %664 = vmin.xlane.f32.xlu0 %v567
    %v665 = vpop.xlane.xlu0 %664
    %666 = vmin.xlane.f32.xlu0 %v568
    %v667 = vpop.xlane.xlu0 %666
    %668 = vmin.xlane.f32.xlu0 %v569
    %v669 = vpop.xlane.xlu0 %668
    %670 = vmin.xlane.f32.xlu0 %v570
    %v671 = vpop.xlane.xlu0 %670
    %672 = vmin.xlane.f32.xlu0 %v571
    %v673 = vpop.xlane.xlu0 %672
    %674 = vmin.xlane.f32.xlu0 %v572
    %v675 = vpop.xlane.xlu0 %674
    %676 = vmin.xlane.f32.xlu0 %v573
    %v677 = vpop.xlane.xlu0 %676
    %678 = vmin.xlane.f32.xlu0 %v574
    %v679 = vpop.xlane.xlu0 %678
    %680 = vmin.xlane.f32.xlu0 %v575
    %v681 = vpop.xlane.xlu0 %680
    %682 = vmin.xlane.f32.xlu0 %v576
    %v683 = vpop.xlane.xlu0 %682
    %684 = vmin.xlane.f32.xlu0 %v577
    %v685 = vpop.xlane.xlu0 %684
    %686 = vmin.xlane.f32.xlu0 %v578
    %v687 = vpop.xlane.xlu0 %686
    %688 = vmin.xlane.f32.xlu0 %v579
    %v689 = vpop.xlane.xlu0 %688
    %690 = vmin.xlane.f32.xlu0 %v580
    %v691 = vpop.xlane.xlu0 %690
    %692 = vmin.xlane.f32.xlu0 %v581
    %v693 = vpop.xlane.xlu0 %692
    %694 = vmin.xlane.f32.xlu0 %v582
    %v695 = vpop.xlane.xlu0 %694
    %696 = vmin.xlane.f32.xlu0 %v583
    %v697 = vpop.xlane.xlu0 %696
    %698 = vmin.xlane.f32.xlu0 %v584
    %v699 = vpop.xlane.xlu0 %698
    %700 = vmin.xlane.f32.xlu0 %v585
    %v701 = vpop.xlane.xlu0 %700
    %702 = vmin.xlane.f32.xlu0 %v586
    %v703 = vpop.xlane.xlu0 %702
    %704 = vmin.xlane.f32.xlu0 %v587
    %v705 = vpop.xlane.xlu0 %704
    %706 = vmin.xlane.f32.xlu0 %v588
    %v707 = vpop.xlane.xlu0 %706
    %708 = vmin.xlane.f32.xlu0 %v589
    %v709 = vpop.xlane.xlu0 %708
    %710 = vmin.xlane.f32.xlu0 %v590
    %v711 = vpop.xlane.xlu0 %710
    %712 = vmin.xlane.f32.xlu0 %v591
    %v713 = vpop.xlane.xlu0 %712
    %714 = vmin.xlane.f32.xlu0 %v592
    %v715 = vpop.xlane.xlu0 %714
    %716 = vmin.xlane.f32.xlu0 %v593
    %v717 = vpop.xlane.xlu0 %716
    %718 = vmin.xlane.f32.xlu0 %v594
    %v719 = vpop.xlane.xlu0 %718
    %720 = vmin.xlane.f32.xlu0 %v595
    %v721 = vpop.xlane.xlu0 %720
    %722 = vmin.xlane.f32.xlu0 %v596
    %v723 = vpop.xlane.xlu0 %722
    %724 = vmin.xlane.f32.xlu0 %v597
    %v725 = vpop.xlane.xlu0 %724
    %v726 = vlaneseq
    %v727 = vand.u32 %v726, 127
    %vm728 = vcmp.eq.f32.partialorder %v534, %v599
    %vm729 = vcmp.eq.f32.partialorder %v535, %v601
    %vm730 = vcmp.eq.f32.partialorder %v536, %v603
    %vm731 = vcmp.eq.f32.partialorder %v537, %v605
    %vm732 = vcmp.eq.f32.partialorder %v538, %v607
    %vm733 = vcmp.eq.f32.partialorder %v539, %v609
    %vm734 = vcmp.eq.f32.partialorder %v540, %v611
    %vm735 = vcmp.eq.f32.partialorder %v541, %v613
    %vm736 = vcmp.eq.f32.partialorder %v542, %v615
    %vm737 = vcmp.eq.f32.partialorder %v543, %v617
    %vm738 = vcmp.eq.f32.partialorder %v544, %v619
    %vm739 = vcmp.eq.f32.partialorder %v545, %v621
    %vm740 = vcmp.eq.f32.partialorder %v546, %v623
    %vm741 = vcmp.eq.f32.partialorder %v547, %v625
    %vm742 = vcmp.eq.f32.partialorder %v548, %v627
    %vm743 = vcmp.eq.f32.partialorder %v549, %v629
    %vm744 = vcmp.eq.f32.partialorder %v550, %v631
    %vm745 = vcmp.eq.f32.partialorder %v551, %v633
    %vm746 = vcmp.eq.f32.partialorder %v552, %v635
    %vm747 = vcmp.eq.f32.partialorder %v553, %v637
    %vm748 = vcmp.eq.f32.partialorder %v554, %v639
    %vm749 = vcmp.eq.f32.partialorder %v555, %v641
    %vm750 = vcmp.eq.f32.partialorder %v556, %v643
    %vm751 = vcmp.eq.f32.partialorder %v557, %v645
    %vm752 = vcmp.eq.f32.partialorder %v558, %v647
    %vm753 = vcmp.eq.f32.partialorder %v559, %v649
    %vm754 = vcmp.eq.f32.partialorder %v560, %v651
    %vm755 = vcmp.eq.f32.partialorder %v561, %v653
    %vm756 = vcmp.eq.f32.partialorder %v562, %v655
    %vm757 = vcmp.eq.f32.partialorder %v563, %v657
    %vm758 = vcmp.eq.f32.partialorder %v564, %v659
    %vm759 = vcmp.eq.f32.partialorder %v565, %v661
    %vm760 = vcmp.eq.f32.partialorder %v566, %v663
    %vm761 = vcmp.eq.f32.partialorder %v567, %v665
    %vm762 = vcmp.eq.f32.partialorder %v568, %v667
    %vm763 = vcmp.eq.f32.partialorder %v569, %v669
    %vm764 = vcmp.eq.f32.partialorder %v570, %v671
    %vm765 = vcmp.eq.f32.partialorder %v571, %v673
    %vm766 = vcmp.eq.f32.partialorder %v572, %v675
    %vm767 = vcmp.eq.f32.partialorder %v573, %v677
    %vm768 = vcmp.eq.f32.partialorder %v574, %v679
    %vm769 = vcmp.eq.f32.partialorder %v575, %v681
    %vm770 = vcmp.eq.f32.partialorder %v576, %v683
    %vm771 = vcmp.eq.f32.partialorder %v577, %v685
    %vm772 = vcmp.eq.f32.partialorder %v578, %v687
    %vm773 = vcmp.eq.f32.partialorder %v579, %v689
    %vm774 = vcmp.eq.f32.partialorder %v580, %v691
    %vm775 = vcmp.eq.f32.partialorder %v581, %v693
    %vm776 = vcmp.eq.f32.partialorder %v582, %v695
    %vm777 = vcmp.eq.f32.partialorder %v583, %v697
    %vm778 = vcmp.eq.f32.partialorder %v584, %v699
    %vm779 = vcmp.eq.f32.partialorder %v585, %v701
    %vm780 = vcmp.eq.f32.partialorder %v586, %v703
    %vm781 = vcmp.eq.f32.partialorder %v587, %v705
    %vm782 = vcmp.eq.f32.partialorder %v588, %v707
    %vm783 = vcmp.eq.f32.partialorder %v589, %v709
    %vm784 = vcmp.eq.f32.partialorder %v590, %v711
    %vm785 = vcmp.eq.f32.partialorder %v591, %v713
    %vm786 = vcmp.eq.f32.partialorder %v592, %v715
    %vm787 = vcmp.eq.f32.partialorder %v593, %v717
    %vm788 = vcmp.eq.f32.partialorder %v594, %v719
    %vm789 = vcmp.eq.f32.partialorder %v595, %v721
    %vm790 = vcmp.eq.f32.partialorder %v596, %v723
    %vm791 = vcmp.eq.f32.partialorder %v597, %v725
    %v792 = vsel %vm728, %v727, 128
    %v793 = vsel %vm729, %v727, 128
    %v794 = vsel %vm730, %v727, 128
    %v795 = vsel %vm731, %v727, 128
    %v796 = vsel %vm732, %v727, 128
    %v797 = vsel %vm733, %v727, 128
    %v798 = vsel %vm734, %v727, 128
    %v799 = vsel %vm735, %v727, 128
    %v800 = vsel %vm736, %v727, 128
    %v801 = vsel %vm737, %v727, 128
    %v802 = vsel %vm738, %v727, 128
    %v803 = vsel %vm739, %v727, 128
    %v804 = vsel %vm740, %v727, 128
    %v805 = vsel %vm741, %v727, 128
    %v806 = vsel %vm742, %v727, 128
    %v807 = vsel %vm743, %v727, 128
    %v808 = vsel %vm744, %v727, 128
    %v809 = vsel %vm745, %v727, 128
    %v810 = vsel %vm746, %v727, 128
    %v811 = vsel %vm747, %v727, 128
    %v812 = vsel %vm748, %v727, 128
    %v813 = vsel %vm749, %v727, 128
    %v814 = vsel %vm750, %v727, 128
    %v815 = vsel %vm751, %v727, 128
    %v816 = vsel %vm752, %v727, 128
    %v817 = vsel %vm753, %v727, 128
    %v818 = vsel %vm754, %v727, 128
    %v819 = vsel %vm755, %v727, 128
    %v820 = vsel %vm756, %v727, 128
    %v821 = vsel %vm757, %v727, 128
    %v822 = vsel %vm758, %v727, 128
    %v823 = vsel %vm759, %v727, 128
    %v824 = vsel %vm760, %v727, 128
    %v825 = vsel %vm761, %v727, 128
    %v826 = vsel %vm762, %v727, 128
    %v827 = vsel %vm763, %v727, 128
    %v828 = vsel %vm764, %v727, 128
    %v829 = vsel %vm765, %v727, 128
    %v830 = vsel %vm766, %v727, 128
    %v831 = vsel %vm767, %v727, 128
    %v832 = vsel %vm768, %v727, 128
    %v833 = vsel %vm769, %v727, 128
    %v834 = vsel %vm770, %v727, 128
    %v835 = vsel %vm771, %v727, 128
    %v836 = vsel %vm772, %v727, 128
    %v837 = vsel %vm773, %v727, 128
    %v838 = vsel %vm774, %v727, 128
    %v839 = vsel %vm775, %v727, 128
    %v840 = vsel %vm776, %v727, 128
    %v841 = vsel %vm777, %v727, 128
    %v842 = vsel %vm778, %v727, 128
    %v843 = vsel %vm779, %v727, 128
    %v844 = vsel %vm780, %v727, 128
    %v845 = vsel %vm781, %v727, 128
    %v846 = vsel %vm782, %v727, 128
    %v847 = vsel %vm783, %v727, 128
    %v848 = vsel %vm784, %v727, 128
    %v849 = vsel %vm785, %v727, 128
    %v850 = vsel %vm786, %v727, 128
    %v851 = vsel %vm787, %v727, 128
    %v852 = vsel %vm788, %v727, 128
    %v853 = vsel %vm789, %v727, 128
    %v854 = vsel %vm790, %v727, 128
    %v855 = vsel %vm791, %v727, 128
    %v856 = vand.u32 %v792, 65535
    %v857 = vshra.s32 %v792, 16
    %v858 = vcvt.s32.f32 %v856
    %v859 = vcvt.s32.f32 %v857
    %860 = vmin.xlane.f32.xlu0 %v859
    %v861 = vpop.xlane.xlu0 %860
    %vm862 = vcmp.eq.f32.partialorder %v859, %v861
    %v863 = vsel %vm862, %v858, inf
    %864 = vmin.xlane.f32.xlu0 %v863
    %v865 = vpop.xlane.xlu0 %864
    %v866 = vcvt.f32.s32 %v865
    %v867 = vcvt.f32.s32 %v861
    %v868 = vshll.u32 %v867, 16
    %v869 = vadd.s32 %v868, %v866
    %v870 = vand.u32 %v793, 65535
    %v871 = vshra.s32 %v793, 16
    %v872 = vcvt.s32.f32 %v870
    %v873 = vcvt.s32.f32 %v871
    %874 = vmin.xlane.f32.xlu0 %v873
    %v875 = vpop.xlane.xlu0 %874
    %vm876 = vcmp.eq.f32.partialorder %v873, %v875
    %v877 = vsel %vm876, %v872, inf
    %878 = vmin.xlane.f32.xlu0 %v877
    %v879 = vpop.xlane.xlu0 %878
    %v880 = vcvt.f32.s32 %v879
    %v881 = vcvt.f32.s32 %v875
    %v882 = vshll.u32 %v881, 16
    %v883 = vadd.s32 %v882, %v880
    %v884 = vand.u32 %v794, 65535
    %v885 = vshra.s32 %v794, 16
    %v886 = vcvt.s32.f32 %v884
    %v887 = vcvt.s32.f32 %v885
    %888 = vmin.xlane.f32.xlu0 %v887
    %v889 = vpop.xlane.xlu0 %888
    %vm890 = vcmp.eq.f32.partialorder %v887, %v889
    %v891 = vsel %vm890, %v886, inf
    %892 = vmin.xlane.f32.xlu0 %v891
    %v893 = vpop.xlane.xlu0 %892
    %v894 = vcvt.f32.s32 %v893
    %v895 = vcvt.f32.s32 %v889
    %v896 = vshll.u32 %v895, 16
    %v897 = vadd.s32 %v896, %v894
    %v898 = vand.u32 %v795, 65535
    %v899 = vshra.s32 %v795, 16
    %v900 = vcvt.s32.f32 %v898
    %v901 = vcvt.s32.f32 %v899
    %902 = vmin.xlane.f32.xlu0 %v901
    %v903 = vpop.xlane.xlu0 %902
    %vm904 = vcmp.eq.f32.partialorder %v901, %v903
    %v905 = vsel %vm904, %v900, inf
    %906 = vmin.xlane.f32.xlu0 %v905
    %v907 = vpop.xlane.xlu0 %906
    %v908 = vcvt.f32.s32 %v907
    %v909 = vcvt.f32.s32 %v903
    %v910 = vshll.u32 %v909, 16
    %v911 = vadd.s32 %v910, %v908
    %v912 = vand.u32 %v796, 65535
    %v913 = vshra.s32 %v796, 16
    %v914 = vcvt.s32.f32 %v912
    %v915 = vcvt.s32.f32 %v913
    %916 = vmin.xlane.f32.xlu0 %v915
    %v917 = vpop.xlane.xlu0 %916
    %vm918 = vcmp.eq.f32.partialorder %v915, %v917
    %v919 = vsel %vm918, %v914, inf
    %920 = vmin.xlane.f32.xlu0 %v919
    %v921 = vpop.xlane.xlu0 %920
    %v922 = vcvt.f32.s32 %v921
    %v923 = vcvt.f32.s32 %v917
    %v924 = vshll.u32 %v923, 16
    %v925 = vadd.s32 %v924, %v922
    %v926 = vand.u32 %v797, 65535
    %v927 = vshra.s32 %v797, 16
    %v928 = vcvt.s32.f32 %v926
    %v929 = vcvt.s32.f32 %v927
    %930 = vmin.xlane.f32.xlu0 %v929
    %v931 = vpop.xlane.xlu0 %930
    %vm932 = vcmp.eq.f32.partialorder %v929, %v931
    %v933 = vsel %vm932, %v928, inf
    %934 = vmin.xlane.f32.xlu0 %v933
    %v935 = vpop.xlane.xlu0 %934
    %v936 = vcvt.f32.s32 %v935
    %v937 = vcvt.f32.s32 %v931
    %v938 = vshll.u32 %v937, 16
    %v939 = vadd.s32 %v938, %v936
    %v940 = vand.u32 %v798, 65535
    %v941 = vshra.s32 %v798, 16
    %v942 = vcvt.s32.f32 %v940
    %v943 = vcvt.s32.f32 %v941
    %944 = vmin.xlane.f32.xlu0 %v943
    %v945 = vpop.xlane.xlu0 %944
    %vm946 = vcmp.eq.f32.partialorder %v943, %v945
    %v947 = vsel %vm946, %v942, inf
    %948 = vmin.xlane.f32.xlu0 %v947
    %v949 = vpop.xlane.xlu0 %948
    %v950 = vcvt.f32.s32 %v949
    %v951 = vcvt.f32.s32 %v945
    %v952 = vshll.u32 %v951, 16
    %v953 = vadd.s32 %v952, %v950
    %v954 = vand.u32 %v799, 65535
    %v955 = vshra.s32 %v799, 16
    %v956 = vcvt.s32.f32 %v954
    %v957 = vcvt.s32.f32 %v955
    %958 = vmin.xlane.f32.xlu0 %v957
    %v959 = vpop.xlane.xlu0 %958
    %vm960 = vcmp.eq.f32.partialorder %v957, %v959
    %v961 = vsel %vm960, %v956, inf
    %962 = vmin.xlane.f32.xlu0 %v961
    %v963 = vpop.xlane.xlu0 %962
    %v964 = vcvt.f32.s32 %v963
    %v965 = vcvt.f32.s32 %v959
    %v966 = vshll.u32 %v965, 16
    %v967 = vadd.s32 %v966, %v964
    %v968 = vand.u32 %v800, 65535
    %v969 = vshra.s32 %v800, 16
    %v970 = vcvt.s32.f32 %v968
    %v971 = vcvt.s32.f32 %v969
    %972 = vmin.xlane.f32.xlu0 %v971
    %v973 = vpop.xlane.xlu0 %972
    %vm974 = vcmp.eq.f32.partialorder %v971, %v973
    %v975 = vsel %vm974, %v970, inf
    %976 = vmin.xlane.f32.xlu0 %v975
    %v977 = vpop.xlane.xlu0 %976
    %v978 = vcvt.f32.s32 %v977
    %v979 = vcvt.f32.s32 %v973
    %v980 = vshll.u32 %v979, 16
    %v981 = vadd.s32 %v980, %v978
    %v982 = vand.u32 %v801, 65535
    %v983 = vshra.s32 %v801, 16
    %v984 = vcvt.s32.f32 %v982
    %v985 = vcvt.s32.f32 %v983
    %986 = vmin.xlane.f32.xlu0 %v985
    %v987 = vpop.xlane.xlu0 %986
    %vm988 = vcmp.eq.f32.partialorder %v985, %v987
    %v989 = vsel %vm988, %v984, inf
    %990 = vmin.xlane.f32.xlu0 %v989
    %v991 = vpop.xlane.xlu0 %990
    %v992 = vcvt.f32.s32 %v991
    %v993 = vcvt.f32.s32 %v987
    %v994 = vshll.u32 %v993, 16
    %v995 = vadd.s32 %v994, %v992
    %v996 = vand.u32 %v802, 65535
    %v997 = vshra.s32 %v802, 16
    %v998 = vcvt.s32.f32 %v996
    %v999 = vcvt.s32.f32 %v997
    %1000 = vmin.xlane.f32.xlu0 %v999
    %v1001 = vpop.xlane.xlu0 %1000
    %vm1002 = vcmp.eq.f32.partialorder %v999, %v1001
    %v1003 = vsel %vm1002, %v998, inf
    %1004 = vmin.xlane.f32.xlu0 %v1003
    %v1005 = vpop.xlane.xlu0 %1004
    %v1006 = vcvt.f32.s32 %v1005
    %v1007 = vcvt.f32.s32 %v1001
    %v1008 = vshll.u32 %v1007, 16
    %v1009 = vadd.s32 %v1008, %v1006
    %v1010 = vand.u32 %v803, 65535
    %v1011 = vshra.s32 %v803, 16
    %v1012 = vcvt.s32.f32 %v1010
    %v1013 = vcvt.s32.f32 %v1011
    %1014 = vmin.xlane.f32.xlu0 %v1013
    %v1015 = vpop.xlane.xlu0 %1014
    %vm1016 = vcmp.eq.f32.partialorder %v1013, %v1015
    %v1017 = vsel %vm1016, %v1012, inf
    %1018 = vmin.xlane.f32.xlu0 %v1017
    %v1019 = vpop.xlane.xlu0 %1018
    %v1020 = vcvt.f32.s32 %v1019
    %v1021 = vcvt.f32.s32 %v1015
    %v1022 = vshll.u32 %v1021, 16
    %v1023 = vadd.s32 %v1022, %v1020
    %v1024 = vand.u32 %v804, 65535
    %v1025 = vshra.s32 %v804, 16
    %v1026 = vcvt.s32.f32 %v1024
    %v1027 = vcvt.s32.f32 %v1025
    %1028 = vmin.xlane.f32.xlu0 %v1027
    %v1029 = vpop.xlane.xlu0 %1028
    %vm1030 = vcmp.eq.f32.partialorder %v1027, %v1029
    %v1031 = vsel %vm1030, %v1026, inf
    %1032 = vmin.xlane.f32.xlu0 %v1031
    %v1033 = vpop.xlane.xlu0 %1032
    %v1034 = vcvt.f32.s32 %v1033
    %v1035 = vcvt.f32.s32 %v1029
    %v1036 = vshll.u32 %v1035, 16
    %v1037 = vadd.s32 %v1036, %v1034
    %v1038 = vand.u32 %v805, 65535
    %v1039 = vshra.s32 %v805, 16
    %v1040 = vcvt.s32.f32 %v1038
    %v1041 = vcvt.s32.f32 %v1039
    %1042 = vmin.xlane.f32.xlu0 %v1041
    %v1043 = vpop.xlane.xlu0 %1042
    %vm1044 = vcmp.eq.f32.partialorder %v1041, %v1043
    %v1045 = vsel %vm1044, %v1040, inf
    %1046 = vmin.xlane.f32.xlu0 %v1045
    %v1047 = vpop.xlane.xlu0 %1046
    %v1048 = vcvt.f32.s32 %v1047
    %v1049 = vcvt.f32.s32 %v1043
    %v1050 = vshll.u32 %v1049, 16
    %v1051 = vadd.s32 %v1050, %v1048
    %v1052 = vand.u32 %v806, 65535
    %v1053 = vshra.s32 %v806, 16
    %v1054 = vcvt.s32.f32 %v1052
    %v1055 = vcvt.s32.f32 %v1053
    %1056 = vmin.xlane.f32.xlu0 %v1055
    %v1057 = vpop.xlane.xlu0 %1056
    %vm1058 = vcmp.eq.f32.partialorder %v1055, %v1057
    %v1059 = vsel %vm1058, %v1054, inf
    %1060 = vmin.xlane.f32.xlu0 %v1059
    %v1061 = vpop.xlane.xlu0 %1060
    %v1062 = vcvt.f32.s32 %v1061
    %v1063 = vcvt.f32.s32 %v1057
    %v1064 = vshll.u32 %v1063, 16
    %v1065 = vadd.s32 %v1064, %v1062
    %v1066 = vand.u32 %v807, 65535
    %v1067 = vshra.s32 %v807, 16
    %v1068 = vcvt.s32.f32 %v1066
    %v1069 = vcvt.s32.f32 %v1067
    %1070 = vmin.xlane.f32.xlu0 %v1069
    %v1071 = vpop.xlane.xlu0 %1070
    %vm1072 = vcmp.eq.f32.partialorder %v1069, %v1071
    %v1073 = vsel %vm1072, %v1068, inf
    %1074 = vmin.xlane.f32.xlu0 %v1073
    %v1075 = vpop.xlane.xlu0 %1074
    %v1076 = vcvt.f32.s32 %v1075
    %v1077 = vcvt.f32.s32 %v1071
    %v1078 = vshll.u32 %v1077, 16
    %v1079 = vadd.s32 %v1078, %v1076
    %v1080 = vand.u32 %v808, 65535
    %v1081 = vshra.s32 %v808, 16
    %v1082 = vcvt.s32.f32 %v1080
    %v1083 = vcvt.s32.f32 %v1081
    %1084 = vmin.xlane.f32.xlu0 %v1083
    %v1085 = vpop.xlane.xlu0 %1084
    %vm1086 = vcmp.eq.f32.partialorder %v1083, %v1085
    %v1087 = vsel %vm1086, %v1082, inf
    %1088 = vmin.xlane.f32.xlu0 %v1087
    %v1089 = vpop.xlane.xlu0 %1088
    %v1090 = vcvt.f32.s32 %v1089
    %v1091 = vcvt.f32.s32 %v1085
    %v1092 = vshll.u32 %v1091, 16
    %v1093 = vadd.s32 %v1092, %v1090
    %v1094 = vand.u32 %v809, 65535
    %v1095 = vshra.s32 %v809, 16
    %v1096 = vcvt.s32.f32 %v1094
    %v1097 = vcvt.s32.f32 %v1095
    %1098 = vmin.xlane.f32.xlu0 %v1097
    %v1099 = vpop.xlane.xlu0 %1098
    %vm1100 = vcmp.eq.f32.partialorder %v1097, %v1099
    %v1101 = vsel %vm1100, %v1096, inf
    %1102 = vmin.xlane.f32.xlu0 %v1101
    %v1103 = vpop.xlane.xlu0 %1102
    %v1104 = vcvt.f32.s32 %v1103
    %v1105 = vcvt.f32.s32 %v1099
    %v1106 = vshll.u32 %v1105, 16
    %v1107 = vadd.s32 %v1106, %v1104
    %v1108 = vand.u32 %v810, 65535
    %v1109 = vshra.s32 %v810, 16
    %v1110 = vcvt.s32.f32 %v1108
    %v1111 = vcvt.s32.f32 %v1109
    %1112 = vmin.xlane.f32.xlu0 %v1111
    %v1113 = vpop.xlane.xlu0 %1112
    %vm1114 = vcmp.eq.f32.partialorder %v1111, %v1113
    %v1115 = vsel %vm1114, %v1110, inf
    %1116 = vmin.xlane.f32.xlu0 %v1115
    %v1117 = vpop.xlane.xlu0 %1116
    %v1118 = vcvt.f32.s32 %v1117
    %v1119 = vcvt.f32.s32 %v1113
    %v1120 = vshll.u32 %v1119, 16
    %v1121 = vadd.s32 %v1120, %v1118
    %v1122 = vand.u32 %v811, 65535
    %v1123 = vshra.s32 %v811, 16
    %v1124 = vcvt.s32.f32 %v1122
    %v1125 = vcvt.s32.f32 %v1123
    %1126 = vmin.xlane.f32.xlu0 %v1125
    %v1127 = vpop.xlane.xlu0 %1126
    %vm1128 = vcmp.eq.f32.partialorder %v1125, %v1127
    %v1129 = vsel %vm1128, %v1124, inf
    %1130 = vmin.xlane.f32.xlu0 %v1129
    %v1131 = vpop.xlane.xlu0 %1130
    %v1132 = vcvt.f32.s32 %v1131
    %v1133 = vcvt.f32.s32 %v1127
    %v1134 = vshll.u32 %v1133, 16
    %v1135 = vadd.s32 %v1134, %v1132
    %v1136 = vand.u32 %v812, 65535
    %v1137 = vshra.s32 %v812, 16
    %v1138 = vcvt.s32.f32 %v1136
    %v1139 = vcvt.s32.f32 %v1137
    %1140 = vmin.xlane.f32.xlu0 %v1139
    %v1141 = vpop.xlane.xlu0 %1140
    %vm1142 = vcmp.eq.f32.partialorder %v1139, %v1141
    %v1143 = vsel %vm1142, %v1138, inf
    %1144 = vmin.xlane.f32.xlu0 %v1143
    %v1145 = vpop.xlane.xlu0 %1144
    %v1146 = vcvt.f32.s32 %v1145
    %v1147 = vcvt.f32.s32 %v1141
    %v1148 = vshll.u32 %v1147, 16
    %v1149 = vadd.s32 %v1148, %v1146
    %v1150 = vand.u32 %v813, 65535
    %v1151 = vshra.s32 %v813, 16
    %v1152 = vcvt.s32.f32 %v1150
    %v1153 = vcvt.s32.f32 %v1151
    %1154 = vmin.xlane.f32.xlu0 %v1153
    %v1155 = vpop.xlane.xlu0 %1154
    %vm1156 = vcmp.eq.f32.partialorder %v1153, %v1155
    %v1157 = vsel %vm1156, %v1152, inf
    %1158 = vmin.xlane.f32.xlu0 %v1157
    %v1159 = vpop.xlane.xlu0 %1158
    %v1160 = vcvt.f32.s32 %v1159
    %v1161 = vcvt.f32.s32 %v1155
    %v1162 = vshll.u32 %v1161, 16
    %v1163 = vadd.s32 %v1162, %v1160
    %v1164 = vand.u32 %v814, 65535
    %v1165 = vshra.s32 %v814, 16
    %v1166 = vcvt.s32.f32 %v1164
    %v1167 = vcvt.s32.f32 %v1165
    %1168 = vmin.xlane.f32.xlu0 %v1167
    %v1169 = vpop.xlane.xlu0 %1168
    %vm1170 = vcmp.eq.f32.partialorder %v1167, %v1169
    %v1171 = vsel %vm1170, %v1166, inf
    %1172 = vmin.xlane.f32.xlu0 %v1171
    %v1173 = vpop.xlane.xlu0 %1172
    %v1174 = vcvt.f32.s32 %v1173
    %v1175 = vcvt.f32.s32 %v1169
    %v1176 = vshll.u32 %v1175, 16
    %v1177 = vadd.s32 %v1176, %v1174
    %v1178 = vand.u32 %v815, 65535
    %v1179 = vshra.s32 %v815, 16
    %v1180 = vcvt.s32.f32 %v1178
    %v1181 = vcvt.s32.f32 %v1179
    %1182 = vmin.xlane.f32.xlu0 %v1181
    %v1183 = vpop.xlane.xlu0 %1182
    %vm1184 = vcmp.eq.f32.partialorder %v1181, %v1183
    %v1185 = vsel %vm1184, %v1180, inf
    %1186 = vmin.xlane.f32.xlu0 %v1185
    %v1187 = vpop.xlane.xlu0 %1186
    %v1188 = vcvt.f32.s32 %v1187
    %v1189 = vcvt.f32.s32 %v1183
    %v1190 = vshll.u32 %v1189, 16
    %v1191 = vadd.s32 %v1190, %v1188
    %v1192 = vand.u32 %v816, 65535
    %v1193 = vshra.s32 %v816, 16
    %v1194 = vcvt.s32.f32 %v1192
    %v1195 = vcvt.s32.f32 %v1193
    %1196 = vmin.xlane.f32.xlu0 %v1195
    %v1197 = vpop.xlane.xlu0 %1196
    %vm1198 = vcmp.eq.f32.partialorder %v1195, %v1197
    %v1199 = vsel %vm1198, %v1194, inf
    %1200 = vmin.xlane.f32.xlu0 %v1199
    %v1201 = vpop.xlane.xlu0 %1200
    %v1202 = vcvt.f32.s32 %v1201
    %v1203 = vcvt.f32.s32 %v1197
    %v1204 = vshll.u32 %v1203, 16
    %v1205 = vadd.s32 %v1204, %v1202
    %v1206 = vand.u32 %v817, 65535
    %v1207 = vshra.s32 %v817, 16
    %v1208 = vcvt.s32.f32 %v1206
    %v1209 = vcvt.s32.f32 %v1207
    %1210 = vmin.xlane.f32.xlu0 %v1209
    %v1211 = vpop.xlane.xlu0 %1210
    %vm1212 = vcmp.eq.f32.partialorder %v1209, %v1211
    %v1213 = vsel %vm1212, %v1208, inf
    %1214 = vmin.xlane.f32.xlu0 %v1213
    %v1215 = vpop.xlane.xlu0 %1214
    %v1216 = vcvt.f32.s32 %v1215
    %v1217 = vcvt.f32.s32 %v1211
    %v1218 = vshll.u32 %v1217, 16
    %v1219 = vadd.s32 %v1218, %v1216
    %v1220 = vand.u32 %v818, 65535
    %v1221 = vshra.s32 %v818, 16
    %v1222 = vcvt.s32.f32 %v1220
    %v1223 = vcvt.s32.f32 %v1221
    %1224 = vmin.xlane.f32.xlu0 %v1223
    %v1225 = vpop.xlane.xlu0 %1224
    %vm1226 = vcmp.eq.f32.partialorder %v1223, %v1225
    %v1227 = vsel %vm1226, %v1222, inf
    %1228 = vmin.xlane.f32.xlu0 %v1227
    %v1229 = vpop.xlane.xlu0 %1228
    %v1230 = vcvt.f32.s32 %v1229
    %v1231 = vcvt.f32.s32 %v1225
    %v1232 = vshll.u32 %v1231, 16
    %v1233 = vadd.s32 %v1232, %v1230
    %v1234 = vand.u32 %v819, 65535
    %v1235 = vshra.s32 %v819, 16
    %v1236 = vcvt.s32.f32 %v1234
    %v1237 = vcvt.s32.f32 %v1235
    %1238 = vmin.xlane.f32.xlu0 %v1237
    %v1239 = vpop.xlane.xlu0 %1238
    %vm1240 = vcmp.eq.f32.partialorder %v1237, %v1239
    %v1241 = vsel %vm1240, %v1236, inf
    %1242 = vmin.xlane.f32.xlu0 %v1241
    %v1243 = vpop.xlane.xlu0 %1242
    %v1244 = vcvt.f32.s32 %v1243
    %v1245 = vcvt.f32.s32 %v1239
    %v1246 = vshll.u32 %v1245, 16
    %v1247 = vadd.s32 %v1246, %v1244
    %v1248 = vand.u32 %v820, 65535
    %v1249 = vshra.s32 %v820, 16
    %v1250 = vcvt.s32.f32 %v1248
    %v1251 = vcvt.s32.f32 %v1249
    %1252 = vmin.xlane.f32.xlu0 %v1251
    %v1253 = vpop.xlane.xlu0 %1252
    %vm1254 = vcmp.eq.f32.partialorder %v1251, %v1253
    %v1255 = vsel %vm1254, %v1250, inf
    %1256 = vmin.xlane.f32.xlu0 %v1255
    %v1257 = vpop.xlane.xlu0 %1256
    %v1258 = vcvt.f32.s32 %v1257
    %v1259 = vcvt.f32.s32 %v1253
    %v1260 = vshll.u32 %v1259, 16
    %v1261 = vadd.s32 %v1260, %v1258
    %v1262 = vand.u32 %v821, 65535
    %v1263 = vshra.s32 %v821, 16
    %v1264 = vcvt.s32.f32 %v1262
    %v1265 = vcvt.s32.f32 %v1263
    %1266 = vmin.xlane.f32.xlu0 %v1265
    %v1267 = vpop.xlane.xlu0 %1266
    %vm1268 = vcmp.eq.f32.partialorder %v1265, %v1267
    %v1269 = vsel %vm1268, %v1264, inf
    %1270 = vmin.xlane.f32.xlu0 %v1269
    %v1271 = vpop.xlane.xlu0 %1270
    %v1272 = vcvt.f32.s32 %v1271
    %v1273 = vcvt.f32.s32 %v1267
    %v1274 = vshll.u32 %v1273, 16
    %v1275 = vadd.s32 %v1274, %v1272
    %v1276 = vand.u32 %v822, 65535
    %v1277 = vshra.s32 %v822, 16
    %v1278 = vcvt.s32.f32 %v1276
    %v1279 = vcvt.s32.f32 %v1277
    %1280 = vmin.xlane.f32.xlu0 %v1279
    %v1281 = vpop.xlane.xlu0 %1280
    %vm1282 = vcmp.eq.f32.partialorder %v1279, %v1281
    %v1283 = vsel %vm1282, %v1278, inf
    %1284 = vmin.xlane.f32.xlu0 %v1283
    %v1285 = vpop.xlane.xlu0 %1284
    %v1286 = vcvt.f32.s32 %v1285
    %v1287 = vcvt.f32.s32 %v1281
    %v1288 = vshll.u32 %v1287, 16
    %v1289 = vadd.s32 %v1288, %v1286
    %v1290 = vand.u32 %v823, 65535
    %v1291 = vshra.s32 %v823, 16
    %v1292 = vcvt.s32.f32 %v1290
    %v1293 = vcvt.s32.f32 %v1291
    %1294 = vmin.xlane.f32.xlu0 %v1293
    %v1295 = vpop.xlane.xlu0 %1294
    %vm1296 = vcmp.eq.f32.partialorder %v1293, %v1295
    %v1297 = vsel %vm1296, %v1292, inf
    %1298 = vmin.xlane.f32.xlu0 %v1297
    %v1299 = vpop.xlane.xlu0 %1298
    %v1300 = vcvt.f32.s32 %v1299
    %v1301 = vcvt.f32.s32 %v1295
    %v1302 = vshll.u32 %v1301, 16
    %v1303 = vadd.s32 %v1302, %v1300
    %v1304 = vand.u32 %v824, 65535
    %v1305 = vshra.s32 %v824, 16
    %v1306 = vcvt.s32.f32 %v1304
    %v1307 = vcvt.s32.f32 %v1305
    %1308 = vmin.xlane.f32.xlu0 %v1307
    %v1309 = vpop.xlane.xlu0 %1308
    %vm1310 = vcmp.eq.f32.partialorder %v1307, %v1309
    %v1311 = vsel %vm1310, %v1306, inf
    %1312 = vmin.xlane.f32.xlu0 %v1311
    %v1313 = vpop.xlane.xlu0 %1312
    %v1314 = vcvt.f32.s32 %v1313
    %v1315 = vcvt.f32.s32 %v1309
    %v1316 = vshll.u32 %v1315, 16
    %v1317 = vadd.s32 %v1316, %v1314
    %v1318 = vand.u32 %v825, 65535
    %v1319 = vshra.s32 %v825, 16
    %v1320 = vcvt.s32.f32 %v1318
    %v1321 = vcvt.s32.f32 %v1319
    %1322 = vmin.xlane.f32.xlu0 %v1321
    %v1323 = vpop.xlane.xlu0 %1322
    %vm1324 = vcmp.eq.f32.partialorder %v1321, %v1323
    %v1325 = vsel %vm1324, %v1320, inf
    %1326 = vmin.xlane.f32.xlu0 %v1325
    %v1327 = vpop.xlane.xlu0 %1326
    %v1328 = vcvt.f32.s32 %v1327
    %v1329 = vcvt.f32.s32 %v1323
    %v1330 = vshll.u32 %v1329, 16
    %v1331 = vadd.s32 %v1330, %v1328
    %v1332 = vand.u32 %v826, 65535
    %v1333 = vshra.s32 %v826, 16
    %v1334 = vcvt.s32.f32 %v1332
    %v1335 = vcvt.s32.f32 %v1333
    %1336 = vmin.xlane.f32.xlu0 %v1335
    %v1337 = vpop.xlane.xlu0 %1336
    %vm1338 = vcmp.eq.f32.partialorder %v1335, %v1337
    %v1339 = vsel %vm1338, %v1334, inf
    %1340 = vmin.xlane.f32.xlu0 %v1339
    %v1341 = vpop.xlane.xlu0 %1340
    %v1342 = vcvt.f32.s32 %v1341
    %v1343 = vcvt.f32.s32 %v1337
    %v1344 = vshll.u32 %v1343, 16
    %v1345 = vadd.s32 %v1344, %v1342
    %v1346 = vand.u32 %v827, 65535
    %v1347 = vshra.s32 %v827, 16
    %v1348 = vcvt.s32.f32 %v1346
    %v1349 = vcvt.s32.f32 %v1347
    %1350 = vmin.xlane.f32.xlu0 %v1349
    %v1351 = vpop.xlane.xlu0 %1350
    %vm1352 = vcmp.eq.f32.partialorder %v1349, %v1351
    %v1353 = vsel %vm1352, %v1348, inf
    %1354 = vmin.xlane.f32.xlu0 %v1353
    %v1355 = vpop.xlane.xlu0 %1354
    %v1356 = vcvt.f32.s32 %v1355
    %v1357 = vcvt.f32.s32 %v1351
    %v1358 = vshll.u32 %v1357, 16
    %v1359 = vadd.s32 %v1358, %v1356
    %v1360 = vand.u32 %v828, 65535
    %v1361 = vshra.s32 %v828, 16
    %v1362 = vcvt.s32.f32 %v1360
    %v1363 = vcvt.s32.f32 %v1361
    %1364 = vmin.xlane.f32.xlu0 %v1363
    %v1365 = vpop.xlane.xlu0 %1364
    %vm1366 = vcmp.eq.f32.partialorder %v1363, %v1365
    %v1367 = vsel %vm1366, %v1362, inf
    %1368 = vmin.xlane.f32.xlu0 %v1367
    %v1369 = vpop.xlane.xlu0 %1368
    %v1370 = vcvt.f32.s32 %v1369
    %v1371 = vcvt.f32.s32 %v1365
    %v1372 = vshll.u32 %v1371, 16
    %v1373 = vadd.s32 %v1372, %v1370
    %v1374 = vand.u32 %v829, 65535
    %v1375 = vshra.s32 %v829, 16
    %v1376 = vcvt.s32.f32 %v1374
    %v1377 = vcvt.s32.f32 %v1375
    %1378 = vmin.xlane.f32.xlu0 %v1377
    %v1379 = vpop.xlane.xlu0 %1378
    %vm1380 = vcmp.eq.f32.partialorder %v1377, %v1379
    %v1381 = vsel %vm1380, %v1376, inf
    %1382 = vmin.xlane.f32.xlu0 %v1381
    %v1383 = vpop.xlane.xlu0 %1382
    %v1384 = vcvt.f32.s32 %v1383
    %v1385 = vcvt.f32.s32 %v1379
    %v1386 = vshll.u32 %v1385, 16
    %v1387 = vadd.s32 %v1386, %v1384
    %v1388 = vand.u32 %v830, 65535
    %v1389 = vshra.s32 %v830, 16
    %v1390 = vcvt.s32.f32 %v1388
    %v1391 = vcvt.s32.f32 %v1389
    %1392 = vmin.xlane.f32.xlu0 %v1391
    %v1393 = vpop.xlane.xlu0 %1392
    %vm1394 = vcmp.eq.f32.partialorder %v1391, %v1393
    %v1395 = vsel %vm1394, %v1390, inf
    %1396 = vmin.xlane.f32.xlu0 %v1395
    %v1397 = vpop.xlane.xlu0 %1396
    %v1398 = vcvt.f32.s32 %v1397
    %v1399 = vcvt.f32.s32 %v1393
    %v1400 = vshll.u32 %v1399, 16
    %v1401 = vadd.s32 %v1400, %v1398
    %v1402 = vand.u32 %v831, 65535
    %v1403 = vshra.s32 %v831, 16
    %v1404 = vcvt.s32.f32 %v1402
    %v1405 = vcvt.s32.f32 %v1403
    %1406 = vmin.xlane.f32.xlu0 %v1405
    %v1407 = vpop.xlane.xlu0 %1406
    %vm1408 = vcmp.eq.f32.partialorder %v1405, %v1407
    %v1409 = vsel %vm1408, %v1404, inf
    %1410 = vmin.xlane.f32.xlu0 %v1409
    %v1411 = vpop.xlane.xlu0 %1410
    %v1412 = vcvt.f32.s32 %v1411
    %v1413 = vcvt.f32.s32 %v1407
    %v1414 = vshll.u32 %v1413, 16
    %v1415 = vadd.s32 %v1414, %v1412
    %v1416 = vand.u32 %v832, 65535
    %v1417 = vshra.s32 %v832, 16
    %v1418 = vcvt.s32.f32 %v1416
    %v1419 = vcvt.s32.f32 %v1417
    %1420 = vmin.xlane.f32.xlu0 %v1419
    %v1421 = vpop.xlane.xlu0 %1420
    %vm1422 = vcmp.eq.f32.partialorder %v1419, %v1421
    %v1423 = vsel %vm1422, %v1418, inf
    %1424 = vmin.xlane.f32.xlu0 %v1423
    %v1425 = vpop.xlane.xlu0 %1424
    %v1426 = vcvt.f32.s32 %v1425
    %v1427 = vcvt.f32.s32 %v1421
    %v1428 = vshll.u32 %v1427, 16
    %v1429 = vadd.s32 %v1428, %v1426
    %v1430 = vand.u32 %v833, 65535
    %v1431 = vshra.s32 %v833, 16
    %v1432 = vcvt.s32.f32 %v1430
    %v1433 = vcvt.s32.f32 %v1431
    %1434 = vmin.xlane.f32.xlu0 %v1433
    %v1435 = vpop.xlane.xlu0 %1434
    %vm1436 = vcmp.eq.f32.partialorder %v1433, %v1435
    %v1437 = vsel %vm1436, %v1432, inf
    %1438 = vmin.xlane.f32.xlu0 %v1437
    %v1439 = vpop.xlane.xlu0 %1438
    %v1440 = vcvt.f32.s32 %v1439
    %v1441 = vcvt.f32.s32 %v1435
    %v1442 = vshll.u32 %v1441, 16
    %v1443 = vadd.s32 %v1442, %v1440
    %v1444 = vand.u32 %v834, 65535
    %v1445 = vshra.s32 %v834, 16
    %v1446 = vcvt.s32.f32 %v1444
    %v1447 = vcvt.s32.f32 %v1445
    %1448 = vmin.xlane.f32.xlu0 %v1447
    %v1449 = vpop.xlane.xlu0 %1448
    %vm1450 = vcmp.eq.f32.partialorder %v1447, %v1449
    %v1451 = vsel %vm1450, %v1446, inf
    %1452 = vmin.xlane.f32.xlu0 %v1451
    %v1453 = vpop.xlane.xlu0 %1452
    %v1454 = vcvt.f32.s32 %v1453
    %v1455 = vcvt.f32.s32 %v1449
    %v1456 = vshll.u32 %v1455, 16
    %v1457 = vadd.s32 %v1456, %v1454
    %v1458 = vand.u32 %v835, 65535
    %v1459 = vshra.s32 %v835, 16
    %v1460 = vcvt.s32.f32 %v1458
    %v1461 = vcvt.s32.f32 %v1459
    %1462 = vmin.xlane.f32.xlu0 %v1461
    %v1463 = vpop.xlane.xlu0 %1462
    %vm1464 = vcmp.eq.f32.partialorder %v1461, %v1463
    %v1465 = vsel %vm1464, %v1460, inf
    %1466 = vmin.xlane.f32.xlu0 %v1465
    %v1467 = vpop.xlane.xlu0 %1466
    %v1468 = vcvt.f32.s32 %v1467
    %v1469 = vcvt.f32.s32 %v1463
    %v1470 = vshll.u32 %v1469, 16
    %v1471 = vadd.s32 %v1470, %v1468
    %v1472 = vand.u32 %v836, 65535
    %v1473 = vshra.s32 %v836, 16
    %v1474 = vcvt.s32.f32 %v1472
    %v1475 = vcvt.s32.f32 %v1473
    %1476 = vmin.xlane.f32.xlu0 %v1475
    %v1477 = vpop.xlane.xlu0 %1476
    %vm1478 = vcmp.eq.f32.partialorder %v1475, %v1477
    %v1479 = vsel %vm1478, %v1474, inf
    %1480 = vmin.xlane.f32.xlu0 %v1479
    %v1481 = vpop.xlane.xlu0 %1480
    %v1482 = vcvt.f32.s32 %v1481
    %v1483 = vcvt.f32.s32 %v1477
    %v1484 = vshll.u32 %v1483, 16
    %v1485 = vadd.s32 %v1484, %v1482
    %v1486 = vand.u32 %v837, 65535
    %v1487 = vshra.s32 %v837, 16
    %v1488 = vcvt.s32.f32 %v1486
    %v1489 = vcvt.s32.f32 %v1487
    %1490 = vmin.xlane.f32.xlu0 %v1489
    %v1491 = vpop.xlane.xlu0 %1490
    %vm1492 = vcmp.eq.f32.partialorder %v1489, %v1491
    %v1493 = vsel %vm1492, %v1488, inf
    %1494 = vmin.xlane.f32.xlu0 %v1493
    %v1495 = vpop.xlane.xlu0 %1494
    %v1496 = vcvt.f32.s32 %v1495
    %v1497 = vcvt.f32.s32 %v1491
    %v1498 = vshll.u32 %v1497, 16
    %v1499 = vadd.s32 %v1498, %v1496
    %v1500 = vand.u32 %v838, 65535
    %v1501 = vshra.s32 %v838, 16
    %v1502 = vcvt.s32.f32 %v1500
    %v1503 = vcvt.s32.f32 %v1501
    %1504 = vmin.xlane.f32.xlu0 %v1503
    %v1505 = vpop.xlane.xlu0 %1504
    %vm1506 = vcmp.eq.f32.partialorder %v1503, %v1505
    %v1507 = vsel %vm1506, %v1502, inf
    %1508 = vmin.xlane.f32.xlu0 %v1507
    %v1509 = vpop.xlane.xlu0 %1508
    %v1510 = vcvt.f32.s32 %v1509
    %v1511 = vcvt.f32.s32 %v1505
    %v1512 = vshll.u32 %v1511, 16
    %v1513 = vadd.s32 %v1512, %v1510
    %v1514 = vand.u32 %v839, 65535
    %v1515 = vshra.s32 %v839, 16
    %v1516 = vcvt.s32.f32 %v1514
    %v1517 = vcvt.s32.f32 %v1515
    %1518 = vmin.xlane.f32.xlu0 %v1517
    %v1519 = vpop.xlane.xlu0 %1518
    %vm1520 = vcmp.eq.f32.partialorder %v1517, %v1519
    %v1521 = vsel %vm1520, %v1516, inf
    %1522 = vmin.xlane.f32.xlu0 %v1521
    %v1523 = vpop.xlane.xlu0 %1522
    %v1524 = vcvt.f32.s32 %v1523
    %v1525 = vcvt.f32.s32 %v1519
    %v1526 = vshll.u32 %v1525, 16
    %v1527 = vadd.s32 %v1526, %v1524
    %v1528 = vand.u32 %v840, 65535
    %v1529 = vshra.s32 %v840, 16
    %v1530 = vcvt.s32.f32 %v1528
    %v1531 = vcvt.s32.f32 %v1529
    %1532 = vmin.xlane.f32.xlu0 %v1531
    %v1533 = vpop.xlane.xlu0 %1532
    %vm1534 = vcmp.eq.f32.partialorder %v1531, %v1533
    %v1535 = vsel %vm1534, %v1530, inf
    %1536 = vmin.xlane.f32.xlu0 %v1535
    %v1537 = vpop.xlane.xlu0 %1536
    %v1538 = vcvt.f32.s32 %v1537
    %v1539 = vcvt.f32.s32 %v1533
    %v1540 = vshll.u32 %v1539, 16
    %v1541 = vadd.s32 %v1540, %v1538
    %v1542 = vand.u32 %v841, 65535
    %v1543 = vshra.s32 %v841, 16
    %v1544 = vcvt.s32.f32 %v1542
    %v1545 = vcvt.s32.f32 %v1543
    %1546 = vmin.xlane.f32.xlu0 %v1545
    %v1547 = vpop.xlane.xlu0 %1546
    %vm1548 = vcmp.eq.f32.partialorder %v1545, %v1547
    %v1549 = vsel %vm1548, %v1544, inf
    %1550 = vmin.xlane.f32.xlu0 %v1549
    %v1551 = vpop.xlane.xlu0 %1550
    %v1552 = vcvt.f32.s32 %v1551
    %v1553 = vcvt.f32.s32 %v1547
    %v1554 = vshll.u32 %v1553, 16
    %v1555 = vadd.s32 %v1554, %v1552
    %v1556 = vand.u32 %v842, 65535
    %v1557 = vshra.s32 %v842, 16
    %v1558 = vcvt.s32.f32 %v1556
    %v1559 = vcvt.s32.f32 %v1557
    %1560 = vmin.xlane.f32.xlu0 %v1559
    %v1561 = vpop.xlane.xlu0 %1560
    %vm1562 = vcmp.eq.f32.partialorder %v1559, %v1561
    %v1563 = vsel %vm1562, %v1558, inf
    %1564 = vmin.xlane.f32.xlu0 %v1563
    %v1565 = vpop.xlane.xlu0 %1564
    %v1566 = vcvt.f32.s32 %v1565
    %v1567 = vcvt.f32.s32 %v1561
    %v1568 = vshll.u32 %v1567, 16
    %v1569 = vadd.s32 %v1568, %v1566
    %v1570 = vand.u32 %v843, 65535
    %v1571 = vshra.s32 %v843, 16
    %v1572 = vcvt.s32.f32 %v1570
    %v1573 = vcvt.s32.f32 %v1571
    %1574 = vmin.xlane.f32.xlu0 %v1573
    %v1575 = vpop.xlane.xlu0 %1574
    %vm1576 = vcmp.eq.f32.partialorder %v1573, %v1575
    %v1577 = vsel %vm1576, %v1572, inf
    %1578 = vmin.xlane.f32.xlu0 %v1577
    %v1579 = vpop.xlane.xlu0 %1578
    %v1580 = vcvt.f32.s32 %v1579
    %v1581 = vcvt.f32.s32 %v1575
    %v1582 = vshll.u32 %v1581, 16
    %v1583 = vadd.s32 %v1582, %v1580
    %v1584 = vand.u32 %v844, 65535
    %v1585 = vshra.s32 %v844, 16
    %v1586 = vcvt.s32.f32 %v1584
    %v1587 = vcvt.s32.f32 %v1585
    %1588 = vmin.xlane.f32.xlu0 %v1587
    %v1589 = vpop.xlane.xlu0 %1588
    %vm1590 = vcmp.eq.f32.partialorder %v1587, %v1589
    %v1591 = vsel %vm1590, %v1586, inf
    %1592 = vmin.xlane.f32.xlu0 %v1591
    %v1593 = vpop.xlane.xlu0 %1592
    %v1594 = vcvt.f32.s32 %v1593
    %v1595 = vcvt.f32.s32 %v1589
    %v1596 = vshll.u32 %v1595, 16
    %v1597 = vadd.s32 %v1596, %v1594
    %v1598 = vand.u32 %v845, 65535
    %v1599 = vshra.s32 %v845, 16
    %v1600 = vcvt.s32.f32 %v1598
    %v1601 = vcvt.s32.f32 %v1599
    %1602 = vmin.xlane.f32.xlu0 %v1601
    %v1603 = vpop.xlane.xlu0 %1602
    %vm1604 = vcmp.eq.f32.partialorder %v1601, %v1603
    %v1605 = vsel %vm1604, %v1600, inf
    %1606 = vmin.xlane.f32.xlu0 %v1605
    %v1607 = vpop.xlane.xlu0 %1606
    %v1608 = vcvt.f32.s32 %v1607
    %v1609 = vcvt.f32.s32 %v1603
    %v1610 = vshll.u32 %v1609, 16
    %v1611 = vadd.s32 %v1610, %v1608
    %v1612 = vand.u32 %v846, 65535
    %v1613 = vshra.s32 %v846, 16
    %v1614 = vcvt.s32.f32 %v1612
    %v1615 = vcvt.s32.f32 %v1613
    %1616 = vmin.xlane.f32.xlu0 %v1615
    %v1617 = vpop.xlane.xlu0 %1616
    %vm1618 = vcmp.eq.f32.partialorder %v1615, %v1617
    %v1619 = vsel %vm1618, %v1614, inf
    %1620 = vmin.xlane.f32.xlu0 %v1619
    %v1621 = vpop.xlane.xlu0 %1620
    %v1622 = vcvt.f32.s32 %v1621
    %v1623 = vcvt.f32.s32 %v1617
    %v1624 = vshll.u32 %v1623, 16
    %v1625 = vadd.s32 %v1624, %v1622
    %v1626 = vand.u32 %v847, 65535
    %v1627 = vshra.s32 %v847, 16
    %v1628 = vcvt.s32.f32 %v1626
    %v1629 = vcvt.s32.f32 %v1627
    %1630 = vmin.xlane.f32.xlu0 %v1629
    %v1631 = vpop.xlane.xlu0 %1630
    %vm1632 = vcmp.eq.f32.partialorder %v1629, %v1631
    %v1633 = vsel %vm1632, %v1628, inf
    %1634 = vmin.xlane.f32.xlu0 %v1633
    %v1635 = vpop.xlane.xlu0 %1634
    %v1636 = vcvt.f32.s32 %v1635
    %v1637 = vcvt.f32.s32 %v1631
    %v1638 = vshll.u32 %v1637, 16
    %v1639 = vadd.s32 %v1638, %v1636
    %v1640 = vand.u32 %v848, 65535
    %v1641 = vshra.s32 %v848, 16
    %v1642 = vcvt.s32.f32 %v1640
    %v1643 = vcvt.s32.f32 %v1641
    %1644 = vmin.xlane.f32.xlu0 %v1643
    %v1645 = vpop.xlane.xlu0 %1644
    %vm1646 = vcmp.eq.f32.partialorder %v1643, %v1645
    %v1647 = vsel %vm1646, %v1642, inf
    %1648 = vmin.xlane.f32.xlu0 %v1647
    %v1649 = vpop.xlane.xlu0 %1648
    %v1650 = vcvt.f32.s32 %v1649
    %v1651 = vcvt.f32.s32 %v1645
    %v1652 = vshll.u32 %v1651, 16
    %v1653 = vadd.s32 %v1652, %v1650
    %v1654 = vand.u32 %v849, 65535
    %v1655 = vshra.s32 %v849, 16
    %v1656 = vcvt.s32.f32 %v1654
    %v1657 = vcvt.s32.f32 %v1655
    %1658 = vmin.xlane.f32.xlu0 %v1657
    %v1659 = vpop.xlane.xlu0 %1658
    %vm1660 = vcmp.eq.f32.partialorder %v1657, %v1659
    %v1661 = vsel %vm1660, %v1656, inf
    %1662 = vmin.xlane.f32.xlu0 %v1661
    %v1663 = vpop.xlane.xlu0 %1662
    %v1664 = vcvt.f32.s32 %v1663
    %v1665 = vcvt.f32.s32 %v1659
    %v1666 = vshll.u32 %v1665, 16
    %v1667 = vadd.s32 %v1666, %v1664
    %v1668 = vand.u32 %v850, 65535
    %v1669 = vshra.s32 %v850, 16
    %v1670 = vcvt.s32.f32 %v1668
    %v1671 = vcvt.s32.f32 %v1669
    %1672 = vmin.xlane.f32.xlu0 %v1671
    %v1673 = vpop.xlane.xlu0 %1672
    %vm1674 = vcmp.eq.f32.partialorder %v1671, %v1673
    %v1675 = vsel %vm1674, %v1670, inf
    %1676 = vmin.xlane.f32.xlu0 %v1675
    %v1677 = vpop.xlane.xlu0 %1676
    %v1678 = vcvt.f32.s32 %v1677
    %v1679 = vcvt.f32.s32 %v1673
    %v1680 = vshll.u32 %v1679, 16
    %v1681 = vadd.s32 %v1680, %v1678
    %v1682 = vand.u32 %v851, 65535
    %v1683 = vshra.s32 %v851, 16
    %v1684 = vcvt.s32.f32 %v1682
    %v1685 = vcvt.s32.f32 %v1683
    %1686 = vmin.xlane.f32.xlu0 %v1685
    %v1687 = vpop.xlane.xlu0 %1686
    %vm1688 = vcmp.eq.f32.partialorder %v1685, %v1687
    %v1689 = vsel %vm1688, %v1684, inf
    %1690 = vmin.xlane.f32.xlu0 %v1689
    %v1691 = vpop.xlane.xlu0 %1690
    %v1692 = vcvt.f32.s32 %v1691
    %v1693 = vcvt.f32.s32 %v1687
    %v1694 = vshll.u32 %v1693, 16
    %v1695 = vadd.s32 %v1694, %v1692
    %v1696 = vand.u32 %v852, 65535
    %v1697 = vshra.s32 %v852, 16
    %v1698 = vcvt.s32.f32 %v1696
    %v1699 = vcvt.s32.f32 %v1697
    %1700 = vmin.xlane.f32.xlu0 %v1699
    %v1701 = vpop.xlane.xlu0 %1700
    %vm1702 = vcmp.eq.f32.partialorder %v1699, %v1701
    %v1703 = vsel %vm1702, %v1698, inf
    %1704 = vmin.xlane.f32.xlu0 %v1703
    %v1705 = vpop.xlane.xlu0 %1704
    %v1706 = vcvt.f32.s32 %v1705
    %v1707 = vcvt.f32.s32 %v1701
    %v1708 = vshll.u32 %v1707, 16
    %v1709 = vadd.s32 %v1708, %v1706
    %v1710 = vand.u32 %v853, 65535
    %v1711 = vshra.s32 %v853, 16
    %v1712 = vcvt.s32.f32 %v1710
    %v1713 = vcvt.s32.f32 %v1711
    %1714 = vmin.xlane.f32.xlu0 %v1713
    %v1715 = vpop.xlane.xlu0 %1714
    %vm1716 = vcmp.eq.f32.partialorder %v1713, %v1715
    %v1717 = vsel %vm1716, %v1712, inf
    %1718 = vmin.xlane.f32.xlu0 %v1717
    %v1719 = vpop.xlane.xlu0 %1718
    %v1720 = vcvt.f32.s32 %v1719
    %v1721 = vcvt.f32.s32 %v1715
    %v1722 = vshll.u32 %v1721, 16
    %v1723 = vadd.s32 %v1722, %v1720
    %v1724 = vand.u32 %v854, 65535
    %v1725 = vshra.s32 %v854, 16
    %v1726 = vcvt.s32.f32 %v1724
    %v1727 = vcvt.s32.f32 %v1725
    %1728 = vmin.xlane.f32.xlu0 %v1727
    %v1729 = vpop.xlane.xlu0 %1728
    %vm1730 = vcmp.eq.f32.partialorder %v1727, %v1729
    %v1731 = vsel %vm1730, %v1726, inf
    %1732 = vmin.xlane.f32.xlu0 %v1731
    %v1733 = vpop.xlane.xlu0 %1732
    %v1734 = vcvt.f32.s32 %v1733
    %v1735 = vcvt.f32.s32 %v1729
    %v1736 = vshll.u32 %v1735, 16
    %v1737 = vadd.s32 %v1736, %v1734
    %v1738 = vand.u32 %v855, 65535
    %v1739 = vshra.s32 %v855, 16
    %v1740 = vcvt.s32.f32 %v1738
    %v1741 = vcvt.s32.f32 %v1739
    %1742 = vmin.xlane.f32.xlu0 %v1741
    %v1743 = vpop.xlane.xlu0 %1742
    %vm1744 = vcmp.eq.f32.partialorder %v1741, %v1743
    %v1745 = vsel %vm1744, %v1740, inf
    %1746 = vmin.xlane.f32.xlu0 %v1745
    %v1747 = vpop.xlane.xlu0 %1746
    %v1748 = vcvt.f32.s32 %v1747
    %v1749 = vcvt.f32.s32 %v1743
    %v1750 = vshll.u32 %v1749, 16
    %v1751 = vadd.s32 %v1750, %v1748
    %vm1752 = vcmp.eq.s32.totalorder %v727, %v869
    %vm1753 = vcmp.eq.s32.totalorder %v727, %v883
    %vm1754 = vcmp.eq.s32.totalorder %v727, %v897
    %vm1755 = vcmp.eq.s32.totalorder %v727, %v911
    %vm1756 = vcmp.eq.s32.totalorder %v727, %v925
    %vm1757 = vcmp.eq.s32.totalorder %v727, %v939
    %vm1758 = vcmp.eq.s32.totalorder %v727, %v953
    %vm1759 = vcmp.eq.s32.totalorder %v727, %v967
    %vm1760 = vcmp.eq.s32.totalorder %v727, %v981
    %vm1761 = vcmp.eq.s32.totalorder %v727, %v995
    %vm1762 = vcmp.eq.s32.totalorder %v727, %v1009
    %vm1763 = vcmp.eq.s32.totalorder %v727, %v1023
    %vm1764 = vcmp.eq.s32.totalorder %v727, %v1037
    %vm1765 = vcmp.eq.s32.totalorder %v727, %v1051
    %vm1766 = vcmp.eq.s32.totalorder %v727, %v1065
    %vm1767 = vcmp.eq.s32.totalorder %v727, %v1079
    %vm1768 = vcmp.eq.s32.totalorder %v727, %v1093
    %vm1769 = vcmp.eq.s32.totalorder %v727, %v1107
    %vm1770 = vcmp.eq.s32.totalorder %v727, %v1121
    %vm1771 = vcmp.eq.s32.totalorder %v727, %v1135
    %vm1772 = vcmp.eq.s32.totalorder %v727, %v1149
    %vm1773 = vcmp.eq.s32.totalorder %v727, %v1163
    %vm1774 = vcmp.eq.s32.totalorder %v727, %v1177
    %vm1775 = vcmp.eq.s32.totalorder %v727, %v1191
    %vm1776 = vcmp.eq.s32.totalorder %v727, %v1205
    %vm1777 = vcmp.eq.s32.totalorder %v727, %v1219
    %vm1778 = vcmp.eq.s32.totalorder %v727, %v1233
    %vm1779 = vcmp.eq.s32.totalorder %v727, %v1247
    %vm1780 = vcmp.eq.s32.totalorder %v727, %v1261
    %vm1781 = vcmp.eq.s32.totalorder %v727, %v1275
    %vm1782 = vcmp.eq.s32.totalorder %v727, %v1289
    %vm1783 = vcmp.eq.s32.totalorder %v727, %v1303
    %vm1784 = vcmp.eq.s32.totalorder %v727, %v1317
    %vm1785 = vcmp.eq.s32.totalorder %v727, %v1331
    %vm1786 = vcmp.eq.s32.totalorder %v727, %v1345
    %vm1787 = vcmp.eq.s32.totalorder %v727, %v1359
    %vm1788 = vcmp.eq.s32.totalorder %v727, %v1373
    %vm1789 = vcmp.eq.s32.totalorder %v727, %v1387
    %vm1790 = vcmp.eq.s32.totalorder %v727, %v1401
    %vm1791 = vcmp.eq.s32.totalorder %v727, %v1415
    %vm1792 = vcmp.eq.s32.totalorder %v727, %v1429
    %vm1793 = vcmp.eq.s32.totalorder %v727, %v1443
    %vm1794 = vcmp.eq.s32.totalorder %v727, %v1457
    %vm1795 = vcmp.eq.s32.totalorder %v727, %v1471
    %vm1796 = vcmp.eq.s32.totalorder %v727, %v1485
    %vm1797 = vcmp.eq.s32.totalorder %v727, %v1499
    %vm1798 = vcmp.eq.s32.totalorder %v727, %v1513
    %vm1799 = vcmp.eq.s32.totalorder %v727, %v1527
    %vm1800 = vcmp.eq.s32.totalorder %v727, %v1541
    %vm1801 = vcmp.eq.s32.totalorder %v727, %v1555
    %vm1802 = vcmp.eq.s32.totalorder %v727, %v1569
    %vm1803 = vcmp.eq.s32.totalorder %v727, %v1583
    %vm1804 = vcmp.eq.s32.totalorder %v727, %v1597
    %vm1805 = vcmp.eq.s32.totalorder %v727, %v1611
    %vm1806 = vcmp.eq.s32.totalorder %v727, %v1625
    %vm1807 = vcmp.eq.s32.totalorder %v727, %v1639
    %vm1808 = vcmp.eq.s32.totalorder %v727, %v1653
    %vm1809 = vcmp.eq.s32.totalorder %v727, %v1667
    %vm1810 = vcmp.eq.s32.totalorder %v727, %v1681
    %vm1811 = vcmp.eq.s32.totalorder %v727, %v1695
    %vm1812 = vcmp.eq.s32.totalorder %v727, %v1709
    %vm1813 = vcmp.eq.s32.totalorder %v727, %v1723
    %vm1814 = vcmp.eq.s32.totalorder %v727, %v1737
    %vm1815 = vcmp.eq.s32.totalorder %v727, %v1751
    %v1816 = vsel %vm1752, 1, 0
    %v1817 = vsel %vm1753, 1, 0
    %v1818 = vsel %vm1754, 1, 0
    %v1819 = vsel %vm1755, 1, 0
    %v1820 = vsel %vm1756, 1, 0
    %v1821 = vsel %vm1757, 1, 0
    %v1822 = vsel %vm1758, 1, 0
    %v1823 = vsel %vm1759, 1, 0
    %v1824 = vsel %vm1760, 1, 0
    %v1825 = vsel %vm1761, 1, 0
    %v1826 = vsel %vm1762, 1, 0
    %v1827 = vsel %vm1763, 1, 0
    %v1828 = vsel %vm1764, 1, 0
    %v1829 = vsel %vm1765, 1, 0
    %v1830 = vsel %vm1766, 1, 0
    %v1831 = vsel %vm1767, 1, 0
    %v1832 = vsel %vm1768, 1, 0
    %v1833 = vsel %vm1769, 1, 0
    %v1834 = vsel %vm1770, 1, 0
    %v1835 = vsel %vm1771, 1, 0
    %v1836 = vsel %vm1772, 1, 0
    %v1837 = vsel %vm1773, 1, 0
    %v1838 = vsel %vm1774, 1, 0
    %v1839 = vsel %vm1775, 1, 0
    %v1840 = vsel %vm1776, 1, 0
    %v1841 = vsel %vm1777, 1, 0
    %v1842 = vsel %vm1778, 1, 0
    %v1843 = vsel %vm1779, 1, 0
    %v1844 = vsel %vm1780, 1, 0
    %v1845 = vsel %vm1781, 1, 0
    %v1846 = vsel %vm1782, 1, 0
    %v1847 = vsel %vm1783, 1, 0
    %v1848 = vsel %vm1784, 1, 0
    %v1849 = vsel %vm1785, 1, 0
    %v1850 = vsel %vm1786, 1, 0
    %v1851 = vsel %vm1787, 1, 0
    %v1852 = vsel %vm1788, 1, 0
    %v1853 = vsel %vm1789, 1, 0
    %v1854 = vsel %vm1790, 1, 0
    %v1855 = vsel %vm1791, 1, 0
    %v1856 = vsel %vm1792, 1, 0
    %v1857 = vsel %vm1793, 1, 0
    %v1858 = vsel %vm1794, 1, 0
    %v1859 = vsel %vm1795, 1, 0
    %v1860 = vsel %vm1796, 1, 0
    %v1861 = vsel %vm1797, 1, 0
    %v1862 = vsel %vm1798, 1, 0
    %v1863 = vsel %vm1799, 1, 0
    %v1864 = vsel %vm1800, 1, 0
    %v1865 = vsel %vm1801, 1, 0
    %v1866 = vsel %vm1802, 1, 0
    %v1867 = vsel %vm1803, 1, 0
    %v1868 = vsel %vm1804, 1, 0
    %v1869 = vsel %vm1805, 1, 0
    %v1870 = vsel %vm1806, 1, 0
    %v1871 = vsel %vm1807, 1, 0
    %v1872 = vsel %vm1808, 1, 0
    %v1873 = vsel %vm1809, 1, 0
    %v1874 = vsel %vm1810, 1, 0
    %v1875 = vsel %vm1811, 1, 0
    %v1876 = vsel %vm1812, 1, 0
    %v1877 = vsel %vm1813, 1, 0
    %v1878 = vsel %vm1814, 1, 0
    %v1879 = vsel %vm1815, 1, 0
    %v1880 = vcvt.s32.f32 %v1816
    %v1881 = vcvt.s32.f32 %v1817
    %v1882 = vcvt.s32.f32 %v1818
    %v1883 = vcvt.s32.f32 %v1819
    %v1884 = vcvt.s32.f32 %v1820
    %v1885 = vcvt.s32.f32 %v1821
    %v1886 = vcvt.s32.f32 %v1822
    %v1887 = vcvt.s32.f32 %v1823
    %v1888 = vcvt.s32.f32 %v1824
    %v1889 = vcvt.s32.f32 %v1825
    %v1890 = vcvt.s32.f32 %v1826
    %v1891 = vcvt.s32.f32 %v1827
    %v1892 = vcvt.s32.f32 %v1828
    %v1893 = vcvt.s32.f32 %v1829
    %v1894 = vcvt.s32.f32 %v1830
    %v1895 = vcvt.s32.f32 %v1831
    %v1896 = vcvt.s32.f32 %v1832
    %v1897 = vcvt.s32.f32 %v1833
    %v1898 = vcvt.s32.f32 %v1834
    %v1899 = vcvt.s32.f32 %v1835
    %v1900 = vcvt.s32.f32 %v1836
    %v1901 = vcvt.s32.f32 %v1837
    %v1902 = vcvt.s32.f32 %v1838
    %v1903 = vcvt.s32.f32 %v1839
    %v1904 = vcvt.s32.f32 %v1840
    %v1905 = vcvt.s32.f32 %v1841
    %v1906 = vcvt.s32.f32 %v1842
    %v1907 = vcvt.s32.f32 %v1843
    %v1908 = vcvt.s32.f32 %v1844
    %v1909 = vcvt.s32.f32 %v1845
    %v1910 = vcvt.s32.f32 %v1846
    %v1911 = vcvt.s32.f32 %v1847
    %v1912 = vcvt.s32.f32 %v1848
    %v1913 = vcvt.s32.f32 %v1849
    %v1914 = vcvt.s32.f32 %v1850
    %v1915 = vcvt.s32.f32 %v1851
    %v1916 = vcvt.s32.f32 %v1852
    %v1917 = vcvt.s32.f32 %v1853
    %v1918 = vcvt.s32.f32 %v1854
    %v1919 = vcvt.s32.f32 %v1855
    %v1920 = vcvt.s32.f32 %v1856
    %v1921 = vcvt.s32.f32 %v1857
    %v1922 = vcvt.s32.f32 %v1858
    %v1923 = vcvt.s32.f32 %v1859
    %v1924 = vcvt.s32.f32 %v1860
    %v1925 = vcvt.s32.f32 %v1861
    %v1926 = vcvt.s32.f32 %v1862
    %v1927 = vcvt.s32.f32 %v1863
    %v1928 = vcvt.s32.f32 %v1864
    %v1929 = vcvt.s32.f32 %v1865
    %v1930 = vcvt.s32.f32 %v1866
    %v1931 = vcvt.s32.f32 %v1867
    %v1932 = vcvt.s32.f32 %v1868
    %v1933 = vcvt.s32.f32 %v1869
    %v1934 = vcvt.s32.f32 %v1870
    %v1935 = vcvt.s32.f32 %v1871
    %v1936 = vcvt.s32.f32 %v1872
    %v1937 = vcvt.s32.f32 %v1873
    %v1938 = vcvt.s32.f32 %v1874
    %v1939 = vcvt.s32.f32 %v1875
    %v1940 = vcvt.s32.f32 %v1876
    %v1941 = vcvt.s32.f32 %v1877
    %v1942 = vcvt.s32.f32 %v1878
    %v1943 = vcvt.s32.f32 %v1879
    %v1944 = vld [vmem:[#allocation7] sm:$0xff]
    %v1945 = vld [vmem:[#allocation7 + $0x8] sm:$0xff]
    %v1946 = vld [vmem:[#allocation7 + $0x10] sm:$0xff]
    %v1947 = vld [vmem:[#allocation7 + $0x18] sm:$0xff]
    %v1948 = vld [vmem:[#allocation7 + $0x20] sm:$0xff]
    %v1949 = vld [vmem:[#allocation7 + $0x28] sm:$0xff]
    %v1950 = vld [vmem:[#allocation7 + $0x30] sm:$0xff]
    %v1951 = vld [vmem:[#allocation7 + $0x38] sm:$0xff]
    %v1952 = vld [vmem:[#allocation7 + $0x40] sm:$0xff]
    %v1953 = vld [vmem:[#allocation7 + $0x48] sm:$0xff]
    %v1954 = vld [vmem:[#allocation7 + $0x50] sm:$0xff]
    %v1955 = vld [vmem:[#allocation7 + $0x58] sm:$0xff]
    %v1956 = vld [vmem:[#allocation7 + $0x60] sm:$0xff]
    %v1957 = vld [vmem:[#allocation7 + $0x68] sm:$0xff]
    %v1958 = vld [vmem:[#allocation7 + $0x70] sm:$0xff]
    %v1959 = vld [vmem:[#allocation7 + $0x78] sm:$0xff]
    %1960 = vmatprep.subr.mxu0 0.0
    %1961 = vmatpush1.msra.mxu0 %v1944
    %1962 = vmatprep.subr.mxu0 0.0
    %1963 = vmatpush1.msra.mxu0 %v1945
    %1964 = vmatprep.subr.mxu0 0.0
    %1965 = vmatpush1.msra.mxu0 %v1946
    %1966 = vmatprep.subr.mxu0 0.0
    %1967 = vmatpush1.msra.mxu0 %v1947
    %1968 = vmatprep.subr.mxu0 0.0
    %1969 = vmatpush1.msra.mxu0 %v1948
    %1970 = vmatprep.subr.mxu0 0.0
    %1971 = vmatpush1.msra.mxu0 %v1949
    %1972 = vmatprep.subr.mxu0 0.0
    %1973 = vmatpush1.msra.mxu0 %v1950
    %1974 = vmatprep.subr.mxu0 0.0
    %1975 = vmatpush1.msra.mxu0 %v1951
    %1976 = vmatprep.subr.mxu0 0.0
    %1977 = vmatpush1.msra.mxu0 %v1952
    %1978 = vmatprep.subr.mxu0 0.0
    %1979 = vmatpush1.msra.mxu0 %v1953
    %1980 = vmatprep.subr.mxu0 0.0
    %1981 = vmatpush1.msra.mxu0 %v1954
    %1982 = vmatprep.subr.mxu0 0.0
    %1983 = vmatpush1.msra.mxu0 %v1955
    %1984 = vmatprep.subr.mxu0 0.0
    %1985 = vmatpush1.msra.mxu0 %v1956
    %1986 = vmatprep.subr.mxu0 0.0
    %1987 = vmatpush1.msra.mxu0 %v1957
    %1988 = vmatprep.subr.mxu0 0.0
    %1989 = vmatpush1.msra.mxu0 %v1958
    %1990 = vmatprep.subr.mxu0 0.0
    %1991 = vmatpush1.msra.mxu0 %v1959
    %1992 = vmatprep.subr.mxu0 0.0
    %1993 = vmatpush1.msra.mxu0 0.0
    %1994 = vmatprep.subr.mxu0 0.0
    %1995 = vmatpush1.msra.mxu0 0.0
    %1996 = vmatprep.subr.mxu0 0.0
    %1997 = vmatpush1.msra.mxu0 0.0
    %1998 = vmatprep.subr.mxu0 0.0
    %1999 = vmatpush1.msra.mxu0 0.0
    %2000 = vmatprep.subr.mxu0 0.0
    %2001 = vmatpush1.msra.mxu0 0.0
    %2002 = vmatprep.subr.mxu0 0.0
    %2003 = vmatpush1.msra.mxu0 0.0
    %2004 = vmatprep.subr.mxu0 0.0
    %2005 = vmatpush1.msra.mxu0 0.0
    %2006 = vmatprep.subr.mxu0 0.0
    %2007 = vmatpush1.msra.mxu0 0.0
    %2008 = vmatprep.subr.mxu0 0.0
    %2009 = vmatpush1.msra.mxu0 0.0
    %2010 = vmatprep.subr.mxu0 0.0
    %2011 = vmatpush1.msra.mxu0 0.0
    %2012 = vmatprep.subr.mxu0 0.0
    %2013 = vmatpush1.msra.mxu0 0.0
    %2014 = vmatprep.subr.mxu0 0.0
    %2015 = vmatpush1.msra.mxu0 0.0
    %2016 = vmatprep.subr.mxu0 0.0
    %2017 = vmatpush1.msra.mxu0 0.0
    %2018 = vmatprep.subr.mxu0 0.0
    %2019 = vmatpush1.msra.mxu0 0.0
    %2020 = vmatprep.subr.mxu0 0.0
    %2021 = vmatpush1.msra.mxu0 0.0
    %2022 = vmatprep.subr.mxu0 0.0
    %2023 = vmatpush1.msra.mxu0 0.0
    %2024 = vmatprep.mubr.f32.mxu0 0.0
    %2025 = vmatmul.mubr.f32.gmra.mrb[0].mxu0 %v1880
    %v2026 = vpop.f32.mrb[0].mxu0
    %v2027 = vadd.f32 0.0, %v2026
    %v2028 = vpop.f32.mrb[0].mxu0
    %2029 = vmatprep.mubr.f32.mxu0 0.0
    %2030 = vmatmul.mubr.f32.gmra.mrb[0].mxu0 %v1881
    %v2031 = vpop.f32.mrb[0].mxu0
    %v2032 = vadd.f32 0.0, %v2031
    %v2033 = vpop.f32.mrb[0].mxu0
    %2034 = vmatprep.mubr.f32.mxu0 0.0
    %2035 = vmatmul.mubr.f32.gmra.mrb[0].mxu0 %v1882
    %v2036 = vpop.f32.mrb[0].mxu0
    %v2037 = vadd.f32 0.0, %v2036
    %v2038 = vpop.f32.mrb[0].mxu0
    %2039 = vmatprep.mubr.f32.mxu0 0.0
    %2040 = vmatmul.mubr.f32.gmra.mrb[0].mxu0 %v1883
    %v2041 = vpop.f32.mrb[0].mxu0
    %v2042 = vadd.f32 0.0, %v2041
    %v2043 = vpop.f32.mrb[0].mxu0
    %2044 = vmatprep.mubr.f32.mxu0 0.0
    %2045 = vmatmul.mubr.f32.gmra.mrb[0].mxu0 %v1884
    %v2046 = vpop.f32.mrb[0].mxu0
    %v2047 = vadd.f32 0.0, %v2046
    %v2048 = vpop.f32.mrb[0].mxu0
    %2049 = vmatprep.mubr.f32.mxu0 0.0
    %2050 = vmatmul.mubr.f32.gmra.mrb[0].mxu0 %v1885
    %v2051 = vpop.f32.mrb[0].mxu0
    %v2052 = vadd.f32 0.0, %v2051
    %v2053 = vpop.f32.mrb[0].mxu0
    %2054 = vmatprep.mubr.f32.mxu0 0.0
    %2055 = vmatmul.mubr.f32.gmra.mrb[0].mxu0 %v1886
    %v2056 = vpop.f32.mrb[0].mxu0
    %v2057 = vadd.f32 0.0, %v2056
    %v2058 = vpop.f32.mrb[0].mxu0
    %2059 = vmatprep.mubr.f32.mxu0 0.0
    %2060 = vmatmul.mubr.f32.gmra.mrb[0].mxu0 %v1887
    %v2061 = vpop.f32.mrb[0].mxu0
    %v2062 = vadd.f32 0.0, %v2061
    %v2063 = vpop.f32.mrb[0].mxu0
    %2064 = vmatprep.mubr.f32.mxu0 0.0
    %2065 = vmatmul.mubr.f32.gmra.mrb[0].mxu0 %v1888
    %v2066 = vpop.f32.mrb[0].mxu0
    %v2067 = vadd.f32 0.0, %v2066
    %v2068 = vpop.f32.mrb[0].mxu0
    %2069 = vmatprep.mubr.f32.mxu0 0.0
    %2070 = vmatmul.mubr.f32.gmra.mrb[0].mxu0 %v1889
    %v2071 = vpop.f32.mrb[0].mxu0
    %v2072 = vadd.f32 0.0, %v2071
    %v2073 = vpop.f32.mrb[0].mxu0
    %2074 = vmatprep.mubr.f32.mxu0 0.0
    %2075 = vmatmul.mubr.f32.gmra.mrb[0].mxu0 %v1890
    %v2076 = vpop.f32.mrb[0].mxu0
    %v2077 = vadd.f32 0.0, %v2076
    %v2078 = vpop.f32.mrb[0].mxu0
    %2079 = vmatprep.mubr.f32.mxu0 0.0
    %2080 = vmatmul.mubr.f32.gmra.mrb[0].mxu0 %v1891
    %v2081 = vpop.f32.mrb[0].mxu0
    %v2082 = vadd.f32 0.0, %v2081
    %v2083 = vpop.f32.mrb[0].mxu0
    %2084 = vmatprep.mubr.f32.mxu0 0.0
    %2085 = vmatmul.mubr.f32.gmra.mrb[0].mxu0 %v1892
    %v2086 = vpop.f32.mrb[0].mxu0
    %v2087 = vadd.f32 0.0, %v2086
    %v2088 = vpop.f32.mrb[0].mxu0
    %2089 = vmatprep.mubr.f32.mxu0 0.0
    %2090 = vmatmul.mubr.f32.gmra.mrb[0].mxu0 %v1893
    %v2091 = vpop.f32.mrb[0].mxu0
    %v2092 = vadd.f32 0.0, %v2091
    %v2093 = vpop.f32.mrb[0].mxu0
    %2094 = vmatprep.mubr.f32.mxu0 0.0
    %2095 = vmatmul.mubr.f32.gmra.mrb[0].mxu0 %v1894
    %v2096 = vpop.f32.mrb[0].mxu0
    %v2097 = vadd.f32 0.0, %v2096
    %v2098 = vpop.f32.mrb[0].mxu0
    %2099 = vmatprep.mubr.f32.mxu0 0.0
    %2100 = vmatmul.mubr.f32.gmra.mrb[0].mxu0 %v1895
    %v2101 = vpop.f32.mrb[0].mxu0
    %v2102 = vadd.f32 0.0, %v2101
    %v2103 = vpop.f32.mrb[0].mxu0
    %2104 = vmatprep.mubr.f32.mxu0 0.0
    %2105 = vmatmul.mubr.f32.gmra.mrb[0].mxu0 %v1896
    %v2106 = vpop.f32.mrb[0].mxu0
    %v2107 = vadd.f32 0.0, %v2106
    %v2108 = vpop.f32.mrb[0].mxu0
    %2109 = vmatprep.mubr.f32.mxu0 0.0
    %2110 = vmatmul.mubr.f32.gmra.mrb[0].mxu0 %v1897
    %v2111 = vpop.f32.mrb[0].mxu0
    %v2112 = vadd.f32 0.0, %v2111
    %v2113 = vpop.f32.mrb[0].mxu0
    %2114 = vmatprep.mubr.f32.mxu0 0.0
    %2115 = vmatmul.mubr.f32.gmra.mrb[0].mxu0 %v1898
    %v2116 = vpop.f32.mrb[0].mxu0
    %v2117 = vadd.f32 0.0, %v2116
    %v2118 = vpop.f32.mrb[0].mxu0
    %2119 = vmatprep.mubr.f32.mxu0 0.0
    %2120 = vmatmul.mubr.f32.gmra.mrb[0].mxu0 %v1899
    %v2121 = vpop.f32.mrb[0].mxu0
    %v2122 = vadd.f32 0.0, %v2121
    %v2123 = vpop.f32.mrb[0].mxu0
    %2124 = vmatprep.mubr.f32.mxu0 0.0
    %2125 = vmatmul.mubr.f32.gmra.mrb[0].mxu0 %v1900
    %v2126 = vpop.f32.mrb[0].mxu0
    %v2127 = vadd.f32 0.0, %v2126
    %v2128 = vpop.f32.mrb[0].mxu0
    %2129 = vmatprep.mubr.f32.mxu0 0.0
    %2130 = vmatmul.mubr.f32.gmra.mrb[0].mxu0 %v1901
    %v2131 = vpop.f32.mrb[0].mxu0
    %v2132 = vadd.f32 0.0, %v2131
    %v2133 = vpop.f32.mrb[0].mxu0
    %2134 = vmatprep.mubr.f32.mxu0 0.0
    %2135 = vmatmul.mubr.f32.gmra.mrb[0].mxu0 %v1902
    %v2136 = vpop.f32.mrb[0].mxu0
    %v2137 = vadd.f32 0.0, %v2136
    %v2138 = vpop.f32.mrb[0].mxu0
    %2139 = vmatprep.mubr.f32.mxu0 0.0
    %2140 = vmatmul.mubr.f32.gmra.mrb[0].mxu0 %v1903
    %v2141 = vpop.f32.mrb[0].mxu0
    %v2142 = vadd.f32 0.0, %v2141
    %v2143 = vpop.f32.mrb[0].mxu0
    %2144 = vmatprep.mubr.f32.mxu0 0.0
    %2145 = vmatmul.mubr.f32.gmra.mrb[0].mxu0 %v1904
    %v2146 = vpop.f32.mrb[0].mxu0
    %v2147 = vadd.f32 0.0, %v2146
    %v2148 = vpop.f32.mrb[0].mxu0
    %2149 = vmatprep.mubr.f32.mxu0 0.0
    %2150 = vmatmul.mubr.f32.gmra.mrb[0].mxu0 %v1905
    %v2151 = vpop.f32.mrb[0].mxu0
    %v2152 = vadd.f32 0.0, %v2151
    %v2153 = vpop.f32.mrb[0].mxu0
    %2154 = vmatprep.mubr.f32.mxu0 0.0
    %2155 = vmatmul.mubr.f32.gmra.mrb[0].mxu0 %v1906
    %v2156 = vpop.f32.mrb[0].mxu0
    %v2157 = vadd.f32 0.0, %v2156
    %v2158 = vpop.f32.mrb[0].mxu0
    %2159 = vmatprep.mubr.f32.mxu0 0.0
    %2160 = vmatmul.mubr.f32.gmra.mrb[0].mxu0 %v1907
    %v2161 = vpop.f32.mrb[0].mxu0
    %v2162 = vadd.f32 0.0, %v2161
    %v2163 = vpop.f32.mrb[0].mxu0
    %2164 = vmatprep.mubr.f32.mxu0 0.0
    %2165 = vmatmul.mubr.f32.gmra.mrb[0].mxu0 %v1908
    %v2166 = vpop.f32.mrb[0].mxu0
    %v2167 = vadd.f32 0.0, %v2166
    %v2168 = vpop.f32.mrb[0].mxu0
    %2169 = vmatprep.mubr.f32.mxu0 0.0
    %2170 = vmatmul.mubr.f32.gmra.mrb[0].mxu0 %v1909
    %v2171 = vpop.f32.mrb[0].mxu0
    %v2172 = vadd.f32 0.0, %v2171
    %v2173 = vpop.f32.mrb[0].mxu0
    %2174 = vmatprep.mubr.f32.mxu0 0.0
    %2175 = vmatmul.mubr.f32.gmra.mrb[0].mxu0 %v1910
    %v2176 = vpop.f32.mrb[0].mxu0
    %v2177 = vadd.f32 0.0, %v2176
    %v2178 = vpop.f32.mrb[0].mxu0
    %2179 = vmatprep.mubr.f32.mxu0 0.0
    %2180 = vmatmul.mubr.f32.gmra.mrb[0].mxu0 %v1911
    %v2181 = vpop.f32.mrb[0].mxu0
    %v2182 = vadd.f32 0.0, %v2181
    %v2183 = vpop.f32.mrb[0].mxu0
    %2184 = vmatprep.mubr.f32.mxu0 0.0
    %2185 = vmatmul.mubr.f32.gmra.mrb[0].mxu0 %v1912
    %v2186 = vpop.f32.mrb[0].mxu0
    %v2187 = vadd.f32 0.0, %v2186
    %v2188 = vpop.f32.mrb[0].mxu0
    %2189 = vmatprep.mubr.f32.mxu0 0.0
    %2190 = vmatmul.mubr.f32.gmra.mrb[0].mxu0 %v1913
    %v2191 = vpop.f32.mrb[0].mxu0
    %v2192 = vadd.f32 0.0, %v2191
    %v2193 = vpop.f32.mrb[0].mxu0
    %2194 = vmatprep.mubr.f32.mxu0 0.0
    %2195 = vmatmul.mubr.f32.gmra.mrb[0].mxu0 %v1914
    %v2196 = vpop.f32.mrb[0].mxu0
    %v2197 = vadd.f32 0.0, %v2196
    %v2198 = vpop.f32.mrb[0].mxu0
    %2199 = vmatprep.mubr.f32.mxu0 0.0
    %2200 = vmatmul.mubr.f32.gmra.mrb[0].mxu0 %v1915
    %v2201 = vpop.f32.mrb[0].mxu0
    %v2202 = vadd.f32 0.0, %v2201
    %v2203 = vpop.f32.mrb[0].mxu0
    %2204 = vmatprep.mubr.f32.mxu0 0.0
    %2205 = vmatmul.mubr.f32.gmra.mrb[0].mxu0 %v1916
    %v2206 = vpop.f32.mrb[0].mxu0
    %v2207 = vadd.f32 0.0, %v2206
    %v2208 = vpop.f32.mrb[0].mxu0
    %2209 = vmatprep.mubr.f32.mxu0 0.0
    %2210 = vmatmul.mubr.f32.gmra.mrb[0].mxu0 %v1917
    %v2211 = vpop.f32.mrb[0].mxu0
    %v2212 = vadd.f32 0.0, %v2211
    %v2213 = vpop.f32.mrb[0].mxu0
    %2214 = vmatprep.mubr.f32.mxu0 0.0
    %2215 = vmatmul.mubr.f32.gmra.mrb[0].mxu0 %v1918
    %v2216 = vpop.f32.mrb[0].mxu0
    %v2217 = vadd.f32 0.0, %v2216
    %v2218 = vpop.f32.mrb[0].mxu0
    %2219 = vmatprep.mubr.f32.mxu0 0.0
    %2220 = vmatmul.mubr.f32.gmra.mrb[0].mxu0 %v1919
    %v2221 = vpop.f32.mrb[0].mxu0
    %v2222 = vadd.f32 0.0, %v2221
    %v2223 = vpop.f32.mrb[0].mxu0
    %2224 = vmatprep.mubr.f32.mxu0 0.0
    %2225 = vmatmul.mubr.f32.gmra.mrb[0].mxu0 %v1920
    %v2226 = vpop.f32.mrb[0].mxu0
    %v2227 = vadd.f32 0.0, %v2226
    %v2228 = vpop.f32.mrb[0].mxu0
    %2229 = vmatprep.mubr.f32.mxu0 0.0
    %2230 = vmatmul.mubr.f32.gmra.mrb[0].mxu0 %v1921
    %v2231 = vpop.f32.mrb[0].mxu0
    %v2232 = vadd.f32 0.0, %v2231
    %v2233 = vpop.f32.mrb[0].mxu0
    %2234 = vmatprep.mubr.f32.mxu0 0.0
    %2235 = vmatmul.mubr.f32.gmra.mrb[0].mxu0 %v1922
    %v2236 = vpop.f32.mrb[0].mxu0
    %v2237 = vadd.f32 0.0, %v2236
    %v2238 = vpop.f32.mrb[0].mxu0
    %2239 = vmatprep.mubr.f32.mxu0 0.0
    %2240 = vmatmul.mubr.f32.gmra.mrb[0].mxu0 %v1923
    %v2241 = vpop.f32.mrb[0].mxu0
    %v2242 = vadd.f32 0.0, %v2241
    %v2243 = vpop.f32.mrb[0].mxu0
    %2244 = vmatprep.mubr.f32.mxu0 0.0
    %2245 = vmatmul.mubr.f32.gmra.mrb[0].mxu0 %v1924
    %v2246 = vpop.f32.mrb[0].mxu0
    %v2247 = vadd.f32 0.0, %v2246
    %v2248 = vpop.f32.mrb[0].mxu0
    %2249 = vmatprep.mubr.f32.mxu0 0.0
    %2250 = vmatmul.mubr.f32.gmra.mrb[0].mxu0 %v1925
    %v2251 = vpop.f32.mrb[0].mxu0
    %v2252 = vadd.f32 0.0, %v2251
    %v2253 = vpop.f32.mrb[0].mxu0
    %2254 = vmatprep.mubr.f32.mxu0 0.0
    %2255 = vmatmul.mubr.f32.gmra.mrb[0].mxu0 %v1926
    %v2256 = vpop.f32.mrb[0].mxu0
    %v2257 = vadd.f32 0.0, %v2256
    %v2258 = vpop.f32.mrb[0].mxu0
    %2259 = vmatprep.mubr.f32.mxu0 0.0
    %2260 = vmatmul.mubr.f32.gmra.mrb[0].mxu0 %v1927
    %v2261 = vpop.f32.mrb[0].mxu0
    %v2262 = vadd.f32 0.0, %v2261
    %v2263 = vpop.f32.mrb[0].mxu0
    %2264 = vmatprep.mubr.f32.mxu0 0.0
    %2265 = vmatmul.mubr.f32.gmra.mrb[0].mxu0 %v1928
    %v2266 = vpop.f32.mrb[0].mxu0
    %v2267 = vadd.f32 0.0, %v2266
    %v2268 = vpop.f32.mrb[0].mxu0
    %2269 = vmatprep.mubr.f32.mxu0 0.0
    %2270 = vmatmul.mubr.f32.gmra.mrb[0].mxu0 %v1929
    %v2271 = vpop.f32.mrb[0].mxu0
    %v2272 = vadd.f32 0.0, %v2271
    %v2273 = vpop.f32.mrb[0].mxu0
    %2274 = vmatprep.mubr.f32.mxu0 0.0
    %2275 = vmatmul.mubr.f32.gmra.mrb[0].mxu0 %v1930
    %v2276 = vpop.f32.mrb[0].mxu0
    %v2277 = vadd.f32 0.0, %v2276
    %v2278 = vpop.f32.mrb[0].mxu0
    %2279 = vmatprep.mubr.f32.mxu0 0.0
    %2280 = vmatmul.mubr.f32.gmra.mrb[0].mxu0 %v1931
    %v2281 = vpop.f32.mrb[0].mxu0
    %v2282 = vadd.f32 0.0, %v2281
    %v2283 = vpop.f32.mrb[0].mxu0
    %2284 = vmatprep.mubr.f32.mxu0 0.0
    %2285 = vmatmul.mubr.f32.gmra.mrb[0].mxu0 %v1932
    %v2286 = vpop.f32.mrb[0].mxu0
    %v2287 = vadd.f32 0.0, %v2286
    %v2288 = vpop.f32.mrb[0].mxu0
    %2289 = vmatprep.mubr.f32.mxu0 0.0
    %2290 = vmatmul.mubr.f32.gmra.mrb[0].mxu0 %v1933
    %v2291 = vpop.f32.mrb[0].mxu0
    %v2292 = vadd.f32 0.0, %v2291
    %v2293 = vpop.f32.mrb[0].mxu0
    %2294 = vmatprep.mubr.f32.mxu0 0.0
    %2295 = vmatmul.mubr.f32.gmra.mrb[0].mxu0 %v1934
    %v2296 = vpop.f32.mrb[0].mxu0
    %v2297 = vadd.f32 0.0, %v2296
    %v2298 = vpop.f32.mrb[0].mxu0
    %2299 = vmatprep.mubr.f32.mxu0 0.0
    %2300 = vmatmul.mubr.f32.gmra.mrb[0].mxu0 %v1935
    %v2301 = vpop.f32.mrb[0].mxu0
    %v2302 = vadd.f32 0.0, %v2301
    %v2303 = vpop.f32.mrb[0].mxu0
    %2304 = vmatprep.mubr.f32.mxu0 0.0
    %2305 = vmatmul.mubr.f32.gmra.mrb[0].mxu0 %v1936
    %v2306 = vpop.f32.mrb[0].mxu0
    %v2307 = vadd.f32 0.0, %v2306
    %v2308 = vpop.f32.mrb[0].mxu0
    %2309 = vmatprep.mubr.f32.mxu0 0.0
    %2310 = vmatmul.mubr.f32.gmra.mrb[0].mxu0 %v1937
    %v2311 = vpop.f32.mrb[0].mxu0
    %v2312 = vadd.f32 0.0, %v2311
    %v2313 = vpop.f32.mrb[0].mxu0
    %2314 = vmatprep.mubr.f32.mxu0 0.0
    %2315 = vmatmul.mubr.f32.gmra.mrb[0].mxu0 %v1938
    %v2316 = vpop.f32.mrb[0].mxu0
    %v2317 = vadd.f32 0.0, %v2316
    %v2318 = vpop.f32.mrb[0].mxu0
    %2319 = vmatprep.mubr.f32.mxu0 0.0
    %2320 = vmatmul.mubr.f32.gmra.mrb[0].mxu0 %v1939
    %v2321 = vpop.f32.mrb[0].mxu0
    %v2322 = vadd.f32 0.0, %v2321
    %v2323 = vpop.f32.mrb[0].mxu0
    %2324 = vmatprep.mubr.f32.mxu0 0.0
    %2325 = vmatmul.mubr.f32.gmra.mrb[0].mxu0 %v1940
    %v2326 = vpop.f32.mrb[0].mxu0
    %v2327 = vadd.f32 0.0, %v2326
    %v2328 = vpop.f32.mrb[0].mxu0
    %2329 = vmatprep.mubr.f32.mxu0 0.0
    %2330 = vmatmul.mubr.f32.gmra.mrb[0].mxu0 %v1941
    %v2331 = vpop.f32.mrb[0].mxu0
    %v2332 = vadd.f32 0.0, %v2331
    %v2333 = vpop.f32.mrb[0].mxu0
    %2334 = vmatprep.mubr.f32.mxu0 0.0
    %2335 = vmatmul.mubr.f32.gmra.mrb[0].mxu0 %v1942
    %v2336 = vpop.f32.mrb[0].mxu0
    %v2337 = vadd.f32 0.0, %v2336
    %v2338 = vpop.f32.mrb[0].mxu0
    %2339 = vmatprep.mubr.f32.mxu0 0.0
    %2340 = vmatmul.mubr.f32.gmra.mrb[0].mxu0 %v1943
    %v2341 = vpop.f32.mrb[0].mxu0
    %v2342 = vadd.f32 0.0, %v2341
    %v2343 = vpop.f32.mrb[0].mxu0
    %2344 = vdwg.mxu0
    %2345 = vst [vmem:[#allocation8] sm:$0xff] %v2027
    %2346 = vst [vmem:[#allocation8 + $0x8] sm:$0xff] %v2032
    %2347 = vst [vmem:[#allocation8 + $0x10] sm:$0xff] %v2037
    %2348 = vst [vmem:[#allocation8 + $0x18] sm:$0xff] %v2042
    %2349 = vst [vmem:[#allocation8 + $0x20] sm:$0xff] %v2047
    %2350 = vst [vmem:[#allocation8 + $0x28] sm:$0xff] %v2052
    %2351 = vst [vmem:[#allocation8 + $0x30] sm:$0xff] %v2057
    %2352 = vst [vmem:[#allocation8 + $0x38] sm:$0xff] %v2062
    %2353 = vst [vmem:[#allocation8 + $0x40] sm:$0xff] %v2067
    %2354 = vst [vmem:[#allocation8 + $0x48] sm:$0xff] %v2072
    %2355 = vst [vmem:[#allocation8 + $0x50] sm:$0xff] %v2077
    %2356 = vst [vmem:[#allocation8 + $0x58] sm:$0xff] %v2082
    %2357 = vst [vmem:[#allocation8 + $0x60] sm:$0xff] %v2087
    %2358 = vst [vmem:[#allocation8 + $0x68] sm:$0xff] %v2092
    %2359 = vst [vmem:[#allocation8 + $0x70] sm:$0xff] %v2097
    %2360 = vst [vmem:[#allocation8 + $0x78] sm:$0xff] %v2102
    %2361 = vst [vmem:[#allocation8 + $0x80] sm:$0xff] %v2107
    %2362 = vst [vmem:[#allocation8 + $0x88] sm:$0xff] %v2112
    %2363 = vst [vmem:[#allocation8 + $0x90] sm:$0xff] %v2117
    %2364 = vst [vmem:[#allocation8 + $0x98] sm:$0xff] %v2122
    %2365 = vst [vmem:[#allocation8 + $0xa0] sm:$0xff] %v2127
    %2366 = vst [vmem:[#allocation8 + $0xa8] sm:$0xff] %v2132
    %2367 = vst [vmem:[#allocation8 + $0xb0] sm:$0xff] %v2137
    %2368 = vst [vmem:[#allocation8 + $0xb8] sm:$0xff] %v2142
    %2369 = vst [vmem:[#allocation8 + $0xc0] sm:$0xff] %v2147
    %2370 = vst [vmem:[#allocation8 + $0xc8] sm:$0xff] %v2152
    %2371 = vst [vmem:[#allocation8 + $0xd0] sm:$0xff] %v2157
    %2372 = vst [vmem:[#allocation8 + $0xd8] sm:$0xff] %v2162
    %2373 = vst [vmem:[#allocation8 + $0xe0] sm:$0xff] %v2167
    %2374 = vst [vmem:[#allocation8 + $0xe8] sm:$0xff] %v2172
    %2375 = vst [vmem:[#allocation8 + $0xf0] sm:$0xff] %v2177
    %2376 = vst [vmem:[#allocation8 + $0xf8] sm:$0xff] %v2182
    %2377 = vst [vmem:[#allocation8 + $0x100] sm:$0xff] %v2187
    %2378 = vst [vmem:[#allocation8 + $0x108] sm:$0xff] %v2192
    %2379 = vst [vmem:[#allocation8 + $0x110] sm:$0xff] %v2197
    %2380 = vst [vmem:[#allocation8 + $0x118] sm:$0xff] %v2202
    %2381 = vst [vmem:[#allocation8 + $0x120] sm:$0xff] %v2207
    %2382 = vst [vmem:[#allocation8 + $0x128] sm:$0xff] %v2212
    %2383 = vst [vmem:[#allocation8 + $0x130] sm:$0xff] %v2217
    %2384 = vst [vmem:[#allocation8 + $0x138] sm:$0xff] %v2222
    %2385 = vst [vmem:[#allocation8 + $0x140] sm:$0xff] %v2227
    %2386 = vst [vmem:[#allocation8 + $0x148] sm:$0xff] %v2232
    %2387 = vst [vmem:[#allocation8 + $0x150] sm:$0xff] %v2237
    %2388 = vst [vmem:[#allocation8 + $0x158] sm:$0xff] %v2242
    %2389 = vst [vmem:[#allocation8 + $0x160] sm:$0xff] %v2247
    %2390 = vst [vmem:[#allocation8 + $0x168] sm:$0xff] %v2252
    %2391 = vst [vmem:[#allocation8 + $0x170] sm:$0xff] %v2257
    %2392 = vst [vmem:[#allocation8 + $0x178] sm:$0xff] %v2262
    %2393 = vst [vmem:[#allocation8 + $0x180] sm:$0xff] %v2267
    %2394 = vst [vmem:[#allocation8 + $0x188] sm:$0xff] %v2272
    %2395 = vst [vmem:[#allocation8 + $0x190] sm:$0xff] %v2277
    %2396 = vst [vmem:[#allocation8 + $0x198] sm:$0xff] %v2282
    %2397 = vst [vmem:[#allocation8 + $0x1a0] sm:$0xff] %v2287
    %2398 = vst [vmem:[#allocation8 + $0x1a8] sm:$0xff] %v2292
    %2399 = vst [vmem:[#allocation8 + $0x1b0] sm:$0xff] %v2297
    %2400 = vst [vmem:[#allocation8 + $0x1b8] sm:$0xff] %v2302
    %2401 = vst [vmem:[#allocation8 + $0x1c0] sm:$0xff] %v2307
    %2402 = vst [vmem:[#allocation8 + $0x1c8] sm:$0xff] %v2312
    %2403 = vst [vmem:[#allocation8 + $0x1d0] sm:$0xff] %v2317
    %2404 = vst [vmem:[#allocation8 + $0x1d8] sm:$0xff] %v2322
    %2405 = vst [vmem:[#allocation8 + $0x1e0] sm:$0xff] %v2327
    %2406 = vst [vmem:[#allocation8 + $0x1e8] sm:$0xff] %v2332
    %2407 = vst [vmem:[#allocation8 + $0x1f0] sm:$0xff] %v2337
    %2408 = vst [vmem:[#allocation8 + $0x1f8] sm:$0xff] %v2342
    %s2409 = smul.u32 0, 512
    %v2410 = vlaneseq
    %v2411 = vshrl.u32 %v2410, 7
    %v2412 = vadd.s32 %v2411, 8
    %v2413 = vadd.s32 %v2411, 16
    %v2414 = vadd.s32 %v2411, 24
    %v2415 = vadd.s32 %v2411, 32
    %v2416 = vadd.s32 %v2411, 40
    %v2417 = vadd.s32 %v2411, 48
    %v2418 = vadd.s32 %v2411, 56
    %v2419 = vadd.s32 %v2411, 64
    %v2420 = vadd.s32 %v2411, 72
    %v2421 = vadd.s32 %v2411, 80
    %v2422 = vadd.s32 %v2411, 88
    %v2423 = vadd.s32 %v2411, 96
    %v2424 = vadd.s32 %v2411, 104
    %v2425 = vadd.s32 %v2411, 112
    %v2426 = vadd.s32 %v2411, 120
    %v2427 = vadd.s32 %v2411, 128
    %v2428 = vadd.s32 %v2411, 136
    %v2429 = vadd.s32 %v2411, 144
    %v2430 = vadd.s32 %v2411, 152
    %v2431 = vadd.s32 %v2411, 160
    %v2432 = vadd.s32 %v2411, 168
    %v2433 = vadd.s32 %v2411, 176
    %v2434 = vadd.s32 %v2411, 184
    %v2435 = vadd.s32 %v2411, 192
    %v2436 = vadd.s32 %v2411, 200
    %v2437 = vadd.s32 %v2411, 208
    %v2438 = vadd.s32 %v2411, 216
    %v2439 = vadd.s32 %v2411, 224
    %v2440 = vadd.s32 %v2411, 232
    %v2441 = vadd.s32 %v2411, 240
    %v2442 = vadd.s32 %v2411, 248
    %v2443 = vadd.s32 %v2411, 256
    %v2444 = vadd.s32 %v2411, 264
    %v2445 = vadd.s32 %v2411, 272
    %v2446 = vadd.s32 %v2411, 280
    %v2447 = vadd.s32 %v2411, 288
    %v2448 = vadd.s32 %v2411, 296
    %v2449 = vadd.s32 %v2411, 304
    %v2450 = vadd.s32 %v2411, 312
    %v2451 = vadd.s32 %v2411, 320
    %v2452 = vadd.s32 %v2411, 328
    %v2453 = vadd.s32 %v2411, 336
    %v2454 = vadd.s32 %v2411, 344
    %v2455 = vadd.s32 %v2411, 352
    %v2456 = vadd.s32 %v2411, 360
    %v2457 = vadd.s32 %v2411, 368
    %v2458 = vadd.s32 %v2411, 376
    %v2459 = vadd.s32 %v2411, 384
    %v2460 = vadd.s32 %v2411, 392
    %v2461 = vadd.s32 %v2411, 400
    %v2462 = vadd.s32 %v2411, 408
    %v2463 = vadd.s32 %v2411, 416
    %v2464 = vadd.s32 %v2411, 424
    %v2465 = vadd.s32 %v2411, 432
    %v2466 = vadd.s32 %v2411, 440
    %v2467 = vadd.s32 %v2411, 448
    %v2468 = vadd.s32 %v2411, 456
    %v2469 = vadd.s32 %v2411, 464
    %v2470 = vadd.s32 %v2411, 472
    %v2471 = vadd.s32 %v2411, 480
    %v2472 = vadd.s32 %v2411, 488
    %v2473 = vadd.s32 %v2411, 496
    %v2474 = vadd.s32 %v2411, 504
    %v2475 = vstv %s2409
    %v2476 = vadd.s32 %v2475, %v2411
    %v2477 = vadd.s32 %v2475, %v2412
    %v2478 = vadd.s32 %v2475, %v2413
    %v2479 = vadd.s32 %v2475, %v2414
    %v2480 = vadd.s32 %v2475, %v2415
    %v2481 = vadd.s32 %v2475, %v2416
    %v2482 = vadd.s32 %v2475, %v2417
    %v2483 = vadd.s32 %v2475, %v2418
    %v2484 = vadd.s32 %v2475, %v2419
    %v2485 = vadd.s32 %v2475, %v2420
    %v2486 = vadd.s32 %v2475, %v2421
    %v2487 = vadd.s32 %v2475, %v2422
    %v2488 = vadd.s32 %v2475, %v2423
    %v2489 = vadd.s32 %v2475, %v2424
    %v2490 = vadd.s32 %v2475, %v2425
    %v2491 = vadd.s32 %v2475, %v2426
    %v2492 = vadd.s32 %v2475, %v2427
    %v2493 = vadd.s32 %v2475, %v2428
    %v2494 = vadd.s32 %v2475, %v2429
    %v2495 = vadd.s32 %v2475, %v2430
    %v2496 = vadd.s32 %v2475, %v2431
    %v2497 = vadd.s32 %v2475, %v2432
    %v2498 = vadd.s32 %v2475, %v2433
    %v2499 = vadd.s32 %v2475, %v2434
    %v2500 = vadd.s32 %v2475, %v2435
    %v2501 = vadd.s32 %v2475, %v2436
    %v2502 = vadd.s32 %v2475, %v2437
    %v2503 = vadd.s32 %v2475, %v2438
    %v2504 = vadd.s32 %v2475, %v2439
    %v2505 = vadd.s32 %v2475, %v2440
    %v2506 = vadd.s32 %v2475, %v2441
    %v2507 = vadd.s32 %v2475, %v2442
    %v2508 = vadd.s32 %v2475, %v2443
    %v2509 = vadd.s32 %v2475, %v2444
    %v2510 = vadd.s32 %v2475, %v2445
    %v2511 = vadd.s32 %v2475, %v2446
    %v2512 = vadd.s32 %v2475, %v2447
    %v2513 = vadd.s32 %v2475, %v2448
    %v2514 = vadd.s32 %v2475, %v2449
    %v2515 = vadd.s32 %v2475, %v2450
    %v2516 = vadd.s32 %v2475, %v2451
    %v2517 = vadd.s32 %v2475, %v2452
    %v2518 = vadd.s32 %v2475, %v2453
    %v2519 = vadd.s32 %v2475, %v2454
    %v2520 = vadd.s32 %v2475, %v2455
    %v2521 = vadd.s32 %v2475, %v2456
    %v2522 = vadd.s32 %v2475, %v2457
    %v2523 = vadd.s32 %v2475, %v2458
    %v2524 = vadd.s32 %v2475, %v2459
    %v2525 = vadd.s32 %v2475, %v2460
    %v2526 = vadd.s32 %v2475, %v2461
    %v2527 = vadd.s32 %v2475, %v2462
    %v2528 = vadd.s32 %v2475, %v2463
    %v2529 = vadd.s32 %v2475, %v2464
    %v2530 = vadd.s32 %v2475, %v2465
    %v2531 = vadd.s32 %v2475, %v2466
    %v2532 = vadd.s32 %v2475, %v2467
    %v2533 = vadd.s32 %v2475, %v2468
    %v2534 = vadd.s32 %v2475, %v2469
    %v2535 = vadd.s32 %v2475, %v2470
    %v2536 = vadd.s32 %v2475, %v2471
    %v2537 = vadd.s32 %v2475, %v2472
    %v2538 = vadd.s32 %v2475, %v2473
    %v2539 = vadd.s32 %v2475, %v2474
    %vm2540 = vcmp.lt.s32.totalorder %v2476, 512
    %vm2541 = vcmp.lt.s32.totalorder %v2477, 512
    %vm2542 = vcmp.lt.s32.totalorder %v2478, 512
    %vm2543 = vcmp.lt.s32.totalorder %v2479, 512
    %vm2544 = vcmp.lt.s32.totalorder %v2480, 512
    %vm2545 = vcmp.lt.s32.totalorder %v2481, 512
    %vm2546 = vcmp.lt.s32.totalorder %v2482, 512
    %vm2547 = vcmp.lt.s32.totalorder %v2483, 512
    %vm2548 = vcmp.lt.s32.totalorder %v2484, 512
    %vm2549 = vcmp.lt.s32.totalorder %v2485, 512
    %vm2550 = vcmp.lt.s32.totalorder %v2486, 512
    %vm2551 = vcmp.lt.s32.totalorder %v2487, 512
    %vm2552 = vcmp.lt.s32.totalorder %v2488, 512
    %vm2553 = vcmp.lt.s32.totalorder %v2489, 512
    %vm2554 = vcmp.lt.s32.totalorder %v2490, 512
    %vm2555 = vcmp.lt.s32.totalorder %v2491, 512
    %vm2556 = vcmp.lt.s32.totalorder %v2492, 512
    %vm2557 = vcmp.lt.s32.totalorder %v2493, 512
    %vm2558 = vcmp.lt.s32.totalorder %v2494, 512
    %vm2559 = vcmp.lt.s32.totalorder %v2495, 512
    %vm2560 = vcmp.lt.s32.totalorder %v2496, 512
    %vm2561 = vcmp.lt.s32.totalorder %v2497, 512
    %vm2562 = vcmp.lt.s32.totalorder %v2498, 512
    %vm2563 = vcmp.lt.s32.totalorder %v2499, 512
    %vm2564 = vcmp.lt.s32.totalorder %v2500, 512
    %vm2565 = vcmp.lt.s32.totalorder %v2501, 512
    %vm2566 = vcmp.lt.s32.totalorder %v2502, 512
    %vm2567 = vcmp.lt.s32.totalorder %v2503, 512
    %vm2568 = vcmp.lt.s32.totalorder %v2504, 512
    %vm2569 = vcmp.lt.s32.totalorder %v2505, 512
    %vm2570 = vcmp.lt.s32.totalorder %v2506, 512
    %vm2571 = vcmp.lt.s32.totalorder %v2507, 512
    %vm2572 = vcmp.lt.s32.totalorder %v2508, 512
    %vm2573 = vcmp.lt.s32.totalorder %v2509, 512
    %vm2574 = vcmp.lt.s32.totalorder %v2510, 512
    %vm2575 = vcmp.lt.s32.totalorder %v2511, 512
    %vm2576 = vcmp.lt.s32.totalorder %v2512, 512
    %vm2577 = vcmp.lt.s32.totalorder %v2513, 512
    %vm2578 = vcmp.lt.s32.totalorder %v2514, 512
    %vm2579 = vcmp.lt.s32.totalorder %v2515, 512
    %vm2580 = vcmp.lt.s32.totalorder %v2516, 512
    %vm2581 = vcmp.lt.s32.totalorder %v2517, 512
    %vm2582 = vcmp.lt.s32.totalorder %v2518, 512
    %vm2583 = vcmp.lt.s32.totalorder %v2519, 512
    %vm2584 = vcmp.lt.s32.totalorder %v2520, 512
    %vm2585 = vcmp.lt.s32.totalorder %v2521, 512
    %vm2586 = vcmp.lt.s32.totalorder %v2522, 512
    %vm2587 = vcmp.lt.s32.totalorder %v2523, 512
    %vm2588 = vcmp.lt.s32.totalorder %v2524, 512
    %vm2589 = vcmp.lt.s32.totalorder %v2525, 512
    %vm2590 = vcmp.lt.s32.totalorder %v2526, 512
    %vm2591 = vcmp.lt.s32.totalorder %v2527, 512
    %vm2592 = vcmp.lt.s32.totalorder %v2528, 512
    %vm2593 = vcmp.lt.s32.totalorder %v2529, 512
    %vm2594 = vcmp.lt.s32.totalorder %v2530, 512
    %vm2595 = vcmp.lt.s32.totalorder %v2531, 512
    %vm2596 = vcmp.lt.s32.totalorder %v2532, 512
    %vm2597 = vcmp.lt.s32.totalorder %v2533, 512
    %vm2598 = vcmp.lt.s32.totalorder %v2534, 512
    %vm2599 = vcmp.lt.s32.totalorder %v2535, 512
    %vm2600 = vcmp.lt.s32.totalorder %v2536, 512
    %vm2601 = vcmp.lt.s32.totalorder %v2537, 512
    %vm2602 = vcmp.lt.s32.totalorder %v2538, 512
    %vm2603 = vcmp.lt.s32.totalorder %v2539, 512
    %v2604 = vsel %vm2540, 1, 0
    %v2605 = vsel %vm2541, 1, 0
    %v2606 = vsel %vm2542, 1, 0
    %v2607 = vsel %vm2543, 1, 0
    %v2608 = vsel %vm2544, 1, 0
    %v2609 = vsel %vm2545, 1, 0
    %v2610 = vsel %vm2546, 1, 0
    %v2611 = vsel %vm2547, 1, 0
    %v2612 = vsel %vm2548, 1, 0
    %v2613 = vsel %vm2549, 1, 0
    %v2614 = vsel %vm2550, 1, 0
    %v2615 = vsel %vm2551, 1, 0
    %v2616 = vsel %vm2552, 1, 0
    %v2617 = vsel %vm2553, 1, 0
    %v2618 = vsel %vm2554, 1, 0
    %v2619 = vsel %vm2555, 1, 0
    %v2620 = vsel %vm2556, 1, 0
    %v2621 = vsel %vm2557, 1, 0
    %v2622 = vsel %vm2558, 1, 0
    %v2623 = vsel %vm2559, 1, 0
    %v2624 = vsel %vm2560, 1, 0
    %v2625 = vsel %vm2561, 1, 0
    %v2626 = vsel %vm2562, 1, 0
    %v2627 = vsel %vm2563, 1, 0
    %v2628 = vsel %vm2564, 1, 0
    %v2629 = vsel %vm2565, 1, 0
    %v2630 = vsel %vm2566, 1, 0
    %v2631 = vsel %vm2567, 1, 0
    %v2632 = vsel %vm2568, 1, 0
    %v2633 = vsel %vm2569, 1, 0
    %v2634 = vsel %vm2570, 1, 0
    %v2635 = vsel %vm2571, 1, 0
    %v2636 = vsel %vm2572, 1, 0
    %v2637 = vsel %vm2573, 1, 0
    %v2638 = vsel %vm2574, 1, 0
    %v2639 = vsel %vm2575, 1, 0
    %v2640 = vsel %vm2576, 1, 0
    %v2641 = vsel %vm2577, 1, 0
    %v2642 = vsel %vm2578, 1, 0
    %v2643 = vsel %vm2579, 1, 0
    %v2644 = vsel %vm2580, 1, 0
    %v2645 = vsel %vm2581, 1, 0
    %v2646 = vsel %vm2582, 1, 0
    %v2647 = vsel %vm2583, 1, 0
    %v2648 = vsel %vm2584, 1, 0
    %v2649 = vsel %vm2585, 1, 0
    %v2650 = vsel %vm2586, 1, 0
    %v2651 = vsel %vm2587, 1, 0
    %v2652 = vsel %vm2588, 1, 0
    %v2653 = vsel %vm2589, 1, 0
    %v2654 = vsel %vm2590, 1, 0
    %v2655 = vsel %vm2591, 1, 0
    %v2656 = vsel %vm2592, 1, 0
    %v2657 = vsel %vm2593, 1, 0
    %v2658 = vsel %vm2594, 1, 0
    %v2659 = vsel %vm2595, 1, 0
    %v2660 = vsel %vm2596, 1, 0
    %v2661 = vsel %vm2597, 1, 0
    %v2662 = vsel %vm2598, 1, 0
    %v2663 = vsel %vm2599, 1, 0
    %v2664 = vsel %vm2600, 1, 0
    %v2665 = vsel %vm2601, 1, 0
    %v2666 = vsel %vm2602, 1, 0
    %v2667 = vsel %vm2603, 1, 0
    %v2668 = vcvt.s32.f32 %v2604
    %v2669 = vcvt.s32.f32 %v2605
    %v2670 = vcvt.s32.f32 %v2606
    %v2671 = vcvt.s32.f32 %v2607
    %v2672 = vcvt.s32.f32 %v2608
    %v2673 = vcvt.s32.f32 %v2609
    %v2674 = vcvt.s32.f32 %v2610
    %v2675 = vcvt.s32.f32 %v2611
    %v2676 = vcvt.s32.f32 %v2612
    %v2677 = vcvt.s32.f32 %v2613
    %v2678 = vcvt.s32.f32 %v2614
    %v2679 = vcvt.s32.f32 %v2615
    %v2680 = vcvt.s32.f32 %v2616
    %v2681 = vcvt.s32.f32 %v2617
    %v2682 = vcvt.s32.f32 %v2618
    %v2683 = vcvt.s32.f32 %v2619
    %v2684 = vcvt.s32.f32 %v2620
    %v2685 = vcvt.s32.f32 %v2621
    %v2686 = vcvt.s32.f32 %v2622
    %v2687 = vcvt.s32.f32 %v2623
    %v2688 = vcvt.s32.f32 %v2624
    %v2689 = vcvt.s32.f32 %v2625
    %v2690 = vcvt.s32.f32 %v2626
    %v2691 = vcvt.s32.f32 %v2627
    %v2692 = vcvt.s32.f32 %v2628
    %v2693 = vcvt.s32.f32 %v2629
    %v2694 = vcvt.s32.f32 %v2630
    %v2695 = vcvt.s32.f32 %v2631
    %v2696 = vcvt.s32.f32 %v2632
    %v2697 = vcvt.s32.f32 %v2633
    %v2698 = vcvt.s32.f32 %v2634
    %v2699 = vcvt.s32.f32 %v2635
    %v2700 = vcvt.s32.f32 %v2636
    %v2701 = vcvt.s32.f32 %v2637
    %v2702 = vcvt.s32.f32 %v2638
    %v2703 = vcvt.s32.f32 %v2639
    %v2704 = vcvt.s32.f32 %v2640
    %v2705 = vcvt.s32.f32 %v2641
    %v2706 = vcvt.s32.f32 %v2642
    %v2707 = vcvt.s32.f32 %v2643
    %v2708 = vcvt.s32.f32 %v2644
    %v2709 = vcvt.s32.f32 %v2645
    %v2710 = vcvt.s32.f32 %v2646
    %v2711 = vcvt.s32.f32 %v2647
    %v2712 = vcvt.s32.f32 %v2648
    %v2713 = vcvt.s32.f32 %v2649
    %v2714 = vcvt.s32.f32 %v2650
    %v2715 = vcvt.s32.f32 %v2651
    %v2716 = vcvt.s32.f32 %v2652
    %v2717 = vcvt.s32.f32 %v2653
    %v2718 = vcvt.s32.f32 %v2654
    %v2719 = vcvt.s32.f32 %v2655
    %v2720 = vcvt.s32.f32 %v2656
    %v2721 = vcvt.s32.f32 %v2657
    %v2722 = vcvt.s32.f32 %v2658
    %v2723 = vcvt.s32.f32 %v2659
    %v2724 = vcvt.s32.f32 %v2660
    %v2725 = vcvt.s32.f32 %v2661
    %v2726 = vcvt.s32.f32 %v2662
    %v2727 = vcvt.s32.f32 %v2663
    %v2728 = vcvt.s32.f32 %v2664
    %v2729 = vcvt.s32.f32 %v2665
    %v2730 = vcvt.s32.f32 %v2666
    %v2731 = vcvt.s32.f32 %v2667
    %v2732 = vsub.f32 %v2027, %v62
    %v2733 = vsub.f32 %v2032, %v63
    %v2734 = vsub.f32 %v2037, %v64
    %v2735 = vsub.f32 %v2042, %v65
    %v2736 = vsub.f32 %v2047, %v66
    %v2737 = vsub.f32 %v2052, %v67
    %v2738 = vsub.f32 %v2057, %v68
    %v2739 = vsub.f32 %v2062, %v69
    %v2740 = vsub.f32 %v2067, %v70
    %v2741 = vsub.f32 %v2072, %v71
    %v2742 = vsub.f32 %v2077, %v72
    %v2743 = vsub.f32 %v2082, %v73
    %v2744 = vsub.f32 %v2087, %v74
    %v2745 = vsub.f32 %v2092, %v75
    %v2746 = vsub.f32 %v2097, %v76
    %v2747 = vsub.f32 %v2102, %v77
    %v2748 = vsub.f32 %v2107, %v78
    %v2749 = vsub.f32 %v2112, %v79
    %v2750 = vsub.f32 %v2117, %v80
    %v2751 = vsub.f32 %v2122, %v81
    %v2752 = vsub.f32 %v2127, %v82
    %v2753 = vsub.f32 %v2132, %v83
    %v2754 = vsub.f32 %v2137, %v84
    %v2755 = vsub.f32 %v2142, %v85
    %v2756 = vsub.f32 %v2147, %v86
    %v2757 = vsub.f32 %v2152, %v87
    %v2758 = vsub.f32 %v2157, %v88
    %v2759 = vsub.f32 %v2162, %v89
    %v2760 = vsub.f32 %v2167, %v90
    %v2761 = vsub.f32 %v2172, %v91
    %v2762 = vsub.f32 %v2177, %v92
    %v2763 = vsub.f32 %v2182, %v93
    %v2764 = vsub.f32 %v2187, %v94
    %v2765 = vsub.f32 %v2192, %v95
    %v2766 = vsub.f32 %v2197, %v96
    %v2767 = vsub.f32 %v2202, %v97
    %v2768 = vsub.f32 %v2207, %v98
    %v2769 = vsub.f32 %v2212, %v99
    %v2770 = vsub.f32 %v2217, %v100
    %v2771 = vsub.f32 %v2222, %v101
    %v2772 = vsub.f32 %v2227, %v102
    %v2773 = vsub.f32 %v2232, %v103
    %v2774 = vsub.f32 %v2237, %v104
    %v2775 = vsub.f32 %v2242, %v105
    %v2776 = vsub.f32 %v2247, %v106
    %v2777 = vsub.f32 %v2252, %v107
    %v2778 = vsub.f32 %v2257, %v108
    %v2779 = vsub.f32 %v2262, %v109
    %v2780 = vsub.f32 %v2267, %v110
    %v2781 = vsub.f32 %v2272, %v111
    %v2782 = vsub.f32 %v2277, %v112
    %v2783 = vsub.f32 %v2282, %v113
    %v2784 = vsub.f32 %v2287, %v114
    %v2785 = vsub.f32 %v2292, %v115
    %v2786 = vsub.f32 %v2297, %v116
    %v2787 = vsub.f32 %v2302, %v117
    %v2788 = vsub.f32 %v2307, %v118
    %v2789 = vsub.f32 %v2312, %v119
    %v2790 = vsub.f32 %v2317, %v120
    %v2791 = vsub.f32 %v2322, %v121
    %v2792 = vsub.f32 %v2327, %v122
    %v2793 = vsub.f32 %v2332, %v123
    %v2794 = vsub.f32 %v2337, %v124
    %v2795 = vsub.f32 %v2342, %v125
    %v2796 = vmul.f32 %v2732, %v2668
    %v2797 = vmul.f32 %v2733, %v2669
    %v2798 = vmul.f32 %v2734, %v2670
    %v2799 = vmul.f32 %v2735, %v2671
    %v2800 = vmul.f32 %v2736, %v2672
    %v2801 = vmul.f32 %v2737, %v2673
    %v2802 = vmul.f32 %v2738, %v2674
    %v2803 = vmul.f32 %v2739, %v2675
    %v2804 = vmul.f32 %v2740, %v2676
    %v2805 = vmul.f32 %v2741, %v2677
    %v2806 = vmul.f32 %v2742, %v2678
    %v2807 = vmul.f32 %v2743, %v2679
    %v2808 = vmul.f32 %v2744, %v2680
    %v2809 = vmul.f32 %v2745, %v2681
    %v2810 = vmul.f32 %v2746, %v2682
    %v2811 = vmul.f32 %v2747, %v2683
    %v2812 = vmul.f32 %v2748, %v2684
    %v2813 = vmul.f32 %v2749, %v2685
    %v2814 = vmul.f32 %v2750, %v2686
    %v2815 = vmul.f32 %v2751, %v2687
    %v2816 = vmul.f32 %v2752, %v2688
    %v2817 = vmul.f32 %v2753, %v2689
    %v2818 = vmul.f32 %v2754, %v2690
    %v2819 = vmul.f32 %v2755, %v2691
    %v2820 = vmul.f32 %v2756, %v2692
    %v2821 = vmul.f32 %v2757, %v2693
    %v2822 = vmul.f32 %v2758, %v2694
    %v2823 = vmul.f32 %v2759, %v2695
    %v2824 = vmul.f32 %v2760, %v2696
    %v2825 = vmul.f32 %v2761, %v2697
    %v2826 = vmul.f32 %v2762, %v2698
    %v2827 = vmul.f32 %v2763, %v2699
    %v2828 = vmul.f32 %v2764, %v2700
    %v2829 = vmul.f32 %v2765, %v2701
    %v2830 = vmul.f32 %v2766, %v2702
    %v2831 = vmul.f32 %v2767, %v2703
    %v2832 = vmul.f32 %v2768, %v2704
    %v2833 = vmul.f32 %v2769, %v2705
    %v2834 = vmul.f32 %v2770, %v2706
    %v2835 = vmul.f32 %v2771, %v2707
    %v2836 = vmul.f32 %v2772, %v2708
    %v2837 = vmul.f32 %v2773, %v2709
    %v2838 = vmul.f32 %v2774, %v2710
    %v2839 = vmul.f32 %v2775, %v2711
    %v2840 = vmul.f32 %v2776, %v2712
    %v2841 = vmul.f32 %v2777, %v2713
    %v2842 = vmul.f32 %v2778, %v2714
    %v2843 = vmul.f32 %v2779, %v2715
    %v2844 = vmul.f32 %v2780, %v2716
    %v2845 = vmul.f32 %v2781, %v2717
    %v2846 = vmul.f32 %v2782, %v2718
    %v2847 = vmul.f32 %v2783, %v2719
    %v2848 = vmul.f32 %v2784, %v2720
    %v2849 = vmul.f32 %v2785, %v2721
    %v2850 = vmul.f32 %v2786, %v2722
    %v2851 = vmul.f32 %v2787, %v2723
    %v2852 = vmul.f32 %v2788, %v2724
    %v2853 = vmul.f32 %v2789, %v2725
    %v2854 = vmul.f32 %v2790, %v2726
    %v2855 = vmul.f32 %v2791, %v2727
    %v2856 = vmul.f32 %v2792, %v2728
    %v2857 = vmul.f32 %v2793, %v2729
    %v2858 = vmul.f32 %v2794, %v2730
    %v2859 = vmul.f32 %v2795, %v2731
    %v2860 = vmul.f32 %v2796, %v2796
    %v2861 = vmul.f32 %v2797, %v2797
    %v2862 = vmul.f32 %v2798, %v2798
    %v2863 = vmul.f32 %v2799, %v2799
    %v2864 = vmul.f32 %v2800, %v2800
    %v2865 = vmul.f32 %v2801, %v2801
    %v2866 = vmul.f32 %v2802, %v2802
    %v2867 = vmul.f32 %v2803, %v2803
    %v2868 = vmul.f32 %v2804, %v2804
    %v2869 = vmul.f32 %v2805, %v2805
    %v2870 = vmul.f32 %v2806, %v2806
    %v2871 = vmul.f32 %v2807, %v2807
    %v2872 = vmul.f32 %v2808, %v2808
    %v2873 = vmul.f32 %v2809, %v2809
    %v2874 = vmul.f32 %v2810, %v2810
    %v2875 = vmul.f32 %v2811, %v2811
    %v2876 = vmul.f32 %v2812, %v2812
    %v2877 = vmul.f32 %v2813, %v2813
    %v2878 = vmul.f32 %v2814, %v2814
    %v2879 = vmul.f32 %v2815, %v2815
    %v2880 = vmul.f32 %v2816, %v2816
    %v2881 = vmul.f32 %v2817, %v2817
    %v2882 = vmul.f32 %v2818, %v2818
    %v2883 = vmul.f32 %v2819, %v2819
    %v2884 = vmul.f32 %v2820, %v2820
    %v2885 = vmul.f32 %v2821, %v2821
    %v2886 = vmul.f32 %v2822, %v2822
    %v2887 = vmul.f32 %v2823, %v2823
    %v2888 = vmul.f32 %v2824, %v2824
    %v2889 = vmul.f32 %v2825, %v2825
    %v2890 = vmul.f32 %v2826, %v2826
    %v2891 = vmul.f32 %v2827, %v2827
    %v2892 = vmul.f32 %v2828, %v2828
    %v2893 = vmul.f32 %v2829, %v2829
    %v2894 = vmul.f32 %v2830, %v2830
    %v2895 = vmul.f32 %v2831, %v2831
    %v2896 = vmul.f32 %v2832, %v2832
    %v2897 = vmul.f32 %v2833, %v2833
    %v2898 = vmul.f32 %v2834, %v2834
    %v2899 = vmul.f32 %v2835, %v2835
    %v2900 = vmul.f32 %v2836, %v2836
    %v2901 = vmul.f32 %v2837, %v2837
    %v2902 = vmul.f32 %v2838, %v2838
    %v2903 = vmul.f32 %v2839, %v2839
    %v2904 = vmul.f32 %v2840, %v2840
    %v2905 = vmul.f32 %v2841, %v2841
    %v2906 = vmul.f32 %v2842, %v2842
    %v2907 = vmul.f32 %v2843, %v2843
    %v2908 = vmul.f32 %v2844, %v2844
    %v2909 = vmul.f32 %v2845, %v2845
    %v2910 = vmul.f32 %v2846, %v2846
    %v2911 = vmul.f32 %v2847, %v2847
    %v2912 = vmul.f32 %v2848, %v2848
    %v2913 = vmul.f32 %v2849, %v2849
    %v2914 = vmul.f32 %v2850, %v2850
    %v2915 = vmul.f32 %v2851, %v2851
    %v2916 = vmul.f32 %v2852, %v2852
    %v2917 = vmul.f32 %v2853, %v2853
    %v2918 = vmul.f32 %v2854, %v2854
    %v2919 = vmul.f32 %v2855, %v2855
    %v2920 = vmul.f32 %v2856, %v2856
    %v2921 = vmul.f32 %v2857, %v2857
    %v2922 = vmul.f32 %v2858, %v2858
    %v2923 = vmul.f32 %v2859, %v2859
    %v2924 = vadd.f32 %v2860, %v2861
    %v2925 = vadd.f32 %v2924, %v2862
    %v2926 = vadd.f32 %v2925, %v2863
    %v2927 = vadd.f32 %v2926, %v2864
    %v2928 = vadd.f32 %v2927, %v2865
    %v2929 = vadd.f32 %v2928, %v2866
    %v2930 = vadd.f32 %v2929, %v2867
    %v2931 = vadd.f32 %v2930, %v2868
    %v2932 = vadd.f32 %v2931, %v2869
    %v2933 = vadd.f32 %v2932, %v2870
    %v2934 = vadd.f32 %v2933, %v2871
    %v2935 = vadd.f32 %v2934, %v2872
    %v2936 = vadd.f32 %v2935, %v2873
    %v2937 = vadd.f32 %v2936, %v2874
    %v2938 = vadd.f32 %v2937, %v2875
    %v2939 = vadd.f32 %v2938, %v2876
    %v2940 = vadd.f32 %v2939, %v2877
    %v2941 = vadd.f32 %v2940, %v2878
    %v2942 = vadd.f32 %v2941, %v2879
    %v2943 = vadd.f32 %v2942, %v2880
    %v2944 = vadd.f32 %v2943, %v2881
    %v2945 = vadd.f32 %v2944, %v2882
    %v2946 = vadd.f32 %v2945, %v2883
    %v2947 = vadd.f32 %v2946, %v2884
    %v2948 = vadd.f32 %v2947, %v2885
    %v2949 = vadd.f32 %v2948, %v2886
    %v2950 = vadd.f32 %v2949, %v2887
    %v2951 = vadd.f32 %v2950, %v2888
    %v2952 = vadd.f32 %v2951, %v2889
    %v2953 = vadd.f32 %v2952, %v2890
    %v2954 = vadd.f32 %v2953, %v2891
    %v2955 = vadd.f32 %v2954, %v2892
    %v2956 = vadd.f32 %v2955, %v2893
    %v2957 = vadd.f32 %v2956, %v2894
    %v2958 = vadd.f32 %v2957, %v2895
    %v2959 = vadd.f32 %v2958, %v2896
    %v2960 = vadd.f32 %v2959, %v2897
    %v2961 = vadd.f32 %v2960, %v2898
    %v2962 = vadd.f32 %v2961, %v2899
    %v2963 = vadd.f32 %v2962, %v2900
    %v2964 = vadd.f32 %v2963, %v2901
    %v2965 = vadd.f32 %v2964, %v2902
    %v2966 = vadd.f32 %v2965, %v2903
    %v2967 = vadd.f32 %v2966, %v2904
    %v2968 = vadd.f32 %v2967, %v2905
    %v2969 = vadd.f32 %v2968, %v2906
    %v2970 = vadd.f32 %v2969, %v2907
    %v2971 = vadd.f32 %v2970, %v2908
    %v2972 = vadd.f32 %v2971, %v2909
    %v2973 = vadd.f32 %v2972, %v2910
    %v2974 = vadd.f32 %v2973, %v2911
    %v2975 = vadd.f32 %v2974, %v2912
    %v2976 = vadd.f32 %v2975, %v2913
    %v2977 = vadd.f32 %v2976, %v2914
    %v2978 = vadd.f32 %v2977, %v2915
    %v2979 = vadd.f32 %v2978, %v2916
    %v2980 = vadd.f32 %v2979, %v2917
    %v2981 = vadd.f32 %v2980, %v2918
    %v2982 = vadd.f32 %v2981, %v2919
    %v2983 = vadd.f32 %v2982, %v2920
    %v2984 = vadd.f32 %v2983, %v2921
    %v2985 = vadd.f32 %v2984, %v2922
    %v2986 = vadd.f32 %v2985, %v2923
    %2987 = vst [vmem:[#allocation9] sm:$0xff] %v2986
    // Predicated region
    $region30: #{tpu_custom_call.1} parent=1 // pred_check
      _
    $region31: #{tpu_custom_call.1} parent=1 // pred_check_branch
      %2989 = sbr.rel (0) target = $region33
    $region32: #{tpu_custom_call.1} parent=1 // pred_region
      %s2991 = ssub.s32 8192, 8192
      %2992 = vsyncadd [#allocation4], %s2991
      %s2993 = sshll.u32 [#allocation8], 4
      %s2994 = int_to_ptr.vmem [resolvable:$true] %s2993
      %2999 = dma.vmem_to_hbm [thread:$0]  %s2994, 8192, %s4, [#allocation4], 128, 128, 8
    $region33: #{tpu_custom_call.1} parent=1 // pred_fallthru
      _
    // Predicated region
    $region34: #{tpu_custom_call.1} parent=1 // pred_check
      _
    $region35: #{tpu_custom_call.1} parent=1 // pred_check_branch
      %3001 = sbr.rel (0) target = $region37
    $region36: #{tpu_custom_call.1} parent=1 // pred_region
      %s3003 = ssub.s32 128, 128
      %3004 = vsyncadd [#allocation10], %s3003
      %s3006 = sshll.u32 [#allocation9], 4
      %s3007 = int_to_ptr.vmem [resolvable:$true] %s3006
      %3009 = dma.vmem_to_hbm [thread:$0]  %s3007, 128, %s5, [#allocation10]
    $region37: #{tpu_custom_call.1} parent=1 // pred_fallthru
      _
    // Predicated region
    $region38: #{tpu_custom_call.1} parent=1 // pred_check
      _
    $region39: #{tpu_custom_call.1} parent=1 // pred_check_branch
      %3011 = sbr.rel (0) target = $region41
    $region40: #{tpu_custom_call.1} parent=1 // pred_region
      %3012 = dma.done [#allocation4], 8192
    $region41: #{tpu_custom_call.1} parent=1 // pred_fallthru
      _
    // Predicated region
    $region42: #{tpu_custom_call.1} parent=1 // pred_check
      _
    $region43: #{tpu_custom_call.1} parent=1 // pred_check_branch
      %3014 = sbr.rel (0) target = $region45
    $region44: #{tpu_custom_call.1} parent=1 // pred_region
      %3015 = dma.done [#allocation10], 128
    $region45: #{tpu_custom_call.1} parent=1 // pred_fallthru
      _
    %3016 = vsyncpa [#allocation3], 1
    %3017 = vsyncpa [#allocation6], 1
    %3018 = vsyncpa [#allocation4], 1
    %3019 = vsyncpa [#allocation10], 1

</llo_original>
